<compile_context>
chip_gen: v6e
topology: v6e:2x2x1
jax: 0.10.0
libtpu: 0.0.40
codegen_flags: <defaults>
</compile_context>

<pallas_src>
import math
from functools import partial

import jax
import jax.numpy as jnp
from jax import lax
from jax.experimental import pallas as pl
from jax.experimental.pallas import tpu as pltpu


# ---------------------------- fused Pallas kernel ---------------------------

def _reformer_fused_kernel(xemb_ref, sm_ref, wm_ref, wf_ref, proj_ref, out_ref,
                           *, e_layers, n_heads, d_model, d_ff,
                           wm_tab, wf_tab, proj_tab):
    """Whole Reformer forward for one batch element (all refs VMEM-resident)."""
    f32 = jnp.float32
    Dm, H = d_model, n_heads
    dh = Dm // H
    scale = 1.0 / math.sqrt(dh)

    def wm(name):                                   # d_model-wide slab rows
        o, r = wm_tab[name]
        return wm_ref[o:o + r, :].astype(f32)

    def wf(name):                                   # d_ff-wide slab rows
        o, r = wf_tab[name]
        return wf_ref[o:o + r, :].astype(f32)

    def layernorm(x, g, b):
        mu = jnp.mean(x, axis=-1, keepdims=True)
        xc = x - mu
        var = jnp.mean(xc * xc, axis=-1, keepdims=True)
        return xc * lax.rsqrt(var + 1e-5) * g + b   # torch LayerNorm eps

    # --- DataEmbedding: one (N, 3*Cin+mark) @ (., D) matmul + positional add --
    x = jnp.dot(xemb_ref[...].astype(f32), wm('emb_w'),
                preferred_element_type=f32) + wm('pos')              # (N, D)

    for l in range(e_layers):
        p = f'l{l}/'

        # --- shared-QK multi-head attention ----------------------------------
        # TODO(synk): Reformer's LSH bucketing (random-rotation hashing,
        # n_hashes rounds, bucket chunking, self-position masking, key
        # normalization) has no deterministic Pallas equivalent; the dense
        # shared-QK softmax it approximates is used instead.  At realistic L
        # this should become a KV-tiled online-softmax loop rather than a
        # dense (L, L) score tile.
        qk = jnp.dot(x, wm(p + 'wqk'), preferred_element_type=f32)   # (N, D)
        v = jnp.dot(x, wm(p + 'wv'), preferred_element_type=f32)     # (N, D)

        # head-batched: (H, N, dh) stacks + batched einsums (one softmax pass)
        q_s = jnp.stack([qk[:, h * dh:(h + 1) * dh] for h in range(H)], axis=0)
        v_s = jnp.stack([v[:, h * dh:(h + 1) * dh] for h in range(H)], axis=0)
        s = jnp.einsum('hqd,hkd->hqk', q_s, q_s,
                       preferred_element_type=f32) * scale           # (H, N, N)
        m = jnp.max(s, axis=-1, keepdims=True)
        e = jnp.exp(s - m)
        attn = e * pl.reciprocal(jnp.sum(e, axis=-1, keepdims=True), approx=True)
        o = jnp.einsum('hqk,hkd->hqd', attn, v_s,
                       preferred_element_type=f32)                   # (H, N, dh)

        # output projection: lane-concat heads -> one (N, D) @ (D, D) matmul
        o_cat = jnp.concatenate([o[h] for h in range(H)], axis=-1)   # (N, D)
        new_x = jnp.dot(o_cat, wm(p + 'wo'),
                        preferred_element_type=f32) + wm(p + 'bo')

        x = layernorm(x + new_x, wm(p + 'ln1_g'), wm(p + 'ln1_b'))

        # --- FFN: 1x1 Conv1d pair == per-position linears ('relu') -----------
        y = jnp.maximum(jnp.dot(x, wf(p + 'w1'), preferred_element_type=f32)
                        + wf(p + 'b1'), 0.0)
        y = jnp.dot(y, wm(p + 'w2'), preferred_element_type=f32) + wm(p + 'b2')
        x = layernorm(x + y, wm(p + 'ln2_g'), wm(p + 'ln2_b'))

    # --- encoder final norm, projection, de-normalization (lane-dense) -------
    x = layernorm(x, wm('norm_g'), wm('norm_b'))
    ow, owr = proj_tab['proj_w']
    ob, obr = proj_tab['proj_b']
    dec = jnp.dot(x, proj_ref[ow:ow + owr, :].astype(f32),
                  preferred_element_type=f32) + proj_ref[ob:ob + obr, :].astype(f32)
    dec = dec * sm_ref[0:1, :].astype(f32) + sm_ref[1:2, :].astype(f32)
    out_ref[...] = dec.astype(out_ref.dtype)


# ---------------------------- glue helpers -----------------------------------

def _pack_slab(items, width):
    """Pack (name, array) pairs row-wise into one (R, width) f32 slab.

    Every section is zero-padded on the right to `width` and its start is
    8-row (sublane) aligned.  Returns (slab, {name: (row_offset, rows)}).
    """
    parts, table, cur = [], {}, 0
    for name, arr in items:
        a = jnp.asarray(arr, jnp.float32)
        if a.ndim == 1:
            a = a.reshape(1, -1)
        r, w = a.shape
        assert w <= width, (name, w, width)
        if w < width:
            a = jnp.pad(a, ((0, 0), (0, width - w)))
        table[name] = (cur, r)
        parts.append(a)
        cur += r
        pad = (-r) % 8
        if pad:
            parts.append(jnp.zeros((pad, width), jnp.float32))
            cur += pad
    return jnp.concatenate(parts, axis=0), table


def positional_embedding(L, d_model):
    position = jnp.arange(L, dtype=jnp.float32)[:, None]
    div_term = jnp.exp(jnp.arange(0, d_model, 2, dtype=jnp.float32)
                       * (-(math.log(10000.0) / d_model)))
    pe = jnp.zeros((L, d_model), jnp.float32)
    pe = pe.at[:, 0::2].set(jnp.sin(position * div_term))
    pe = pe.at[:, 1::2].set(jnp.cos(position * div_term))
    return pe


# ---------------------------- model (glue) ------------------------------------

def reformer_forward(params, cfg, x_enc, x_mark_enc, x_dec, x_mark_dec):
    B = x_enc.shape[0]
    pred_len, d_model, d_ff = cfg['pred_len'], cfg['d_model'], cfg['d_ff']
    enc_in, c_in = cfg['enc_in'], cfg['c_in']
    assert c_in == enc_in, "de-normalization (dec*std+mean) requires c_in == enc_in"
    assert d_model % cfg['n_heads'] == 0
    assert d_model % 2 == 0, "sin/cos positional embedding needs even d_model"

    # ---- short_forecast: per-series normalization (plain-JAX glue) ----
    mean_enc = jnp.mean(x_enc, axis=1, keepdims=True)
    xz = x_enc - mean_enc
    std_enc = jnp.sqrt(jnp.var(xz, axis=1, keepdims=True) + 1e-5)   # unbiased=False
    xz = xz / std_enc
    x = jnp.concatenate([xz, x_dec[:, -pred_len:, :]], axis=1)       # (B, N, Cin)
    x_mark = jnp.concatenate([x_mark_enc, x_mark_dec[:, -pred_len:, :]], axis=1)
    N = x.shape[1]

    # circular pad=1 token-conv windows (K-concatenated) + time marks -> one K
    xp = jnp.concatenate([x[:, -1:, :], x, x[:, :1, :]], axis=1)     # (B, N+2, Cin)
    xw = jnp.concatenate([xp[:, 0:N], xp[:, 1:N + 1], xp[:, 2:N + 2]], axis=-1)
    xemb = jnp.concatenate([xw, x_mark], axis=-1)                    # (B, N, 3Cin+mark)
    Ke = xemb.shape[-1]

    # lane-dense output: pad projection/std/mean width up to a multiple of 128
    c_pad = max(128, ((c_in + 127) // 128) * 128)
    sm = jnp.concatenate([std_enc, mean_enc], axis=1)                # (B, 2, Cin)
    sm = jnp.pad(sm, ((0, 0), (0, 0), (0, c_pad - c_in)))

    # ---- pack every grid-invariant parameter into three slabs ----
    emb_w = jnp.concatenate(
        [params['token_w'].reshape(3 * enc_in, d_model), params['temp_w']], axis=0)
    pos = positional_embedding(N, d_model)

    wm_items = [('emb_w', emb_w), ('pos', pos)]
    wf_items = []
    for l, p in enumerate(params['layers']):
        pre = f'l{l}/'
        wm_items += [(pre + 'wqk', p['wqk']), (pre + 'wv', p['wv']),
                     (pre + 'wo', p['wo']), (pre + 'bo', p['bo']),
                     (pre + 'w2', p['w2']), (pre + 'b2', p['b2']),
                     (pre + 'ln1_g', p['ln1_g']), (pre + 'ln1_b', p['ln1_b']),
                     (pre + 'ln2_g', p['ln2_g']), (pre + 'ln2_b', p['ln2_b'])]
        wf_items += [(pre + 'w1', p['w1']), (pre + 'b1', p['b1'])]
    wm_items += [('norm_g', params['norm_g']), ('norm_b', params['norm_b'])]

    wm_slab, wm_tab = _pack_slab(wm_items, d_model)
    wf_slab, wf_tab = _pack_slab(wf_items, d_ff)
    proj_slab, proj_tab = _pack_slab(
        [('proj_w', params['proj_w']), ('proj_b', params['proj_b'])], c_pad)

    kernel = partial(_reformer_fused_kernel,
                     e_layers=cfg['e_layers'], n_heads=cfg['n_heads'],
                     d_model=d_model, d_ff=d_ff,
                     wm_tab=wm_tab, wf_tab=wf_tab, proj_tab=proj_tab)

    dec = pl.pallas_call(
        kernel,
        out_shape=jax.ShapeDtypeStruct((B, N, c_pad), jnp.float32),
        grid=(B,),
        in_specs=[
            pl.BlockSpec((None, N, Ke), lambda b: (b, 0, 0)),        # per-batch input
            pl.BlockSpec((None, 2, c_pad), lambda b: (b, 0, 0)),     # per-batch std/mean
            pl.BlockSpec(wm_slab.shape, lambda b: (0, 0)),           # invariant slabs
            pl.BlockSpec(wf_slab.shape, lambda b: (0, 0)),
            pl.BlockSpec(proj_slab.shape, lambda b: (0, 0)),
        ],
        out_specs=pl.BlockSpec((None, N, c_pad), lambda b: (b, 0, 0)),
        compiler_params=pltpu.CompilerParams(
            dimension_semantics=("parallel",)),                      # megacore on v7x
    )(xemb, sm, wm_slab, wf_slab, proj_slab)

    # ---- output shaping ----
    dec = dec[:, :, :c_in]
    dec = dec[:, -pred_len:, :][..., None]
    return jnp.tile(dec, (1, 1, 1, cfg['ex_c_out']))


def init_params(key, cfg):
    d_model, d_ff = cfg['d_model'], cfg['d_ff']
    enc_in, c_in, mark_dim = cfg['enc_in'], cfg['c_in'], cfg['mark_dim']
    keys = iter(jax.random.split(key, 8 + 12 * cfg['e_layers']))

    def nrm(shape, scale=0.02):
        return (scale * jax.random.normal(next(keys), shape)).astype(jnp.float32)

    params = {
        'token_w': nrm((3, enc_in, d_model)),     # TokenEmbedding conv (bias=False)
        'temp_w': nrm((mark_dim, d_model)),       # TimeFeatureEmbedding (bias=False)
        'proj_w': nrm((d_model, c_in)),
        'proj_b': jnp.zeros((c_in,), jnp.float32),
        'norm_g': jnp.ones((d_model,), jnp.float32),
        'norm_b': jnp.zeros((d_model,), jnp.float32),
        'layers': [],
    }
    for _ in range(cfg['e_layers']):
        params['layers'].append({
            'wqk': nrm((d_model, d_model)),       # LSHSelfAttention.toqk (bias=False)
            'wv': nrm((d_model, d_model)),        # LSHSelfAttention.tov  (bias=False)
            'wo': nrm((d_model, d_model)),        # LSHSelfAttention.to_out
            'bo': jnp.zeros((d_model,), jnp.float32),
            'w1': nrm((d_model, d_ff)),           # conv1 (1x1)
            'b1': jnp.zeros((d_ff,), jnp.float32),
            'w2': nrm((d_ff, d_model)),           # conv2 (1x1)
            'b2': jnp.zeros((d_model,), jnp.float32),
            'ln1_g': jnp.ones((d_model,), jnp.float32),
            'ln1_b': jnp.zeros((d_model,), jnp.float32),
            'ln2_g': jnp.ones((d_model,), jnp.float32),
            'ln2_b': jnp.zeros((d_model,), jnp.float32),
        })
    return params


if __name__ == "__main__":
    # config: seq_len=8, pred_len=8 -> total length 16 (multiple of bucket_size*2=8,
    # so ReformerLayer.fit_length padding is a no-op), enc_in=c_in=8, ex_c_out=3,
    # d_model=32, n_heads=4, d_ff=64, e_layers=2, embed='timeF', freq='h' (4 marks),
    # activation='relu', dropout inactive (eval).
    cfg = dict(seq_len=8, pred_len=8, label_len=4, enc_in=8, c_in=8, ex_c_out=3,
               d_model=32, n_heads=4, d_ff=64, e_layers=2, mark_dim=4)

    key = jax.random.PRNGKey(0)
    kp, k1, k2, k3, k4 = jax.random.split(key, 5)
    params = init_params(kp, cfg)

    B = 2
    dec_len = cfg['label_len'] + cfg['pred_len']
    x_enc = jax.random.normal(k1, (B, cfg['seq_len'], cfg['enc_in']), jnp.float32)
    x_mark_enc = jax.random.normal(k2, (B, cfg['seq_len'], cfg['mark_dim']), jnp.float32)
    x_dec = jax.random.normal(k3, (B, dec_len, cfg['enc_in']), jnp.float32)
    x_mark_dec = jax.random.normal(k4, (B, dec_len, cfg['mark_dim']), jnp.float32)

    fwd = jax.jit(lambda p, a, b, c, d: reformer_forward(p, cfg, a, b, c, d))
    out = fwd(params, x_enc, x_mark_enc, x_dec, x_mark_dec)
    out = jax.block_until_ready(out)
    assert out.shape == (B, cfg['pred_len'], cfg['c_in'], cfg['ex_c_out']), out.shape
    assert bool(jnp.all(jnp.isfinite(out)))
    print("KERNEL_OK")
</pallas_src>

<mosaic_0001>
module attributes {stable_mosaic.version = 11 : i64} {
  func.func @_reformer_fused_kernel(%arg0: i32, %arg1: memref<1x16x28xf32, #tpu.memory_space<vmem>>, %arg2: memref<1x2x128xf32, #tpu.memory_space<vmem>>, %arg3: memref<480x32xf32, #tpu.memory_space<vmem>>, %arg4: memref<80x64xf32, #tpu.memory_space<vmem>>, %arg5: memref<40x128xf32, #tpu.memory_space<vmem>>, %arg6: memref<1x16x128xf32, #tpu.memory_space<vmem>>) attributes {dimension_semantics = [#tpu.dimension_semantics<parallel>], iteration_bounds = array<i64: 2>, scalar_prefetch = 0 : i64, scratch_operands = 0 : i64, tpu.core_type = #tpu.core_type<tc>, window_params = [{transform_indices = @transform_0, window_bounds = array<i64: 1, 16, 28>}, {transform_indices = @transform_1, window_bounds = array<i64: 1, 2, 128>}, {pipeline_mode = #tpu.pipeline_mode<synchronous>, transform_indices = @transform_2, window_bounds = array<i64: 480, 32>}, {pipeline_mode = #tpu.pipeline_mode<synchronous>, transform_indices = @transform_3, window_bounds = array<i64: 80, 64>}, {pipeline_mode = #tpu.pipeline_mode<synchronous>, transform_indices = @transform_4, window_bounds = array<i64: 40, 128>}, {transform_indices = @transform_5, window_bounds = array<i64: 1, 16, 128>}]} {
    %c0 = arith.constant 0 : index
    %c0_0 = arith.constant 0 : index
    %c0_1 = arith.constant 0 : index
    %0 = vector.load %arg1[%c0, %c0_0, %c0_1] : memref<1x16x28xf32, #tpu.memory_space<vmem>>, vector<1x16x28xf32>
    %1 = vector.shape_cast %0 : vector<1x16x28xf32> to vector<16x28xf32>
    %c0_2 = arith.constant 0 : index
    %c0_3 = arith.constant 0 : index
    %2 = vector.load %arg3[%c0_2, %c0_3] : memref<480x32xf32, #tpu.memory_space<vmem>>, vector<28x32xf32>
    %cst = arith.constant dense<0.000000e+00> : vector<16x32xf32>
    %3 = tpu.matmul %1, %2, %cst {dimension_numbers = #tpu.dot_dimension_numbers<[1], [0], [0], [1], [0, 0, 1, 1], [], []>} : vector<16x28xf32>, vector<28x32xf32>, vector<16x32xf32> -> vector<16x32xf32>
    %c32 = arith.constant 32 : index
    %c0_4 = arith.constant 0 : index
    %4 = vector.load %arg3[%c32, %c0_4] : memref<480x32xf32, #tpu.memory_space<vmem>>, vector<16x32xf32>
    %5 = arith.addf %3, %4 : vector<16x32xf32>
    %c48 = arith.constant 48 : index
    %c0_5 = arith.constant 0 : index
    %6 = vector.load %arg3[%c48, %c0_5] : memref<480x32xf32, #tpu.memory_space<vmem>>, vector<32x32xf32>
    %cst_6 = arith.constant dense<0.000000e+00> : vector<16x32xf32>
    %7 = tpu.matmul %5, %6, %cst_6 {dimension_numbers = #tpu.dot_dimension_numbers<[1], [0], [0], [1], [0, 0, 1, 1], [], []>} : vector<16x32xf32>, vector<32x32xf32>, vector<16x32xf32> -> vector<16x32xf32>
    %c80 = arith.constant 80 : index
    %c0_7 = arith.constant 0 : index
    %8 = vector.load %arg3[%c80, %c0_7] : memref<480x32xf32, #tpu.memory_space<vmem>>, vector<32x32xf32>
    %cst_8 = arith.constant dense<0.000000e+00> : vector<16x32xf32>
    %9 = tpu.matmul %5, %8, %cst_8 {dimension_numbers = #tpu.dot_dimension_numbers<[1], [0], [0], [1], [0, 0, 1, 1], [], []>} : vector<16x32xf32>, vector<32x32xf32>, vector<16x32xf32> -> vector<16x32xf32>
    %10 = vector.extract_strided_slice %7 {offsets = [0, 0], sizes = [16, 8], strides = [1, 1]} : vector<16x32xf32> to vector<16x8xf32>
    %11 = vector.extract_strided_slice %7 {offsets = [0, 8], sizes = [16, 8], strides = [1, 1]} : vector<16x32xf32> to vector<16x8xf32>
    %12 = vector.extract_strided_slice %7 {offsets = [0, 16], sizes = [16, 8], strides = [1, 1]} : vector<16x32xf32> to vector<16x8xf32>
    %13 = vector.extract_strided_slice %7 {offsets = [0, 24], sizes = [16, 8], strides = [1, 1]} : vector<16x32xf32> to vector<16x8xf32>
    %14 = vector.shape_cast %10 : vector<16x8xf32> to vector<1x16x8xf32>
    %15 = vector.shape_cast %11 : vector<16x8xf32> to vector<1x16x8xf32>
    %16 = vector.shape_cast %12 : vector<16x8xf32> to vector<1x16x8xf32>
    %17 = vector.shape_cast %13 : vector<16x8xf32> to vector<1x16x8xf32>
    %18 = tpu.concatenate %14, %15, %16, %17 in 0 : vector<1x16x8xf32>, vector<1x16x8xf32>, vector<1x16x8xf32>, vector<1x16x8xf32> -> vector<4x16x8xf32>
    %19 = vector.extract_strided_slice %9 {offsets = [0, 0], sizes = [16, 8], strides = [1, 1]} : vector<16x32xf32> to vector<16x8xf32>
    %20 = vector.extract_strided_slice %9 {offsets = [0, 8], sizes = [16, 8], strides = [1, 1]} : vector<16x32xf32> to vector<16x8xf32>
    %21 = vector.extract_strided_slice %9 {offsets = [0, 16], sizes = [16, 8], strides = [1, 1]} : vector<16x32xf32> to vector<16x8xf32>
    %22 = vector.extract_strided_slice %9 {offsets = [0, 24], sizes = [16, 8], strides = [1, 1]} : vector<16x32xf32> to vector<16x8xf32>
    %23 = vector.shape_cast %19 : vector<16x8xf32> to vector<1x16x8xf32>
    %24 = vector.shape_cast %20 : vector<16x8xf32> to vector<1x16x8xf32>
    %25 = vector.shape_cast %21 : vector<16x8xf32> to vector<1x16x8xf32>
    %26 = vector.shape_cast %22 : vector<16x8xf32> to vector<1x16x8xf32>
    %27 = tpu.concatenate %23, %24, %25, %26 in 0 : vector<1x16x8xf32>, vector<1x16x8xf32>, vector<1x16x8xf32>, vector<1x16x8xf32> -> vector<4x16x8xf32>
    "tpu.trace_start"() <{level = 10 : i32, message = "hqd,hkd->hqk"}> : () -> ()
    %cst_9 = arith.constant dense<0.000000e+00> : vector<4x16x16xf32>
    %28 = tpu.matmul %18, %18, %cst_9 {dimension_numbers = #tpu.dot_dimension_numbers<[2], [2], [1], [1], [0, 0, 0, 1, 1, 1], [0], [0]>} : vector<4x16x8xf32>, vector<4x16x8xf32>, vector<4x16x16xf32> -> vector<4x16x16xf32>
    "tpu.trace_stop"() : () -> ()
    %cst_10 = arith.constant 0.353553385 : f32
    %29 = vector.broadcast %cst_10 : f32 to vector<4x16x16xf32>
    %30 = arith.mulf %28, %29 : vector<4x16x16xf32>
    %cst_11 = arith.constant dense<0xFF800000> : vector<4x16xf32>
    %31 = vector.multi_reduction <maximumf>, %30, %cst_11 [2] : vector<4x16x16xf32> to vector<4x16xf32>
    %32 = vector.shape_cast %31 : vector<4x16xf32> to vector<4x16x1xf32>
    %33 = vector.broadcast %32 : vector<4x16x1xf32> to vector<4x16x16xf32>
    %34 = arith.subf %30, %33 : vector<4x16x16xf32>
    %35 = math.exp %34 : vector<4x16x16xf32>
    %cst_12 = arith.constant dense<0.000000e+00> : vector<4x16xf32>
    %36 = vector.multi_reduction <add>, %35, %cst_12 [2] : vector<4x16x16xf32> to vector<4x16xf32>
    %37 = vector.shape_cast %36 : vector<4x16xf32> to vector<4x16x1xf32>
    %38 = tpu.reciprocal %37 {approx = true} : vector<4x16x1xf32> -> vector<4x16x1xf32>
    %39 = vector.broadcast %38 : vector<4x16x1xf32> to vector<4x16x16xf32>
    %40 = arith.mulf %35, %39 : vector<4x16x16xf32>
    "tpu.trace_start"() <{level = 10 : i32, message = "hqk,hkd->hqd"}> : () -> ()
    %cst_13 = arith.constant dense<0.000000e+00> : vector<4x16x8xf32>
    %41 = tpu.matmul %40, %27, %cst_13 {dimension_numbers = #tpu.dot_dimension_numbers<[2], [1], [1], [2], [0, 0, 0, 1, 1, 2], [0], [0]>} : vector<4x16x16xf32>, vector<4x16x8xf32>, vector<4x16x8xf32> -> vector<4x16x8xf32>
    "tpu.trace_stop"() : () -> ()
    %42 = vector.extract_strided_slice %41 {offsets = [0, 0, 0], sizes = [1, 16, 8], strides = [1, 1, 1]} : vector<4x16x8xf32> to vector<1x16x8xf32>
    %43 = vector.shape_cast %42 : vector<1x16x8xf32> to vector<16x8xf32>
    %44 = vector.extract_strided_slice %41 {offsets = [1, 0, 0], sizes = [1, 16, 8], strides = [1, 1, 1]} : vector<4x16x8xf32> to vector<1x16x8xf32>
    %45 = vector.shape_cast %44 : vector<1x16x8xf32> to vector<16x8xf32>
    %46 = vector.extract_strided_slice %41 {offsets = [2, 0, 0], sizes = [1, 16, 8], strides = [1, 1, 1]} : vector<4x16x8xf32> to vector<1x16x8xf32>
    %47 = vector.shape_cast %46 : vector<1x16x8xf32> to vector<16x8xf32>
    %48 = vector.extract_strided_slice %41 {offsets = [3, 0, 0], sizes = [1, 16, 8], strides = [1, 1, 1]} : vector<4x16x8xf32> to vector<1x16x8xf32>
    %49 = vector.shape_cast %48 : vector<1x16x8xf32> to vector<16x8xf32>
    %50 = tpu.concatenate %43, %45, %47, %49 in 1 : vector<16x8xf32>, vector<16x8xf32>, vector<16x8xf32>, vector<16x8xf32> -> vector<16x32xf32>
    %c112 = arith.constant 112 : index
    %c0_14 = arith.constant 0 : index
    %51 = vector.load %arg3[%c112, %c0_14] : memref<480x32xf32, #tpu.memory_space<vmem>>, vector<32x32xf32>
    %cst_15 = arith.constant dense<0.000000e+00> : vector<16x32xf32>
    %52 = tpu.matmul %50, %51, %cst_15 {dimension_numbers = #tpu.dot_dimension_numbers<[1], [0], [0], [1], [0, 0, 1, 1], [], []>} : vector<16x32xf32>, vector<32x32xf32>, vector<16x32xf32> -> vector<16x32xf32>
    %c144 = arith.constant 144 : index
    %c0_16 = arith.constant 0 : index
    %53 = vector.load %arg3[%c144, %c0_16] : memref<480x32xf32, #tpu.memory_space<vmem>>, vector<1x32xf32>
    %54 = vector.broadcast %53 : vector<1x32xf32> to vector<16x32xf32>
    %55 = arith.addf %52, %54 : vector<16x32xf32>
    %56 = arith.addf %5, %55 : vector<16x32xf32>
    %c224 = arith.constant 224 : index
    %c0_17 = arith.constant 0 : index
    %57 = vector.load %arg3[%c224, %c0_17] : memref<480x32xf32, #tpu.memory_space<vmem>>, vector<1x32xf32>
    %c232 = arith.constant 232 : index
    %c0_18 = arith.constant 0 : index
    %58 = vector.load %arg3[%c232, %c0_18] : memref<480x32xf32, #tpu.memory_space<vmem>>, vector<1x32xf32>
    %cst_19 = arith.constant dense<0.000000e+00> : vector<16xf32>
    %59 = vector.multi_reduction <add>, %56, %cst_19 [1] : vector<16x32xf32> to vector<16xf32>
    %60 = vector.shape_cast %59 : vector<16xf32> to vector<16x1xf32>
    %cst_20 = arith.constant 3.200000e+01 : f32
    %61 = vector.broadcast %cst_20 : f32 to vector<16x1xf32>
    %62 = arith.divf %60, %61 : vector<16x1xf32>
    %63 = vector.broadcast %62 : vector<16x1xf32> to vector<16x32xf32>
    %64 = arith.subf %56, %63 : vector<16x32xf32>
    %65 = arith.mulf %64, %64 : vector<16x32xf32>
    %cst_21 = arith.constant dense<0.000000e+00> : vector<16xf32>
    %66 = vector.multi_reduction <add>, %65, %cst_21 [1] : vector<16x32xf32> to vector<16xf32>
    %67 = vector.shape_cast %66 : vector<16xf32> to vector<16x1xf32>
    %cst_22 = arith.constant 3.200000e+01 : f32
    %68 = vector.broadcast %cst_22 : f32 to vector<16x1xf32>
    %69 = arith.divf %67, %68 : vector<16x1xf32>
    %cst_23 = arith.constant 9.99999974E-6 : f32
    %70 = vector.broadcast %cst_23 : f32 to vector<16x1xf32>
    %71 = arith.addf %69, %70 : vector<16x1xf32>
    %72 = math.rsqrt %71 : vector<16x1xf32>
    %73 = vector.broadcast %72 : vector<16x1xf32> to vector<16x32xf32>
    %74 = arith.mulf %64, %73 : vector<16x32xf32>
    %75 = vector.broadcast %57 : vector<1x32xf32> to vector<16x32xf32>
    %76 = arith.mulf %74, %75 : vector<16x32xf32>
    %77 = vector.broadcast %58 : vector<1x32xf32> to vector<16x32xf32>
    %78 = arith.addf %76, %77 : vector<16x32xf32>
    %c0_24 = arith.constant 0 : index
    %c0_25 = arith.constant 0 : index
    %79 = vector.load %arg4[%c0_24, %c0_25] : memref<80x64xf32, #tpu.memory_space<vmem>>, vector<32x64xf32>
    %cst_26 = arith.constant dense<0.000000e+00> : vector<16x64xf32>
    %80 = tpu.matmul %78, %79, %cst_26 {dimension_numbers = #tpu.dot_dimension_numbers<[1], [0], [0], [1], [0, 0, 1, 1], [], []>} : vector<16x32xf32>, vector<32x64xf32>, vector<16x64xf32> -> vector<16x64xf32>
    %c32_27 = arith.constant 32 : index
    %c0_28 = arith.constant 0 : index
    %81 = vector.load %arg4[%c32_27, %c0_28] : memref<80x64xf32, #tpu.memory_space<vmem>>, vector<1x64xf32>
    %82 = vector.broadcast %81 : vector<1x64xf32> to vector<16x64xf32>
    %83 = arith.addf %80, %82 : vector<16x64xf32>
    %cst_29 = arith.constant 0.000000e+00 : f32
    %84 = vector.broadcast %cst_29 : f32 to vector<16x64xf32>
    %85 = arith.maximumf %83, %84 : vector<16x64xf32>
    %c152 = arith.constant 152 : index
    %c0_30 = arith.constant 0 : index
    %86 = vector.load %arg3[%c152, %c0_30] : memref<480x32xf32, #tpu.memory_space<vmem>>, vector<64x32xf32>
    %cst_31 = arith.constant dense<0.000000e+00> : vector<16x32xf32>
    %87 = tpu.matmul %85, %86, %cst_31 {dimension_numbers = #tpu.dot_dimension_numbers<[1], [0], [0], [1], [0, 0, 1, 1], [], []>} : vector<16x64xf32>, vector<64x32xf32>, vector<16x32xf32> -> vector<16x32xf32>
    %c216 = arith.constant 216 : index
    %c0_32 = arith.constant 0 : index
    %88 = vector.load %arg3[%c216, %c0_32] : memref<480x32xf32, #tpu.memory_space<vmem>>, vector<1x32xf32>
    %89 = vector.broadcast %88 : vector<1x32xf32> to vector<16x32xf32>
    %90 = arith.addf %87, %89 : vector<16x32xf32>
    %91 = arith.addf %78, %90 : vector<16x32xf32>
    %c240 = arith.constant 240 : index
    %c0_33 = arith.constant 0 : index
    %92 = vector.load %arg3[%c240, %c0_33] : memref<480x32xf32, #tpu.memory_space<vmem>>, vector<1x32xf32>
    %c248 = arith.constant 248 : index
    %c0_34 = arith.constant 0 : index
    %93 = vector.load %arg3[%c248, %c0_34] : memref<480x32xf32, #tpu.memory_space<vmem>>, vector<1x32xf32>
    %cst_35 = arith.constant dense<0.000000e+00> : vector<16xf32>
    %94 = vector.multi_reduction <add>, %91, %cst_35 [1] : vector<16x32xf32> to vector<16xf32>
    %95 = vector.shape_cast %94 : vector<16xf32> to vector<16x1xf32>
    %cst_36 = arith.constant 3.200000e+01 : f32
    %96 = vector.broadcast %cst_36 : f32 to vector<16x1xf32>
    %97 = arith.divf %95, %96 : vector<16x1xf32>
    %98 = vector.broadcast %97 : vector<16x1xf32> to vector<16x32xf32>
    %99 = arith.subf %91, %98 : vector<16x32xf32>
    %100 = arith.mulf %99, %99 : vector<16x32xf32>
    %cst_37 = arith.constant dense<0.000000e+00> : vector<16xf32>
    %101 = vector.multi_reduction <add>, %100, %cst_37 [1] : vector<16x32xf32> to vector<16xf32>
    %102 = vector.shape_cast %101 : vector<16xf32> to vector<16x1xf32>
    %cst_38 = arith.constant 3.200000e+01 : f32
    %103 = vector.broadcast %cst_38 : f32 to vector<16x1xf32>
    %104 = arith.divf %102, %103 : vector<16x1xf32>
    %cst_39 = arith.constant 9.99999974E-6 : f32
    %105 = vector.broadcast %cst_39 : f32 to vector<16x1xf32>
    %106 = arith.addf %104, %105 : vector<16x1xf32>
    %107 = math.rsqrt %106 : vector<16x1xf32>
    %108 = vector.broadcast %107 : vector<16x1xf32> to vector<16x32xf32>
    %109 = arith.mulf %99, %108 : vector<16x32xf32>
    %110 = vector.broadcast %92 : vector<1x32xf32> to vector<16x32xf32>
    %111 = arith.mulf %109, %110 : vector<16x32xf32>
    %112 = vector.broadcast %93 : vector<1x32xf32> to vector<16x32xf32>
    %113 = arith.addf %111, %112 : vector<16x32xf32>
    %c256 = arith.constant 256 : index
    %c0_40 = arith.constant 0 : index
    %114 = vector.load %arg3[%c256, %c0_40] : memref<480x32xf32, #tpu.memory_space<vmem>>, vector<32x32xf32>
    %cst_41 = arith.constant dense<0.000000e+00> : vector<16x32xf32>
    %115 = tpu.matmul %113, %114, %cst_41 {dimension_numbers = #tpu.dot_dimension_numbers<[1], [0], [0], [1], [0, 0, 1, 1], [], []>} : vector<16x32xf32>, vector<32x32xf32>, vector<16x32xf32> -> vector<16x32xf32>
    %c288 = arith.constant 288 : index
    %c0_42 = arith.constant 0 : index
    %116 = vector.load %arg3[%c288, %c0_42] : memref<480x32xf32, #tpu.memory_space<vmem>>, vector<32x32xf32>
    %cst_43 = arith.constant dense<0.000000e+00> : vector<16x32xf32>
    %117 = tpu.matmul %113, %116, %cst_43 {dimension_numbers = #tpu.dot_dimension_numbers<[1], [0], [0], [1], [0, 0, 1, 1], [], []>} : vector<16x32xf32>, vector<32x32xf32>, vector<16x32xf32> -> vector<16x32xf32>
    %118 = vector.extract_strided_slice %115 {offsets = [0, 0], sizes = [16, 8], strides = [1, 1]} : vector<16x32xf32> to vector<16x8xf32>
    %119 = vector.extract_strided_slice %115 {offsets = [0, 8], sizes = [16, 8], strides = [1, 1]} : vector<16x32xf32> to vector<16x8xf32>
    %120 = vector.extract_strided_slice %115 {offsets = [0, 16], sizes = [16, 8], strides = [1, 1]} : vector<16x32xf32> to vector<16x8xf32>
    %121 = vector.extract_strided_slice %115 {offsets = [0, 24], sizes = [16, 8], strides = [1, 1]} : vector<16x32xf32> to vector<16x8xf32>
    %122 = vector.shape_cast %118 : vector<16x8xf32> to vector<1x16x8xf32>
    %123 = vector.shape_cast %119 : vector<16x8xf32> to vector<1x16x8xf32>
    %124 = vector.shape_cast %120 : vector<16x8xf32> to vector<1x16x8xf32>
    %125 = vector.shape_cast %121 : vector<16x8xf32> to vector<1x16x8xf32>
    %126 = tpu.concatenate %122, %123, %124, %125 in 0 : vector<1x16x8xf32>, vector<1x16x8xf32>, vector<1x16x8xf32>, vector<1x16x8xf32> -> vector<4x16x8xf32>
    %127 = vector.extract_strided_slice %117 {offsets = [0, 0], sizes = [16, 8], strides = [1, 1]} : vector<16x32xf32> to vector<16x8xf32>
    %128 = vector.extract_strided_slice %117 {offsets = [0, 8], sizes = [16, 8], strides = [1, 1]} : vector<16x32xf32> to vector<16x8xf32>
    %129 = vector.extract_strided_slice %117 {offsets = [0, 16], sizes = [16, 8], strides = [1, 1]} : vector<16x32xf32> to vector<16x8xf32>
    %130 = vector.extract_strided_slice %117 {offsets = [0, 24], sizes = [16, 8], strides = [1, 1]} : vector<16x32xf32> to vector<16x8xf32>
    %131 = vector.shape_cast %127 : vector<16x8xf32> to vector<1x16x8xf32>
    %132 = vector.shape_cast %128 : vector<16x8xf32> to vector<1x16x8xf32>
    %133 = vector.shape_cast %129 : vector<16x8xf32> to vector<1x16x8xf32>
    %134 = vector.shape_cast %130 : vector<16x8xf32> to vector<1x16x8xf32>
    %135 = tpu.concatenate %131, %132, %133, %134 in 0 : vector<1x16x8xf32>, vector<1x16x8xf32>, vector<1x16x8xf32>, vector<1x16x8xf32> -> vector<4x16x8xf32>
    "tpu.trace_start"() <{level = 10 : i32, message = "hqd,hkd->hqk"}> : () -> ()
    %cst_44 = arith.constant dense<0.000000e+00> : vector<4x16x16xf32>
    %136 = tpu.matmul %126, %126, %cst_44 {dimension_numbers = #tpu.dot_dimension_numbers<[2], [2], [1], [1], [0, 0, 0, 1, 1, 1], [0], [0]>} : vector<4x16x8xf32>, vector<4x16x8xf32>, vector<4x16x16xf32> -> vector<4x16x16xf32>
    "tpu.trace_stop"() : () -> ()
    %cst_45 = arith.constant 0.353553385 : f32
    %137 = vector.broadcast %cst_45 : f32 to vector<4x16x16xf32>
    %138 = arith.mulf %136, %137 : vector<4x16x16xf32>
    %cst_46 = arith.constant dense<0xFF800000> : vector<4x16xf32>
    %139 = vector.multi_reduction <maximumf>, %138, %cst_46 [2] : vector<4x16x16xf32> to vector<4x16xf32>
    %140 = vector.shape_cast %139 : vector<4x16xf32> to vector<4x16x1xf32>
    %141 = vector.broadcast %140 : vector<4x16x1xf32> to vector<4x16x16xf32>
    %142 = arith.subf %138, %141 : vector<4x16x16xf32>
    %143 = math.exp %142 : vector<4x16x16xf32>
    %cst_47 = arith.constant dense<0.000000e+00> : vector<4x16xf32>
    %144 = vector.multi_reduction <add>, %143, %cst_47 [2] : vector<4x16x16xf32> to vector<4x16xf32>
    %145 = vector.shape_cast %144 : vector<4x16xf32> to vector<4x16x1xf32>
    %146 = tpu.reciprocal %145 {approx = true} : vector<4x16x1xf32> -> vector<4x16x1xf32>
    %147 = vector.broadcast %146 : vector<4x16x1xf32> to vector<4x16x16xf32>
    %148 = arith.mulf %143, %147 : vector<4x16x16xf32>
    "tpu.trace_start"() <{level = 10 : i32, message = "hqk,hkd->hqd"}> : () -> ()
    %cst_48 = arith.constant dense<0.000000e+00> : vector<4x16x8xf32>
    %149 = tpu.matmul %148, %135, %cst_48 {dimension_numbers = #tpu.dot_dimension_numbers<[2], [1], [1], [2], [0, 0, 0, 1, 1, 2], [0], [0]>} : vector<4x16x16xf32>, vector<4x16x8xf32>, vector<4x16x8xf32> -> vector<4x16x8xf32>
    "tpu.trace_stop"() : () -> ()
    %150 = vector.extract_strided_slice %149 {offsets = [0, 0, 0], sizes = [1, 16, 8], strides = [1, 1, 1]} : vector<4x16x8xf32> to vector<1x16x8xf32>
    %151 = vector.shape_cast %150 : vector<1x16x8xf32> to vector<16x8xf32>
    %152 = vector.extract_strided_slice %149 {offsets = [1, 0, 0], sizes = [1, 16, 8], strides = [1, 1, 1]} : vector<4x16x8xf32> to vector<1x16x8xf32>
    %153 = vector.shape_cast %152 : vector<1x16x8xf32> to vector<16x8xf32>
    %154 = vector.extract_strided_slice %149 {offsets = [2, 0, 0], sizes = [1, 16, 8], strides = [1, 1, 1]} : vector<4x16x8xf32> to vector<1x16x8xf32>
    %155 = vector.shape_cast %154 : vector<1x16x8xf32> to vector<16x8xf32>
    %156 = vector.extract_strided_slice %149 {offsets = [3, 0, 0], sizes = [1, 16, 8], strides = [1, 1, 1]} : vector<4x16x8xf32> to vector<1x16x8xf32>
    %157 = vector.shape_cast %156 : vector<1x16x8xf32> to vector<16x8xf32>
    %158 = tpu.concatenate %151, %153, %155, %157 in 1 : vector<16x8xf32>, vector<16x8xf32>, vector<16x8xf32>, vector<16x8xf32> -> vector<16x32xf32>
    %c320 = arith.constant 320 : index
    %c0_49 = arith.constant 0 : index
    %159 = vector.load %arg3[%c320, %c0_49] : memref<480x32xf32, #tpu.memory_space<vmem>>, vector<32x32xf32>
    %cst_50 = arith.constant dense<0.000000e+00> : vector<16x32xf32>
    %160 = tpu.matmul %158, %159, %cst_50 {dimension_numbers = #tpu.dot_dimension_numbers<[1], [0], [0], [1], [0, 0, 1, 1], [], []>} : vector<16x32xf32>, vector<32x32xf32>, vector<16x32xf32> -> vector<16x32xf32>
    %c352 = arith.constant 352 : index
    %c0_51 = arith.constant 0 : index
    %161 = vector.load %arg3[%c352, %c0_51] : memref<480x32xf32, #tpu.memory_space<vmem>>, vector<1x32xf32>
    %162 = vector.broadcast %161 : vector<1x32xf32> to vector<16x32xf32>
    %163 = arith.addf %160, %162 : vector<16x32xf32>
    %164 = arith.addf %113, %163 : vector<16x32xf32>
    %c432 = arith.constant 432 : index
    %c0_52 = arith.constant 0 : index
    %165 = vector.load %arg3[%c432, %c0_52] : memref<480x32xf32, #tpu.memory_space<vmem>>, vector<1x32xf32>
    %c440 = arith.constant 440 : index
    %c0_53 = arith.constant 0 : index
    %166 = vector.load %arg3[%c440, %c0_53] : memref<480x32xf32, #tpu.memory_space<vmem>>, vector<1x32xf32>
    %cst_54 = arith.constant dense<0.000000e+00> : vector<16xf32>
    %167 = vector.multi_reduction <add>, %164, %cst_54 [1] : vector<16x32xf32> to vector<16xf32>
    %168 = vector.shape_cast %167 : vector<16xf32> to vector<16x1xf32>
    %cst_55 = arith.constant 3.200000e+01 : f32
    %169 = vector.broadcast %cst_55 : f32 to vector<16x1xf32>
    %170 = arith.divf %168, %169 : vector<16x1xf32>
    %171 = vector.broadcast %170 : vector<16x1xf32> to vector<16x32xf32>
    %172 = arith.subf %164, %171 : vector<16x32xf32>
    %173 = arith.mulf %172, %172 : vector<16x32xf32>
    %cst_56 = arith.constant dense<0.000000e+00> : vector<16xf32>
    %174 = vector.multi_reduction <add>, %173, %cst_56 [1] : vector<16x32xf32> to vector<16xf32>
    %175 = vector.shape_cast %174 : vector<16xf32> to vector<16x1xf32>
    %cst_57 = arith.constant 3.200000e+01 : f32
    %176 = vector.broadcast %cst_57 : f32 to vector<16x1xf32>
    %177 = arith.divf %175, %176 : vector<16x1xf32>
    %cst_58 = arith.constant 9.99999974E-6 : f32
    %178 = vector.broadcast %cst_58 : f32 to vector<16x1xf32>
    %179 = arith.addf %177, %178 : vector<16x1xf32>
    %180 = math.rsqrt %179 : vector<16x1xf32>
    %181 = vector.broadcast %180 : vector<16x1xf32> to vector<16x32xf32>
    %182 = arith.mulf %172, %181 : vector<16x32xf32>
    %183 = vector.broadcast %165 : vector<1x32xf32> to vector<16x32xf32>
    %184 = arith.mulf %182, %183 : vector<16x32xf32>
    %185 = vector.broadcast %166 : vector<1x32xf32> to vector<16x32xf32>
    %186 = arith.addf %184, %185 : vector<16x32xf32>
    %c40 = arith.constant 40 : index
    %c0_59 = arith.constant 0 : index
    %187 = vector.load %arg4[%c40, %c0_59] : memref<80x64xf32, #tpu.memory_space<vmem>>, vector<32x64xf32>
    %cst_60 = arith.constant dense<0.000000e+00> : vector<16x64xf32>
    %188 = tpu.matmul %186, %187, %cst_60 {dimension_numbers = #tpu.dot_dimension_numbers<[1], [0], [0], [1], [0, 0, 1, 1], [], []>} : vector<16x32xf32>, vector<32x64xf32>, vector<16x64xf32> -> vector<16x64xf32>
    %c72 = arith.constant 72 : index
    %c0_61 = arith.constant 0 : index
    %189 = vector.load %arg4[%c72, %c0_61] : memref<80x64xf32, #tpu.memory_space<vmem>>, vector<1x64xf32>
    %190 = vector.broadcast %189 : vector<1x64xf32> to vector<16x64xf32>
    %191 = arith.addf %188, %190 : vector<16x64xf32>
    %cst_62 = arith.constant 0.000000e+00 : f32
    %192 = vector.broadcast %cst_62 : f32 to vector<16x64xf32>
    %193 = arith.maximumf %191, %192 : vector<16x64xf32>
    %c360 = arith.constant 360 : index
    %c0_63 = arith.constant 0 : index
    %194 = vector.load %arg3[%c360, %c0_63] : memref<480x32xf32, #tpu.memory_space<vmem>>, vector<64x32xf32>
    %cst_64 = arith.constant dense<0.000000e+00> : vector<16x32xf32>
    %195 = tpu.matmul %193, %194, %cst_64 {dimension_numbers = #tpu.dot_dimension_numbers<[1], [0], [0], [1], [0, 0, 1, 1], [], []>} : vector<16x64xf32>, vector<64x32xf32>, vector<16x32xf32> -> vector<16x32xf32>
    %c424 = arith.constant 424 : index
    %c0_65 = arith.constant 0 : index
    %196 = vector.load %arg3[%c424, %c0_65] : memref<480x32xf32, #tpu.memory_space<vmem>>, vector<1x32xf32>
    %197 = vector.broadcast %196 : vector<1x32xf32> to vector<16x32xf32>
    %198 = arith.addf %195, %197 : vector<16x32xf32>
    %199 = arith.addf %186, %198 : vector<16x32xf32>
    %c448 = arith.constant 448 : index
    %c0_66 = arith.constant 0 : index
    %200 = vector.load %arg3[%c448, %c0_66] : memref<480x32xf32, #tpu.memory_space<vmem>>, vector<1x32xf32>
    %c456 = arith.constant 456 : index
    %c0_67 = arith.constant 0 : index
    %201 = vector.load %arg3[%c456, %c0_67] : memref<480x32xf32, #tpu.memory_space<vmem>>, vector<1x32xf32>
    %cst_68 = arith.constant dense<0.000000e+00> : vector<16xf32>
    %202 = vector.multi_reduction <add>, %199, %cst_68 [1] : vector<16x32xf32> to vector<16xf32>
    %203 = vector.shape_cast %202 : vector<16xf32> to vector<16x1xf32>
    %cst_69 = arith.constant 3.200000e+01 : f32
    %204 = vector.broadcast %cst_69 : f32 to vector<16x1xf32>
    %205 = arith.divf %203, %204 : vector<16x1xf32>
    %206 = vector.broadcast %205 : vector<16x1xf32> to vector<16x32xf32>
    %207 = arith.subf %199, %206 : vector<16x32xf32>
    %208 = arith.mulf %207, %207 : vector<16x32xf32>
    %cst_70 = arith.constant dense<0.000000e+00> : vector<16xf32>
    %209 = vector.multi_reduction <add>, %208, %cst_70 [1] : vector<16x32xf32> to vector<16xf32>
    %210 = vector.shape_cast %209 : vector<16xf32> to vector<16x1xf32>
    %cst_71 = arith.constant 3.200000e+01 : f32
    %211 = vector.broadcast %cst_71 : f32 to vector<16x1xf32>
    %212 = arith.divf %210, %211 : vector<16x1xf32>
    %cst_72 = arith.constant 9.99999974E-6 : f32
    %213 = vector.broadcast %cst_72 : f32 to vector<16x1xf32>
    %214 = arith.addf %212, %213 : vector<16x1xf32>
    %215 = math.rsqrt %214 : vector<16x1xf32>
    %216 = vector.broadcast %215 : vector<16x1xf32> to vector<16x32xf32>
    %217 = arith.mulf %207, %216 : vector<16x32xf32>
    %218 = vector.broadcast %200 : vector<1x32xf32> to vector<16x32xf32>
    %219 = arith.mulf %217, %218 : vector<16x32xf32>
    %220 = vector.broadcast %201 : vector<1x32xf32> to vector<16x32xf32>
    %221 = arith.addf %219, %220 : vector<16x32xf32>
    %c464 = arith.constant 464 : index
    %c0_73 = arith.constant 0 : index
    %222 = vector.load %arg3[%c464, %c0_73] : memref<480x32xf32, #tpu.memory_space<vmem>>, vector<1x32xf32>
    %c472 = arith.constant 472 : index
    %c0_74 = arith.constant 0 : index
    %223 = vector.load %arg3[%c472, %c0_74] : memref<480x32xf32, #tpu.memory_space<vmem>>, vector<1x32xf32>
    %cst_75 = arith.constant dense<0.000000e+00> : vector<16xf32>
    %224 = vector.multi_reduction <add>, %221, %cst_75 [1] : vector<16x32xf32> to vector<16xf32>
    %225 = vector.shape_cast %224 : vector<16xf32> to vector<16x1xf32>
    %cst_76 = arith.constant 3.200000e+01 : f32
    %226 = vector.broadcast %cst_76 : f32 to vector<16x1xf32>
    %227 = arith.divf %225, %226 : vector<16x1xf32>
    %228 = vector.broadcast %227 : vector<16x1xf32> to vector<16x32xf32>
    %229 = arith.subf %221, %228 : vector<16x32xf32>
    %230 = arith.mulf %229, %229 : vector<16x32xf32>
    %cst_77 = arith.constant dense<0.000000e+00> : vector<16xf32>
    %231 = vector.multi_reduction <add>, %230, %cst_77 [1] : vector<16x32xf32> to vector<16xf32>
    %232 = vector.shape_cast %231 : vector<16xf32> to vector<16x1xf32>
    %cst_78 = arith.constant 3.200000e+01 : f32
    %233 = vector.broadcast %cst_78 : f32 to vector<16x1xf32>
    %234 = arith.divf %232, %233 : vector<16x1xf32>
    %cst_79 = arith.constant 9.99999974E-6 : f32
    %235 = vector.broadcast %cst_79 : f32 to vector<16x1xf32>
    %236 = arith.addf %234, %235 : vector<16x1xf32>
    %237 = math.rsqrt %236 : vector<16x1xf32>
    %238 = vector.broadcast %237 : vector<16x1xf32> to vector<16x32xf32>
    %239 = arith.mulf %229, %238 : vector<16x32xf32>
    %240 = vector.broadcast %222 : vector<1x32xf32> to vector<16x32xf32>
    %241 = arith.mulf %239, %240 : vector<16x32xf32>
    %242 = vector.broadcast %223 : vector<1x32xf32> to vector<16x32xf32>
    %243 = arith.addf %241, %242 : vector<16x32xf32>
    %c0_80 = arith.constant 0 : index
    %c0_81 = arith.constant 0 : index
    %244 = vector.load %arg5[%c0_80, %c0_81] : memref<40x128xf32, #tpu.memory_space<vmem>>, vector<32x128xf32>
    %cst_82 = arith.constant dense<0.000000e+00> : vector<16x128xf32>
    %245 = tpu.matmul %243, %244, %cst_82 {dimension_numbers = #tpu.dot_dimension_numbers<[1], [0], [0], [1], [0, 0, 1, 1], [], []>} : vector<16x32xf32>, vector<32x128xf32>, vector<16x128xf32> -> vector<16x128xf32>
    %c32_83 = arith.constant 32 : index
    %c0_84 = arith.constant 0 : index
    %246 = vector.load %arg5[%c32_83, %c0_84] : memref<40x128xf32, #tpu.memory_space<vmem>>, vector<1x128xf32>
    %247 = vector.broadcast %246 : vector<1x128xf32> to vector<16x128xf32>
    %248 = arith.addf %245, %247 : vector<16x128xf32>
    %c0_85 = arith.constant 0 : index
    %c0_86 = arith.constant 0 : index
    %c0_87 = arith.constant 0 : index
    %249 = vector.load %arg2[%c0_85, %c0_86, %c0_87] : memref<1x2x128xf32, #tpu.memory_space<vmem>>, vector<1x1x128xf32>
    %250 = vector.shape_cast %249 : vector<1x1x128xf32> to vector<1x128xf32>
    %251 = vector.broadcast %250 : vector<1x128xf32> to vector<16x128xf32>
    %252 = arith.mulf %248, %251 : vector<16x128xf32>
    %c0_88 = arith.constant 0 : index
    %c1 = arith.constant 1 : index
    %c0_89 = arith.constant 0 : index
    %253 = vector.load %arg2[%c0_88, %c1, %c0_89] : memref<1x2x128xf32, #tpu.memory_space<vmem>>, vector<1x1x128xf32>
    %254 = vector.shape_cast %253 : vector<1x1x128xf32> to vector<1x128xf32>
    %255 = vector.broadcast %254 : vector<1x128xf32> to vector<16x128xf32>
    %256 = arith.addf %252, %255 : vector<16x128xf32>
    %c0_90 = arith.constant 0 : index
    %c0_91 = arith.constant 0 : index
    %c0_92 = arith.constant 0 : index
    %257 = vector.load %arg6[%c0_90, %c0_91, %c0_92] : memref<1x16x128xf32, #tpu.memory_space<vmem>>, vector<1x16x128xf32>
    %258 = vector.shape_cast %257 : vector<1x16x128xf32> to vector<16x128xf32>
    %259 = vector.shape_cast %256 : vector<16x128xf32> to vector<1x16x128xf32>
    tpu.vector_store %arg6[%c0_90, %c0_91, %c0_92], %259 {strides = array<i32>} : memref<1x16x128xf32, #tpu.memory_space<vmem>>, vector<1x16x128xf32>,
    return
  }
  func.func @transform_0(%arg0: i32) -> (i32, i32, i32) {
    %c0_i32 = arith.constant 0 : i32
    %c0_i32_0 = arith.constant 0 : i32
    %c0_i32_1 = arith.constant 0 : i32
    return %arg0, %c0_i32, %c0_i32_0 : i32, i32, i32
  }
  func.func @transform_1(%arg0: i32) -> (i32, i32, i32) {
    %c0_i32 = arith.constant 0 : i32
    %c0_i32_0 = arith.constant 0 : i32
    %c0_i32_1 = arith.constant 0 : i32
    return %arg0, %c0_i32, %c0_i32_0 : i32, i32, i32
  }
  func.func @transform_2(%arg0: i32) -> (i32, i32) {
    %c0_i32 = arith.constant 0 : i32
    %c0_i32_0 = arith.constant 0 : i32
    %c0_i32_1 = arith.constant 0 : i32
    return %c0_i32, %c0_i32_0 : i32, i32
  }
  func.func @transform_3(%arg0: i32) -> (i32, i32) {
    %c0_i32 = arith.constant 0 : i32
    %c0_i32_0 = arith.constant 0 : i32
    %c0_i32_1 = arith.constant 0 : i32
    return %c0_i32, %c0_i32_0 : i32, i32
  }
  func.func @transform_4(%arg0: i32) -> (i32, i32) {
    %c0_i32 = arith.constant 0 : i32
    %c0_i32_0 = arith.constant 0 : i32
    %c0_i32_1 = arith.constant 0 : i32
    return %c0_i32, %c0_i32_0 : i32, i32
  }
  func.func @transform_5(%arg0: i32) -> (i32, i32, i32) {
    %c0_i32 = arith.constant 0 : i32
    %c0_i32_0 = arith.constant 0 : i32
    %c0_i32_1 = arith.constant 0 : i32
    return %arg0, %c0_i32, %c0_i32_0 : i32, i32, i32
  }
}

</mosaic_0001>

<llo_original>
// kernel: _lambda_.1
$region0: #{_lambda_.1}
  #allocation0 [shape = 'u32[]', space=smem, size = 0x4, offset = 0x4, fixed_abs, tag = 'smem constant byte address 0x4 - core index']
  #allocation1 [shape = 'u32[144,128]{1,0:T(1,128)}', space=vmem, size = 0x12000, scoped, tag = 'internal scratch']
  %s0 = inlined_call_operand.vmem [shape: f32[2,16,28], index: 0, kind: input, shape index: {}]
  %s1 = inlined_call_operand.vmem [shape: f32[2,2,128], index: 1, kind: input, shape index: {}]
  %s2 = inlined_call_operand.vmem [shape: f32[480,32], index: 2, kind: input, shape index: {}]
  %s3 = inlined_call_operand.vmem [shape: f32[80,64], index: 3, kind: input, shape index: {}]
  %s4 = inlined_call_operand.vmem [shape: f32[40,128], index: 4, kind: input, shape index: {}]
  %s5 = inlined_call_operand.vmem [shape: f32[2,16,128], index: 5, kind: output, shape index: {}]
  %s6 = sld [smem:[#allocation0]]
  $region53: #{_lambda_.1} parent=0
    _
  %s8 = ssub.s32 1, %s6
  %s9 = scalar_select 0, %s8, %s6
  loop: start=0, step=1, limit=4
  $region2: #{_lambda_.1} parent=0 // loop_pre_header
    _
  $region3: #{_lambda_.1} parent=0 // loop_header
    %s11 = sphi 0, %s15
    %p12 = scmp.ge.s32.totalorder %s11, 4
    %s21 = sphi 0, %s23
    %s24 = sphi 0, %s21
    %s25 = sphi 0, %s24
    %s41 = sphi 0, %s25
    %s47 = sphi 0, %s49
    %s50 = sphi 0, %s47
    %s51 = sphi 0, %s50
    %s67 = sphi 0, %s51
    %s71 = sphi 0, %s71
    %s73 = sphi 0, %s71
    %s74 = sphi 0, %s73
    %s88 = sphi 0, %s74
    %s92 = sphi 0, %s92
    %s94 = sphi 0, %s92
    %s95 = sphi 0, %s94
    %s109 = sphi 0, %s95
    %s113 = sphi 0, %s113
    %s115 = sphi 0, %s113
    %s116 = sphi 0, %s115
    %s130 = sphi 0, %s116
    %s136 = sphi 0, %s138
    %s139 = sphi 0, %s136
    %s140 = sphi 0, %s139
    %s156 = sphi 0, %s140
  $region4: #{_lambda_.1} parent=0 // loop_header_branch
    %14 = sbr.rel (%p12) target = $region8
  $region5: #{_lambda_.1} parent=0 // loop_body
    %s16 = ssub.s32 %s11, 1
    %s17 = ssub.s32 %s11, 2
    %s18 = sadd.s32 %s11, 1
    %s19 = ssub.s32 %s11, %s18
    %p20 = scmp.eq.s32.totalorder %s19, 0
    %s22 = sadd.s32 %s21, 1
    %s23 = scalar_select %p20, %s21, %s22
    %p26 = pneg %p20
    %p27 = scmp.eq.s32.totalorder %s11, 1
    %p28 = por %p26, %p27
    %p29 = scmp.ne.s32.totalorder %s21, %s24
    %p30 = scmp.eq.s32.totalorder %s11, 0
    %p31 = por %p29, %p30
    %p32 = scmp.ne.s32.totalorder %s21, %s24
    %p33 = scmp.eq.s32.totalorder %s16, 1
    %p34 = por %p32, %p33
    %p35 = scmp.ne.s32.totalorder %s24, %s25
    %p36 = scmp.eq.s32.totalorder %s16, 0
    %p37 = por %p35, %p36
    %p38 = scmp.ne.s32.totalorder %s24, %s25
    %p39 = scmp.eq.s32.totalorder %s17, 1
    %p40 = por %p38, %p39
    %p42 = scmp.ne.s32.totalorder %s25, %s41
    %p43 = scmp.eq.s32.totalorder %s17, 0
    %p44 = por %p42, %p43
    %s45 = ssub.s32 %s11, %s18
    %p46 = scmp.eq.s32.totalorder %s45, 0
    %s48 = sadd.s32 %s47, 1
    %s49 = scalar_select %p46, %s47, %s48
    %p52 = pneg %p46
    %p53 = scmp.eq.s32.totalorder %s11, 1
    %p54 = por %p52, %p53
    %p55 = scmp.ne.s32.totalorder %s47, %s50
    %p56 = scmp.eq.s32.totalorder %s11, 0
    %p57 = por %p55, %p56
    %p58 = scmp.ne.s32.totalorder %s47, %s50
    %p59 = scmp.eq.s32.totalorder %s16, 1
    %p60 = por %p58, %p59
    %p61 = scmp.ne.s32.totalorder %s50, %s51
    %p62 = scmp.eq.s32.totalorder %s16, 0
    %p63 = por %p61, %p62
    %p64 = scmp.ne.s32.totalorder %s50, %s51
    %p65 = scmp.eq.s32.totalorder %s17, 1
    %p66 = por %p64, %p65
    %p68 = scmp.ne.s32.totalorder %s51, %s67
    %p69 = scmp.eq.s32.totalorder %s17, 0
    %p70 = por %p68, %p69
    %s72 = sadd.s32 %s71, 1
    %p75 = scmp.eq.s32.totalorder %s11, 1
    %p76 = scmp.ne.s32.totalorder %s71, %s73
    %p77 = scmp.eq.s32.totalorder %s11, 0
    %p78 = por %p76, %p77
    %p79 = scmp.ne.s32.totalorder %s71, %s73
    %p80 = scmp.eq.s32.totalorder %s16, 1
    %p81 = por %p79, %p80
    %p82 = scmp.ne.s32.totalorder %s73, %s74
    %p83 = scmp.eq.s32.totalorder %s16, 0
    %p84 = por %p82, %p83
    %p85 = scmp.ne.s32.totalorder %s73, %s74
    %p86 = scmp.eq.s32.totalorder %s17, 1
    %p87 = por %p85, %p86
    %p89 = scmp.ne.s32.totalorder %s74, %s88
    %p90 = scmp.eq.s32.totalorder %s17, 0
    %p91 = por %p89, %p90
    %s93 = sadd.s32 %s92, 1
    %p96 = scmp.eq.s32.totalorder %s11, 1
    %p97 = scmp.ne.s32.totalorder %s92, %s94
    %p98 = scmp.eq.s32.totalorder %s11, 0
    %p99 = por %p97, %p98
    %p100 = scmp.ne.s32.totalorder %s92, %s94
    %p101 = scmp.eq.s32.totalorder %s16, 1
    %p102 = por %p100, %p101
    %p103 = scmp.ne.s32.totalorder %s94, %s95
    %p104 = scmp.eq.s32.totalorder %s16, 0
    %p105 = por %p103, %p104
    %p106 = scmp.ne.s32.totalorder %s94, %s95
    %p107 = scmp.eq.s32.totalorder %s17, 1
    %p108 = por %p106, %p107
    %p110 = scmp.ne.s32.totalorder %s95, %s109
    %p111 = scmp.eq.s32.totalorder %s17, 0
    %p112 = por %p110, %p111
    %s114 = sadd.s32 %s113, 1
    %p117 = scmp.eq.s32.totalorder %s11, 1
    %p118 = scmp.ne.s32.totalorder %s113, %s115
    %p119 = scmp.eq.s32.totalorder %s11, 0
    %p120 = por %p118, %p119
    %p121 = scmp.ne.s32.totalorder %s113, %s115
    %p122 = scmp.eq.s32.totalorder %s16, 1
    %p123 = por %p121, %p122
    %p124 = scmp.ne.s32.totalorder %s115, %s116
    %p125 = scmp.eq.s32.totalorder %s16, 0
    %p126 = por %p124, %p125
    %p127 = scmp.ne.s32.totalorder %s115, %s116
    %p128 = scmp.eq.s32.totalorder %s17, 1
    %p129 = por %p127, %p128
    %p131 = scmp.ne.s32.totalorder %s116, %s130
    %p132 = scmp.eq.s32.totalorder %s17, 0
    %p133 = por %p131, %p132
    %s134 = ssub.s32 %s11, %s18
    %p135 = scmp.eq.s32.totalorder %s134, 0
    %s137 = sadd.s32 %s136, 1
    %s138 = scalar_select %p135, %s136, %s137
    %p141 = pneg %p135
    %p142 = scmp.eq.s32.totalorder %s11, 1
    %p143 = por %p141, %p142
    %p144 = scmp.ne.s32.totalorder %s136, %s139
    %p145 = scmp.eq.s32.totalorder %s11, 0
    %p146 = por %p144, %p145
    %p147 = scmp.ne.s32.totalorder %s136, %s139
    %p148 = scmp.eq.s32.totalorder %s16, 1
    %p149 = por %p147, %p148
    %p150 = scmp.ne.s32.totalorder %s139, %s140
    %p151 = scmp.eq.s32.totalorder %s16, 0
    %p152 = por %p150, %p151
    %p153 = scmp.ne.s32.totalorder %s139, %s140
    %p154 = scmp.eq.s32.totalorder %s17, 1
    %p155 = por %p153, %p154
    %p157 = scmp.ne.s32.totalorder %s140, %s156
    %p158 = scmp.eq.s32.totalorder %s17, 0
    %p159 = por %p157, %p158
    %p160 = scmp.le.s32.totalorder 1, %s11
    %p161 = scmp.lt.s32.totalorder %s11, 3
    %p162 = pnand %p160, %p161
    %p163 = pneg %p162
    // Predicated region
    $region9: #{_lambda_.1} parent=5 // pred_check
      _
    $region10: #{_lambda_.1} parent=5 // pred_check_branch
      %165 = sbr.rel (%p162) target = $region12
    $region11: #{_lambda_.1} parent=5 // pred_region
      %s166 = ssub.s32 %s11, 1
      // Predicated region
      $region13: #{_lambda_.1} parent=11 // pred_check
        %p167 = pneg %p84
      $region14: #{_lambda_.1} parent=11 // pred_check_branch
        %169 = sbr.rel (%p167) target = $region16
      $region15: #{_lambda_.1} parent=11 // pred_region
        _
      $region16: #{_lambda_.1} parent=11 // pred_fallthru
        _
      // Predicated region
      $region17: #{_lambda_.1} parent=11 // pred_check
        %p170 = pneg %p105
      $region18: #{_lambda_.1} parent=11 // pred_check_branch
        %172 = sbr.rel (%p170) target = $region20
      $region19: #{_lambda_.1} parent=11 // pred_region
        _
      $region20: #{_lambda_.1} parent=11 // pred_fallthru
        _
      // Predicated region
      $region21: #{_lambda_.1} parent=11 // pred_check
        %p173 = pneg %p126
      $region22: #{_lambda_.1} parent=11 // pred_check_branch
        %175 = sbr.rel (%p173) target = $region24
      $region23: #{_lambda_.1} parent=11 // pred_region
        _
      $region24: #{_lambda_.1} parent=11 // pred_fallthru
        _
    $region12: #{_lambda_.1} parent=5 // pred_fallthru
      _
    %p176 = scmp.lt.s32.totalorder %s11, 2
    // Predicated region
    $region25: #{_lambda_.1} parent=5 // pred_check
      %p177 = pneg %p176
    $region26: #{_lambda_.1} parent=5 // pred_check_branch
      %179 = sbr.rel (%p177) target = $region28
    $region27: #{_lambda_.1} parent=5 // pred_region
      // Predicated region
      $region29: #{_lambda_.1} parent=27 // pred_check
        %p180 = pneg %p31
      $region30: #{_lambda_.1} parent=27 // pred_check_branch
        %182 = sbr.rel (%p180) target = $region32
      $region31: #{_lambda_.1} parent=27 // pred_region
        %p183 = scmp.lt.s32.totalorder %s11, 1
        %s184 = scalar_select %p183, %s11, 1
        %s185 = smul.addr %s184, 2
        %s186 = smul.addr %s185, 8
        %s187 = scalar_lea.vmem %s0, %s186
      $region32: #{_lambda_.1} parent=27 // pred_fallthru
        _
      // Predicated region
      $region33: #{_lambda_.1} parent=27 // pred_check
        %p188 = pneg %p57
      $region34: #{_lambda_.1} parent=27 // pred_check_branch
        %190 = sbr.rel (%p188) target = $region36
      $region35: #{_lambda_.1} parent=27 // pred_region
        %p191 = scmp.lt.s32.totalorder %s11, 1
        %s192 = scalar_select %p191, %s11, 1
        %s193 = smul.addr %s192, 2
        %s194 = scalar_lea.vmem %s1, %s193
      $region36: #{_lambda_.1} parent=27 // pred_fallthru
        _
    $region28: #{_lambda_.1} parent=5 // pred_fallthru
      _
    %p195 = scmp.le.s32.totalorder 1, %s11
    %p196 = scmp.lt.s32.totalorder %s11, 3
    %p197 = pnand %p195, %p196
    %p198 = pneg %p197
    // Predicated region
    $region37: #{_lambda_.1} parent=5 // pred_check
      _
    $region38: #{_lambda_.1} parent=5 // pred_check_branch
      %200 = sbr.rel (%p197) target = $region40
    $region39: #{_lambda_.1} parent=5 // pred_region
      %s201 = ssub.s32 %s11, 1
      %p202 = scmp.lt.s32.totalorder %s16, 1
      %s203 = scalar_select %p202, %s16, 1
      %s204 = smul.addr %s203, 2
      %s205 = smul.addr %s204, 8
      %s206 = scalar_lea.vmem %s0, %s205
      %p207 = pneg %p37
      %p208 = pneg %p34
      %p209 = scmp.lt.s32.totalorder %s16, 1
      %s210 = scalar_select %p209, %s16, 1
      %s211 = smul.addr %s210, 2
      %s212 = scalar_lea.vmem %s1, %s211
      %p213 = pneg %p63
      %p214 = pneg %p60
      %p215 = pneg %p84
      %p216 = pneg %p81
      %p217 = pneg %p105
      %p218 = pneg %p102
      %p219 = pneg %p126
      %p220 = pneg %p123
      %p221 = pneg %p152
      %p222 = pneg %p149
      %p223 = scmp.lt.s32.totalorder %s16, 1
      %s224 = scalar_select %p223, %s16, 1
      %s225 = smul.addr %s224, 2
      %s226 = smul.addr %s225, 8
      %s227 = scalar_lea.vmem %s5, %s226
      %p228 = scmp.lt.s32.totalorder %s16, 1
      %s229 = scalar_select %p228, %s16, 1
      %s230 = smul.addr %s229, 2
      %s231 = smul.addr %s230, 8
      %s232 = scalar_lea.vmem %s0, %s231
      %p233 = scmp.lt.s32.totalorder %s16, 1
      %s234 = scalar_select %p233, %s16, 1
      %s235 = smul.addr %s234, 2
      %s236 = scalar_lea.vmem %s1, %s235
      %p237 = scmp.lt.s32.totalorder %s16, 1
      %s238 = scalar_select %p237, %s16, 1
      %s239 = smul.addr %s238, 2
      %s240 = smul.addr %s239, 8
      %s241 = scalar_lea.vmem %s5, %s240
      %v242 = vld [vmem:[%s232] sm:$0xff]
      %v243 = vld [vmem:[%s232 + $0x8] sm:$0xff]
      %v244 = vld [vmem:[%s2] sm:$0xff]
      %v245 = vld [vmem:[%s2 + $0x8] sm:$0xff]
      %v246 = vld [vmem:[%s2 + $0x10] sm:$0xff]
      %v247 = vld [vmem:[%s2 + $0x18] sm:$0xf]
      %v248 = vld [vmem:[%s2 + $0x20] sm:$0xff]
      %v249 = vld [vmem:[%s2 + $0x28] sm:$0xff]
      %vm250 = vcmask 228352
      %v252 = vsel %vm250, %v242, 0
      %v255 = vsel %vm250, %v243, 0
      %vm257 = vcmask 1043456
      %v259 = vsel %vm257, %v247, 0
      %261 = vmatprep.subr.mxu0 0.0
      %262 = vmatpush1.msra.mxu0 0.0
      %263 = vmatprep.subr.mxu0 0.0
      %264 = vmatpush1.msra.mxu0 0.0
      %265 = vmatprep.subr.mxu0 0.0
      %266 = vmatpush1.msra.mxu0 0.0
      %267 = vmatprep.subr.mxu0 0.0
      %268 = vmatpush1.msra.mxu0 0.0
      %269 = vmatprep.subr.mxu0 0.0
      %270 = vmatpush1.msra.mxu0 0.0
      %271 = vmatprep.subr.mxu0 0.0
      %272 = vmatpush1.msra.mxu0 0.0
      %273 = vmatprep.subr.mxu0 0.0
      %274 = vmatpush1.msra.mxu0 0.0
      %275 = vmatprep.subr.mxu0 0.0
      %276 = vmatpush1.msra.mxu0 0.0
      %277 = vmatprep.subr.mxu0 0.0
      %278 = vmatpush1.msra.mxu0 0.0
      %279 = vmatprep.subr.mxu0 0.0
      %280 = vmatpush1.msra.mxu0 0.0
      %281 = vmatprep.subr.mxu0 0.0
      %282 = vmatpush1.msra.mxu0 0.0
      %283 = vmatprep.subr.mxu0 0.0
      %284 = vmatpush1.msra.mxu0 0.0
      %285 = vmatprep.subr.mxu0 0.0
      %286 = vmatpush1.msra.mxu0 %v259
      %287 = vmatprep.subr.mxu0 0.0
      %288 = vmatpush1.msra.mxu0 %v246
      %289 = vmatprep.subr.mxu0 0.0
      %290 = vmatpush1.msra.mxu0 %v245
      %291 = vmatprep.subr.mxu0 0.0
      %292 = vmatpush1.msra.mxu0 %v244
      %293 = vmatprep.subr.mxu0 0.0
      %294 = vmatpush2.msra.mxu0 0.0
      %295 = vmatprep.subr.mxu0 0.0
      %296 = vmatpush2.msra.mxu0 0.0
      %297 = vmatprep.subr.mxu0 0.0
      %298 = vmatpush2.msra.mxu0 0.0
      %299 = vmatprep.subr.mxu0 0.0
      %300 = vmatpush2.msra.mxu0 0.0
      %301 = vmatprep.subr.mxu0 0.0
      %302 = vmatpush2.msra.mxu0 0.0
      %303 = vmatprep.subr.mxu0 0.0
      %304 = vmatpush2.msra.mxu0 0.0
      %305 = vmatprep.subr.mxu0 0.0
      %306 = vmatpush2.msra.mxu0 0.0
      %307 = vmatprep.subr.mxu0 0.0
      %308 = vmatpush2.msra.mxu0 0.0
      %309 = vmatprep.subr.mxu0 0.0
      %310 = vmatpush2.msra.mxu0 0.0
      %311 = vmatprep.subr.mxu0 0.0
      %312 = vmatpush2.msra.mxu0 0.0
      %313 = vmatprep.subr.mxu0 0.0
      %314 = vmatpush2.msra.mxu0 0.0
      %315 = vmatprep.subr.mxu0 0.0
      %316 = vmatpush2.msra.mxu0 0.0
      %317 = vmatprep.subr.mxu0 0.0
      %318 = vmatpush2.msra.mxu0 0.0
      %319 = vmatprep.subr.mxu0 0.0
      %320 = vmatpush2.msra.mxu0 0.0
      %321 = vmatprep.subr.mxu0 0.0
      %322 = vmatpush2.msra.mxu0 0.0
      %323 = vmatprep.subr.mxu0 0.0
      %324 = vmatpush2.msra.mxu0 0.0
      %325 = vmatprep.mubr.f32.mxu0 0.0
      %326 = vmatmul.mubr.f32.gmra.mxu0 %v252
      %v327 = vpop.f32.mrf.mxu0
      %v328 = vadd.f32 %v248, %v327
      %v329 = vpop.f32.mrf.mxu0
      %330 = vmatprep.mubr.f32.mxu0 0.0
      %331 = vmatmul.mubr.f32.gmra.mxu0 %v255
      %v332 = vpop.f32.mrf.mxu0
      %v333 = vadd.f32 %v249, %v332
      %v334 = vpop.f32.mrf.mxu0
      %335 = vdwg.mxu0
      %v336 = vld [vmem:[%s2 + $0x30] sm:$0xff]
      %v337 = vld [vmem:[%s2 + $0x38] sm:$0xff]
      %v338 = vld [vmem:[%s2 + $0x40] sm:$0xff]
      %v339 = vld [vmem:[%s2 + $0x48] sm:$0xff]
      %vm340 = vcmask 261120
      %v342 = vsel %vm340, %v328, 0
      %v345 = vsel %vm340, %v333, 0
      %347 = vmatprep.subr.mxu0 0.0
      %348 = vmatpush1.msra.mxu0 0.0
      %349 = vmatprep.subr.mxu0 0.0
      %350 = vmatpush1.msra.mxu0 0.0
      %351 = vmatprep.subr.mxu0 0.0
      %352 = vmatpush1.msra.mxu0 0.0
      %353 = vmatprep.subr.mxu0 0.0
      %354 = vmatpush1.msra.mxu0 0.0
      %355 = vmatprep.subr.mxu0 0.0
      %356 = vmatpush1.msra.mxu0 0.0
      %357 = vmatprep.subr.mxu0 0.0
      %358 = vmatpush1.msra.mxu0 0.0
      %359 = vmatprep.subr.mxu0 0.0
      %360 = vmatpush1.msra.mxu0 0.0
      %361 = vmatprep.subr.mxu0 0.0
      %362 = vmatpush1.msra.mxu0 0.0
      %363 = vmatprep.subr.mxu0 0.0
      %364 = vmatpush1.msra.mxu0 0.0
      %365 = vmatprep.subr.mxu0 0.0
      %366 = vmatpush1.msra.mxu0 0.0
      %367 = vmatprep.subr.mxu0 0.0
      %368 = vmatpush1.msra.mxu0 0.0
      %369 = vmatprep.subr.mxu0 0.0
      %370 = vmatpush1.msra.mxu0 0.0
      %371 = vmatprep.subr.mxu0 0.0
      %372 = vmatpush1.msra.mxu0 %v339
      %373 = vmatprep.subr.mxu0 0.0
      %374 = vmatpush1.msra.mxu0 %v338
      %375 = vmatprep.subr.mxu0 0.0
      %376 = vmatpush1.msra.mxu0 %v337
      %377 = vmatprep.subr.mxu0 0.0
      %378 = vmatpush1.msra.mxu0 %v336
      %379 = vmatprep.subr.mxu0 0.0
      %380 = vmatpush2.msra.mxu0 0.0
      %381 = vmatprep.subr.mxu0 0.0
      %382 = vmatpush2.msra.mxu0 0.0
      %383 = vmatprep.subr.mxu0 0.0
      %384 = vmatpush2.msra.mxu0 0.0
      %385 = vmatprep.subr.mxu0 0.0
      %386 = vmatpush2.msra.mxu0 0.0
      %387 = vmatprep.subr.mxu0 0.0
      %388 = vmatpush2.msra.mxu0 0.0
      %389 = vmatprep.subr.mxu0 0.0
      %390 = vmatpush2.msra.mxu0 0.0
      %391 = vmatprep.subr.mxu0 0.0
      %392 = vmatpush2.msra.mxu0 0.0
      %393 = vmatprep.subr.mxu0 0.0
      %394 = vmatpush2.msra.mxu0 0.0
      %395 = vmatprep.subr.mxu0 0.0
      %396 = vmatpush2.msra.mxu0 0.0
      %397 = vmatprep.subr.mxu0 0.0
      %398 = vmatpush2.msra.mxu0 0.0
      %399 = vmatprep.subr.mxu0 0.0
      %400 = vmatpush2.msra.mxu0 0.0
      %401 = vmatprep.subr.mxu0 0.0
      %402 = vmatpush2.msra.mxu0 0.0
      %403 = vmatprep.subr.mxu0 0.0
      %404 = vmatpush2.msra.mxu0 0.0
      %405 = vmatprep.subr.mxu0 0.0
      %406 = vmatpush2.msra.mxu0 0.0
      %407 = vmatprep.subr.mxu0 0.0
      %408 = vmatpush2.msra.mxu0 0.0
      %409 = vmatprep.subr.mxu0 0.0
      %410 = vmatpush2.msra.mxu0 0.0
      %411 = vmatprep.mubr.f32.mxu0 0.0
      %412 = vmatmul.mubr.f32.gmra.mxu0 %v342
      %v413 = vpop.f32.mrf.mxu0
      %v414 = vadd.f32 0.0, %v413
      %v415 = vpop.f32.mrf.mxu0
      %416 = vmatprep.mubr.f32.mxu0 0.0
      %417 = vmatmul.mubr.f32.gmra.mxu0 %v345
      %v418 = vpop.f32.mrf.mxu0
      %v419 = vadd.f32 0.0, %v418
      %v420 = vpop.f32.mrf.mxu0
      %421 = vdwg.mxu0
      %v422 = vld [vmem:[%s2 + $0x50] sm:$0xff]
      %v423 = vld [vmem:[%s2 + $0x58] sm:$0xff]
      %v424 = vld [vmem:[%s2 + $0x60] sm:$0xff]
      %v425 = vld [vmem:[%s2 + $0x68] sm:$0xff]
      %426 = vmatprep.subr.mxu0 0.0
      %427 = vmatpush1.msra.mxu0 0.0
      %428 = vmatprep.subr.mxu0 0.0
      %429 = vmatpush1.msra.mxu0 0.0
      %430 = vmatprep.subr.mxu0 0.0
      %431 = vmatpush1.msra.mxu0 0.0
      %432 = vmatprep.subr.mxu0 0.0
      %433 = vmatpush1.msra.mxu0 0.0
      %434 = vmatprep.subr.mxu0 0.0
      %435 = vmatpush1.msra.mxu0 0.0
      %436 = vmatprep.subr.mxu0 0.0
      %437 = vmatpush1.msra.mxu0 0.0
      %438 = vmatprep.subr.mxu0 0.0
      %439 = vmatpush1.msra.mxu0 0.0
      %440 = vmatprep.subr.mxu0 0.0
      %441 = vmatpush1.msra.mxu0 0.0
      %442 = vmatprep.subr.mxu0 0.0
      %443 = vmatpush1.msra.mxu0 0.0
      %444 = vmatprep.subr.mxu0 0.0
      %445 = vmatpush1.msra.mxu0 0.0
      %446 = vmatprep.subr.mxu0 0.0
      %447 = vmatpush1.msra.mxu0 0.0
      %448 = vmatprep.subr.mxu0 0.0
      %449 = vmatpush1.msra.mxu0 0.0
      %450 = vmatprep.subr.mxu0 0.0
      %451 = vmatpush1.msra.mxu0 %v425
      %452 = vmatprep.subr.mxu0 0.0
      %453 = vmatpush1.msra.mxu0 %v424
      %454 = vmatprep.subr.mxu0 0.0
      %455 = vmatpush1.msra.mxu0 %v423
      %456 = vmatprep.subr.mxu0 0.0
      %457 = vmatpush1.msra.mxu0 %v422
      %458 = vmatprep.subr.mxu0 0.0
      %459 = vmatpush2.msra.mxu0 0.0
      %460 = vmatprep.subr.mxu0 0.0
      %461 = vmatpush2.msra.mxu0 0.0
      %462 = vmatprep.subr.mxu0 0.0
      %463 = vmatpush2.msra.mxu0 0.0
      %464 = vmatprep.subr.mxu0 0.0
      %465 = vmatpush2.msra.mxu0 0.0
      %466 = vmatprep.subr.mxu0 0.0
      %467 = vmatpush2.msra.mxu0 0.0
      %468 = vmatprep.subr.mxu0 0.0
      %469 = vmatpush2.msra.mxu0 0.0
      %470 = vmatprep.subr.mxu0 0.0
      %471 = vmatpush2.msra.mxu0 0.0
      %472 = vmatprep.subr.mxu0 0.0
      %473 = vmatpush2.msra.mxu0 0.0
      %474 = vmatprep.subr.mxu0 0.0
      %475 = vmatpush2.msra.mxu0 0.0
      %476 = vmatprep.subr.mxu0 0.0
      %477 = vmatpush2.msra.mxu0 0.0
      %478 = vmatprep.subr.mxu0 0.0
      %479 = vmatpush2.msra.mxu0 0.0
      %480 = vmatprep.subr.mxu0 0.0
      %481 = vmatpush2.msra.mxu0 0.0
      %482 = vmatprep.subr.mxu0 0.0
      %483 = vmatpush2.msra.mxu0 0.0
      %484 = vmatprep.subr.mxu0 0.0
      %485 = vmatpush2.msra.mxu0 0.0
      %486 = vmatprep.subr.mxu0 0.0
      %487 = vmatpush2.msra.mxu0 0.0
      %488 = vmatprep.subr.mxu0 0.0
      %489 = vmatpush2.msra.mxu0 0.0
      %490 = vmatprep.mubr.f32.mxu0 0.0
      %491 = vmatmul.mubr.f32.gmra.mxu0 %v342
      %v492 = vpop.f32.mrf.mxu0
      %v493 = vadd.f32 0.0, %v492
      %v494 = vpop.f32.mrf.mxu0
      %495 = vmatprep.mubr.f32.mxu0 0.0
      %496 = vmatmul.mubr.f32.gmra.mxu0 %v345
      %v497 = vpop.f32.mrf.mxu0
      %v498 = vadd.f32 0.0, %v497
      %v499 = vpop.f32.mrf.mxu0
      %500 = vdwg.mxu0
      %503 = vrot.lane.b32.xlu0 %v414, 120
      %v504 = vpop.permute.xlu0 %503
      %505 = vrot.lane.b32.xlu0 %v419, 120
      %v506 = vpop.permute.xlu0 %505
      %507 = vrot.lane.b32.xlu0 %v414, 112
      %v508 = vpop.permute.xlu0 %507
      %509 = vrot.lane.b32.xlu0 %v419, 112
      %v510 = vpop.permute.xlu0 %509
      %511 = vrot.lane.b32.xlu0 %v414, 104
      %v512 = vpop.permute.xlu0 %511
      %513 = vrot.lane.b32.xlu0 %v419, 104
      %v514 = vpop.permute.xlu0 %513
      %517 = vrot.lane.b32.xlu0 %v493, 120
      %v518 = vpop.permute.xlu0 %517
      %519 = vrot.lane.b32.xlu0 %v498, 120
      %v520 = vpop.permute.xlu0 %519
      %523 = vrot.lane.b32.xlu0 %v493, 112
      %v524 = vpop.permute.xlu0 %523
      %525 = vrot.lane.b32.xlu0 %v498, 112
      %v526 = vpop.permute.xlu0 %525
      %529 = vrot.lane.b32.xlu0 %v493, 104
      %v530 = vpop.permute.xlu0 %529
      %531 = vrot.lane.b32.xlu0 %v498, 104
      %v532 = vpop.permute.xlu0 %531
      %vm535 = vcmask 64512
      %v536 = vsel %vm535, %v414, 0
      %v538 = vsel %vm535, %v419, 0
      %540 = vmatprep.subr.mxu0 0.0
      %541 = vmatpush1.xpose.msra.mxu0 0.0
      %542 = vmatprep.subr.mxu0 0.0
      %543 = vmatpush1.xpose.msra.mxu0 0.0
      %544 = vmatprep.subr.mxu0 0.0
      %545 = vmatpush1.xpose.msra.mxu0 0.0
      %546 = vmatprep.subr.mxu0 0.0
      %547 = vmatpush1.xpose.msra.mxu0 0.0
      %548 = vmatprep.subr.mxu0 0.0
      %549 = vmatpush1.xpose.msra.mxu0 0.0
      %550 = vmatprep.subr.mxu0 0.0
      %551 = vmatpush1.xpose.msra.mxu0 0.0
      %552 = vmatprep.subr.mxu0 0.0
      %553 = vmatpush1.xpose.msra.mxu0 0.0
      %554 = vmatprep.subr.mxu0 0.0
      %555 = vmatpush1.xpose.msra.mxu0 0.0
      %556 = vmatprep.subr.mxu0 0.0
      %557 = vmatpush1.xpose.msra.mxu0 0.0
      %558 = vmatprep.subr.mxu0 0.0
      %559 = vmatpush1.xpose.msra.mxu0 0.0
      %560 = vmatprep.subr.mxu0 0.0
      %561 = vmatpush1.xpose.msra.mxu0 0.0
      %562 = vmatprep.subr.mxu0 0.0
      %563 = vmatpush1.xpose.msra.mxu0 0.0
      %564 = vmatprep.subr.mxu0 0.0
      %565 = vmatpush1.xpose.msra.mxu0 0.0
      %566 = vmatprep.subr.mxu0 0.0
      %567 = vmatpush1.xpose.msra.mxu0 0.0
      %568 = vmatprep.subr.mxu0 0.0
      %569 = vmatpush1.xpose.msra.mxu0 %v538
      %570 = vmatprep.subr.mxu0 0.0
      %571 = vmatpush1.xpose.msra.mxu0 %v536
      %572 = vmatprep.subr.mxu0 0.0
      %573 = vmatpush2.xpose.msra.mxu0 0.0
      %574 = vmatprep.subr.mxu0 0.0
      %575 = vmatpush2.xpose.msra.mxu0 0.0
      %576 = vmatprep.subr.mxu0 0.0
      %577 = vmatpush2.xpose.msra.mxu0 0.0
      %578 = vmatprep.subr.mxu0 0.0
      %579 = vmatpush2.xpose.msra.mxu0 0.0
      %580 = vmatprep.subr.mxu0 0.0
      %581 = vmatpush2.xpose.msra.mxu0 0.0
      %582 = vmatprep.subr.mxu0 0.0
      %583 = vmatpush2.xpose.msra.mxu0 0.0
      %584 = vmatprep.subr.mxu0 0.0
      %585 = vmatpush2.xpose.msra.mxu0 0.0
      %586 = vmatprep.subr.mxu0 0.0
      %587 = vmatpush2.xpose.msra.mxu0 0.0
      %588 = vmatprep.subr.mxu0 0.0
      %589 = vmatpush2.xpose.msra.mxu0 0.0
      %590 = vmatprep.subr.mxu0 0.0
      %591 = vmatpush2.xpose.msra.mxu0 0.0
      %592 = vmatprep.subr.mxu0 0.0
      %593 = vmatpush2.xpose.msra.mxu0 0.0
      %594 = vmatprep.subr.mxu0 0.0
      %595 = vmatpush2.xpose.msra.mxu0 0.0
      %596 = vmatprep.subr.mxu0 0.0
      %597 = vmatpush2.xpose.msra.mxu0 0.0
      %598 = vmatprep.subr.mxu0 0.0
      %599 = vmatpush2.xpose.msra.mxu0 0.0
      %600 = vmatprep.subr.mxu0 0.0
      %601 = vmatpush2.xpose.msra.mxu0 0.0
      %602 = vmatprep.subr.mxu0 0.0
      %603 = vmatpush2.xpose.msra.mxu0 0.0
      %604 = vmatprep.mubr.f32.mxu0 0.0
      %605 = vmatmul.mubr.f32.gmra.mxu0 %v536
      %v606 = vpop.f32.mrf.mxu0
      %v607 = vadd.f32 0.0, %v606
      %v608 = vpop.f32.mrf.mxu0
      %609 = vmatprep.mubr.f32.mxu0 0.0
      %610 = vmatmul.mubr.f32.gmra.mxu0 %v538
      %v611 = vpop.f32.mrf.mxu0
      %v612 = vadd.f32 0.0, %v611
      %v613 = vpop.f32.mrf.mxu0
      %614 = vdwg.mxu0
      %v615 = vsel %vm535, %v504, 0
      %v617 = vsel %vm535, %v506, 0
      %619 = vmatprep.subr.mxu0 0.0
      %620 = vmatpush1.xpose.msra.mxu0 0.0
      %621 = vmatprep.subr.mxu0 0.0
      %622 = vmatpush1.xpose.msra.mxu0 0.0
      %623 = vmatprep.subr.mxu0 0.0
      %624 = vmatpush1.xpose.msra.mxu0 0.0
      %625 = vmatprep.subr.mxu0 0.0
      %626 = vmatpush1.xpose.msra.mxu0 0.0
      %627 = vmatprep.subr.mxu0 0.0
      %628 = vmatpush1.xpose.msra.mxu0 0.0
      %629 = vmatprep.subr.mxu0 0.0
      %630 = vmatpush1.xpose.msra.mxu0 0.0
      %631 = vmatprep.subr.mxu0 0.0
      %632 = vmatpush1.xpose.msra.mxu0 0.0
      %633 = vmatprep.subr.mxu0 0.0
      %634 = vmatpush1.xpose.msra.mxu0 0.0
      %635 = vmatprep.subr.mxu0 0.0
      %636 = vmatpush1.xpose.msra.mxu0 0.0
      %637 = vmatprep.subr.mxu0 0.0
      %638 = vmatpush1.xpose.msra.mxu0 0.0
      %639 = vmatprep.subr.mxu0 0.0
      %640 = vmatpush1.xpose.msra.mxu0 0.0
      %641 = vmatprep.subr.mxu0 0.0
      %642 = vmatpush1.xpose.msra.mxu0 0.0
      %643 = vmatprep.subr.mxu0 0.0
      %644 = vmatpush1.xpose.msra.mxu0 0.0
      %645 = vmatprep.subr.mxu0 0.0
      %646 = vmatpush1.xpose.msra.mxu0 0.0
      %647 = vmatprep.subr.mxu0 0.0
      %648 = vmatpush1.xpose.msra.mxu0 %v617
      %649 = vmatprep.subr.mxu0 0.0
      %650 = vmatpush1.xpose.msra.mxu0 %v615
      %651 = vmatprep.subr.mxu0 0.0
      %652 = vmatpush2.xpose.msra.mxu0 0.0
      %653 = vmatprep.subr.mxu0 0.0
      %654 = vmatpush2.xpose.msra.mxu0 0.0
      %655 = vmatprep.subr.mxu0 0.0
      %656 = vmatpush2.xpose.msra.mxu0 0.0
      %657 = vmatprep.subr.mxu0 0.0
      %658 = vmatpush2.xpose.msra.mxu0 0.0
      %659 = vmatprep.subr.mxu0 0.0
      %660 = vmatpush2.xpose.msra.mxu0 0.0
      %661 = vmatprep.subr.mxu0 0.0
      %662 = vmatpush2.xpose.msra.mxu0 0.0
      %663 = vmatprep.subr.mxu0 0.0
      %664 = vmatpush2.xpose.msra.mxu0 0.0
      %665 = vmatprep.subr.mxu0 0.0
      %666 = vmatpush2.xpose.msra.mxu0 0.0
      %667 = vmatprep.subr.mxu0 0.0
      %668 = vmatpush2.xpose.msra.mxu0 0.0
      %669 = vmatprep.subr.mxu0 0.0
      %670 = vmatpush2.xpose.msra.mxu0 0.0
      %671 = vmatprep.subr.mxu0 0.0
      %672 = vmatpush2.xpose.msra.mxu0 0.0
      %673 = vmatprep.subr.mxu0 0.0
      %674 = vmatpush2.xpose.msra.mxu0 0.0
      %675 = vmatprep.subr.mxu0 0.0
      %676 = vmatpush2.xpose.msra.mxu0 0.0
      %677 = vmatprep.subr.mxu0 0.0
      %678 = vmatpush2.xpose.msra.mxu0 0.0
      %679 = vmatprep.subr.mxu0 0.0
      %680 = vmatpush2.xpose.msra.mxu0 0.0
      %681 = vmatprep.subr.mxu0 0.0
      %682 = vmatpush2.xpose.msra.mxu0 0.0
      %683 = vmatprep.mubr.f32.mxu0 0.0
      %684 = vmatmul.mubr.f32.gmra.mxu0 %v615
      %v685 = vpop.f32.mrf.mxu0
      %v686 = vadd.f32 0.0, %v685
      %v687 = vpop.f32.mrf.mxu0
      %688 = vmatprep.mubr.f32.mxu0 0.0
      %689 = vmatmul.mubr.f32.gmra.mxu0 %v617
      %v690 = vpop.f32.mrf.mxu0
      %v691 = vadd.f32 0.0, %v690
      %v692 = vpop.f32.mrf.mxu0
      %693 = vdwg.mxu0
      %v694 = vsel %vm535, %v508, 0
      %v696 = vsel %vm535, %v510, 0
      %698 = vmatprep.subr.mxu0 0.0
      %699 = vmatpush1.xpose.msra.mxu0 0.0
      %700 = vmatprep.subr.mxu0 0.0
      %701 = vmatpush1.xpose.msra.mxu0 0.0
      %702 = vmatprep.subr.mxu0 0.0
      %703 = vmatpush1.xpose.msra.mxu0 0.0
      %704 = vmatprep.subr.mxu0 0.0
      %705 = vmatpush1.xpose.msra.mxu0 0.0
      %706 = vmatprep.subr.mxu0 0.0
      %707 = vmatpush1.xpose.msra.mxu0 0.0
      %708 = vmatprep.subr.mxu0 0.0
      %709 = vmatpush1.xpose.msra.mxu0 0.0
      %710 = vmatprep.subr.mxu0 0.0
      %711 = vmatpush1.xpose.msra.mxu0 0.0
      %712 = vmatprep.subr.mxu0 0.0
      %713 = vmatpush1.xpose.msra.mxu0 0.0
      %714 = vmatprep.subr.mxu0 0.0
      %715 = vmatpush1.xpose.msra.mxu0 0.0
      %716 = vmatprep.subr.mxu0 0.0
      %717 = vmatpush1.xpose.msra.mxu0 0.0
      %718 = vmatprep.subr.mxu0 0.0
      %719 = vmatpush1.xpose.msra.mxu0 0.0
      %720 = vmatprep.subr.mxu0 0.0
      %721 = vmatpush1.xpose.msra.mxu0 0.0
      %722 = vmatprep.subr.mxu0 0.0
      %723 = vmatpush1.xpose.msra.mxu0 0.0
      %724 = vmatprep.subr.mxu0 0.0
      %725 = vmatpush1.xpose.msra.mxu0 0.0
      %726 = vmatprep.subr.mxu0 0.0
      %727 = vmatpush1.xpose.msra.mxu0 %v696
      %728 = vmatprep.subr.mxu0 0.0
      %729 = vmatpush1.xpose.msra.mxu0 %v694
      %730 = vmatprep.subr.mxu0 0.0
      %731 = vmatpush2.xpose.msra.mxu0 0.0
      %732 = vmatprep.subr.mxu0 0.0
      %733 = vmatpush2.xpose.msra.mxu0 0.0
      %734 = vmatprep.subr.mxu0 0.0
      %735 = vmatpush2.xpose.msra.mxu0 0.0
      %736 = vmatprep.subr.mxu0 0.0
      %737 = vmatpush2.xpose.msra.mxu0 0.0
      %738 = vmatprep.subr.mxu0 0.0
      %739 = vmatpush2.xpose.msra.mxu0 0.0
      %740 = vmatprep.subr.mxu0 0.0
      %741 = vmatpush2.xpose.msra.mxu0 0.0
      %742 = vmatprep.subr.mxu0 0.0
      %743 = vmatpush2.xpose.msra.mxu0 0.0
      %744 = vmatprep.subr.mxu0 0.0
      %745 = vmatpush2.xpose.msra.mxu0 0.0
      %746 = vmatprep.subr.mxu0 0.0
      %747 = vmatpush2.xpose.msra.mxu0 0.0
      %748 = vmatprep.subr.mxu0 0.0
      %749 = vmatpush2.xpose.msra.mxu0 0.0
      %750 = vmatprep.subr.mxu0 0.0
      %751 = vmatpush2.xpose.msra.mxu0 0.0
      %752 = vmatprep.subr.mxu0 0.0
      %753 = vmatpush2.xpose.msra.mxu0 0.0
      %754 = vmatprep.subr.mxu0 0.0
      %755 = vmatpush2.xpose.msra.mxu0 0.0
      %756 = vmatprep.subr.mxu0 0.0
      %757 = vmatpush2.xpose.msra.mxu0 0.0
      %758 = vmatprep.subr.mxu0 0.0
      %759 = vmatpush2.xpose.msra.mxu0 0.0
      %760 = vmatprep.subr.mxu0 0.0
      %761 = vmatpush2.xpose.msra.mxu0 0.0
      %762 = vmatprep.mubr.f32.mxu0 0.0
      %763 = vmatmul.mubr.f32.gmra.mxu0 %v694
      %v764 = vpop.f32.mrf.mxu0
      %v765 = vadd.f32 0.0, %v764
      %v766 = vpop.f32.mrf.mxu0
      %767 = vmatprep.mubr.f32.mxu0 0.0
      %768 = vmatmul.mubr.f32.gmra.mxu0 %v696
      %v769 = vpop.f32.mrf.mxu0
      %v770 = vadd.f32 0.0, %v769
      %v771 = vpop.f32.mrf.mxu0
      %772 = vdwg.mxu0
      %v773 = vsel %vm535, %v512, 0
      %v775 = vsel %vm535, %v514, 0
      %777 = vmatprep.subr.mxu0 0.0
      %778 = vmatpush1.xpose.msra.mxu0 0.0
      %779 = vmatprep.subr.mxu0 0.0
      %780 = vmatpush1.xpose.msra.mxu0 0.0
      %781 = vmatprep.subr.mxu0 0.0
      %782 = vmatpush1.xpose.msra.mxu0 0.0
      %783 = vmatprep.subr.mxu0 0.0
      %784 = vmatpush1.xpose.msra.mxu0 0.0
      %785 = vmatprep.subr.mxu0 0.0
      %786 = vmatpush1.xpose.msra.mxu0 0.0
      %787 = vmatprep.subr.mxu0 0.0
      %788 = vmatpush1.xpose.msra.mxu0 0.0
      %789 = vmatprep.subr.mxu0 0.0
      %790 = vmatpush1.xpose.msra.mxu0 0.0
      %791 = vmatprep.subr.mxu0 0.0
      %792 = vmatpush1.xpose.msra.mxu0 0.0
      %793 = vmatprep.subr.mxu0 0.0
      %794 = vmatpush1.xpose.msra.mxu0 0.0
      %795 = vmatprep.subr.mxu0 0.0
      %796 = vmatpush1.xpose.msra.mxu0 0.0
      %797 = vmatprep.subr.mxu0 0.0
      %798 = vmatpush1.xpose.msra.mxu0 0.0
      %799 = vmatprep.subr.mxu0 0.0
      %800 = vmatpush1.xpose.msra.mxu0 0.0
      %801 = vmatprep.subr.mxu0 0.0
      %802 = vmatpush1.xpose.msra.mxu0 0.0
      %803 = vmatprep.subr.mxu0 0.0
      %804 = vmatpush1.xpose.msra.mxu0 0.0
      %805 = vmatprep.subr.mxu0 0.0
      %806 = vmatpush1.xpose.msra.mxu0 %v775
      %807 = vmatprep.subr.mxu0 0.0
      %808 = vmatpush1.xpose.msra.mxu0 %v773
      %809 = vmatprep.subr.mxu0 0.0
      %810 = vmatpush2.xpose.msra.mxu0 0.0
      %811 = vmatprep.subr.mxu0 0.0
      %812 = vmatpush2.xpose.msra.mxu0 0.0
      %813 = vmatprep.subr.mxu0 0.0
      %814 = vmatpush2.xpose.msra.mxu0 0.0
      %815 = vmatprep.subr.mxu0 0.0
      %816 = vmatpush2.xpose.msra.mxu0 0.0
      %817 = vmatprep.subr.mxu0 0.0
      %818 = vmatpush2.xpose.msra.mxu0 0.0
      %819 = vmatprep.subr.mxu0 0.0
      %820 = vmatpush2.xpose.msra.mxu0 0.0
      %821 = vmatprep.subr.mxu0 0.0
      %822 = vmatpush2.xpose.msra.mxu0 0.0
      %823 = vmatprep.subr.mxu0 0.0
      %824 = vmatpush2.xpose.msra.mxu0 0.0
      %825 = vmatprep.subr.mxu0 0.0
      %826 = vmatpush2.xpose.msra.mxu0 0.0
      %827 = vmatprep.subr.mxu0 0.0
      %828 = vmatpush2.xpose.msra.mxu0 0.0
      %829 = vmatprep.subr.mxu0 0.0
      %830 = vmatpush2.xpose.msra.mxu0 0.0
      %831 = vmatprep.subr.mxu0 0.0
      %832 = vmatpush2.xpose.msra.mxu0 0.0
      %833 = vmatprep.subr.mxu0 0.0
      %834 = vmatpush2.xpose.msra.mxu0 0.0
      %835 = vmatprep.subr.mxu0 0.0
      %836 = vmatpush2.xpose.msra.mxu0 0.0
      %837 = vmatprep.subr.mxu0 0.0
      %838 = vmatpush2.xpose.msra.mxu0 0.0
      %839 = vmatprep.subr.mxu0 0.0
      %840 = vmatpush2.xpose.msra.mxu0 0.0
      %841 = vmatprep.mubr.f32.mxu0 0.0
      %842 = vmatmul.mubr.f32.gmra.mxu0 %v773
      %v843 = vpop.f32.mrf.mxu0
      %v844 = vadd.f32 0.0, %v843
      %v845 = vpop.f32.mrf.mxu0
      %846 = vmatprep.mubr.f32.mxu0 0.0
      %847 = vmatmul.mubr.f32.gmra.mxu0 %v775
      %v848 = vpop.f32.mrf.mxu0
      %v849 = vadd.f32 0.0, %v848
      %v850 = vpop.f32.mrf.mxu0
      %851 = vdwg.mxu0
      %v852 = vmul.f32 %v607, 0.35355338
      %v853 = vmul.f32 %v612, 0.35355338
      %v854 = vmul.f32 %v686, 0.35355338
      %v855 = vmul.f32 %v691, 0.35355338
      %v856 = vmul.f32 %v765, 0.35355338
      %v857 = vmul.f32 %v770, 0.35355338
      %v858 = vmul.f32 %v844, 0.35355338
      %v859 = vmul.f32 %v849, 0.35355338
      %vm860 = vcmask 130048
      %v861 = vsel %vm860, %v852, -inf
      %862 = vmax.xlane.f32.xlu0 %v861
      %v863 = vpop.xlane.xlu0 %862
      %v864 = vsel %vm860, %v853, -inf
      %865 = vmax.xlane.f32.xlu0 %v864
      %v866 = vpop.xlane.xlu0 %865
      %v867 = vsel %vm860, %v854, -inf
      %868 = vmax.xlane.f32.xlu0 %v867
      %v869 = vpop.xlane.xlu0 %868
      %v870 = vsel %vm860, %v855, -inf
      %871 = vmax.xlane.f32.xlu0 %v870
      %v872 = vpop.xlane.xlu0 %871
      %v873 = vsel %vm860, %v856, -inf
      %874 = vmax.xlane.f32.xlu0 %v873
      %v875 = vpop.xlane.xlu0 %874
      %v876 = vsel %vm860, %v857, -inf
      %877 = vmax.xlane.f32.xlu0 %v876
      %v878 = vpop.xlane.xlu0 %877
      %v879 = vsel %vm860, %v858, -inf
      %880 = vmax.xlane.f32.xlu0 %v879
      %v881 = vpop.xlane.xlu0 %880
      %v882 = vsel %vm860, %v859, -inf
      %883 = vmax.xlane.f32.xlu0 %v882
      %v884 = vpop.xlane.xlu0 %883
      %v885 = vsub.f32 %v852, %v863
      %v886 = vsub.f32 %v853, %v866
      %v887 = vsub.f32 %v854, %v869
      %v888 = vsub.f32 %v855, %v872
      %v889 = vsub.f32 %v856, %v875
      %v890 = vsub.f32 %v857, %v878
      %v891 = vsub.f32 %v858, %v881
      %v892 = vsub.f32 %v859, %v884
      %v893 = vmul.f32 %v885, 1.442695
      %v894 = vpow.pop %v893
      %v895 = vmul.f32 %v886, 1.442695
      %v896 = vpow.pop %v895
      %v897 = vmul.f32 %v887, 1.442695
      %v898 = vpow.pop %v897
      %v899 = vmul.f32 %v888, 1.442695
      %v900 = vpow.pop %v899
      %v901 = vmul.f32 %v889, 1.442695
      %v902 = vpow.pop %v901
      %v903 = vmul.f32 %v890, 1.442695
      %v904 = vpow.pop %v903
      %v905 = vmul.f32 %v891, 1.442695
      %v906 = vpow.pop %v905
      %v907 = vmul.f32 %v892, 1.442695
      %v908 = vpow.pop %v907
      %v909 = vsel %vm860, %v894, 0.0
      %910 = vadd.xlane.f32.xlu0 %v909
      %v911 = vpop.xlane.xlu0 %910
      %v912 = vsel %vm860, %v896, 0.0
      %913 = vadd.xlane.f32.xlu0 %v912
      %v914 = vpop.xlane.xlu0 %913
      %v915 = vsel %vm860, %v898, 0.0
      %916 = vadd.xlane.f32.xlu0 %v915
      %v917 = vpop.xlane.xlu0 %916
      %v918 = vsel %vm860, %v900, 0.0
      %919 = vadd.xlane.f32.xlu0 %v918
      %v920 = vpop.xlane.xlu0 %919
      %v921 = vsel %vm860, %v902, 0.0
      %922 = vadd.xlane.f32.xlu0 %v921
      %v923 = vpop.xlane.xlu0 %922
      %v924 = vsel %vm860, %v904, 0.0
      %925 = vadd.xlane.f32.xlu0 %v924
      %v926 = vpop.xlane.xlu0 %925
      %v927 = vsel %vm860, %v906, 0.0
      %928 = vadd.xlane.f32.xlu0 %v927
      %v929 = vpop.xlane.xlu0 %928
      %v930 = vsel %vm860, %v908, 0.0
      %931 = vadd.xlane.f32.xlu0 %v930
      %v932 = vpop.xlane.xlu0 %931
      %v933 = vrcp.pop %v911
      %v934 = vrcp.pop %v914
      %v935 = vrcp.pop %v917
      %v936 = vrcp.pop %v920
      %v937 = vrcp.pop %v923
      %v938 = vrcp.pop %v926
      %v939 = vrcp.pop %v929
      %v940 = vrcp.pop %v932
      %v941 = vmul.f32 %v894, %v933
      %v942 = vmul.f32 %v896, %v934
      %v943 = vmul.f32 %v898, %v935
      %v944 = vmul.f32 %v900, %v936
      %v945 = vmul.f32 %v902, %v937
      %v946 = vmul.f32 %v904, %v938
      %v947 = vmul.f32 %v906, %v939
      %v948 = vmul.f32 %v908, %v940
      %v950 = vsel %vm860, %v941, 0
      %v953 = vsel %vm860, %v942, 0
      %955 = vmatprep.subr.mxu0 0.0
      %956 = vmatpush1.msra.mxu0 0.0
      %957 = vmatprep.subr.mxu0 0.0
      %958 = vmatpush1.msra.mxu0 0.0
      %959 = vmatprep.subr.mxu0 0.0
      %960 = vmatpush1.msra.mxu0 0.0
      %961 = vmatprep.subr.mxu0 0.0
      %962 = vmatpush1.msra.mxu0 0.0
      %963 = vmatprep.subr.mxu0 0.0
      %964 = vmatpush1.msra.mxu0 0.0
      %965 = vmatprep.subr.mxu0 0.0
      %966 = vmatpush1.msra.mxu0 0.0
      %967 = vmatprep.subr.mxu0 0.0
      %968 = vmatpush1.msra.mxu0 0.0
      %969 = vmatprep.subr.mxu0 0.0
      %970 = vmatpush1.msra.mxu0 0.0
      %971 = vmatprep.subr.mxu0 0.0
      %972 = vmatpush1.msra.mxu0 0.0
      %973 = vmatprep.subr.mxu0 0.0
      %974 = vmatpush1.msra.mxu0 0.0
      %975 = vmatprep.subr.mxu0 0.0
      %976 = vmatpush1.msra.mxu0 0.0
      %977 = vmatprep.subr.mxu0 0.0
      %978 = vmatpush1.msra.mxu0 0.0
      %979 = vmatprep.subr.mxu0 0.0
      %980 = vmatpush1.msra.mxu0 0.0
      %981 = vmatprep.subr.mxu0 0.0
      %982 = vmatpush1.msra.mxu0 0.0
      %983 = vmatprep.subr.mxu0 0.0
      %984 = vmatpush1.msra.mxu0 %v498
      %985 = vmatprep.subr.mxu0 0.0
      %986 = vmatpush1.msra.mxu0 %v493
      %987 = vmatprep.subr.mxu0 0.0
      %988 = vmatpush2.msra.mxu0 0.0
      %989 = vmatprep.subr.mxu0 0.0
      %990 = vmatpush2.msra.mxu0 0.0
      %991 = vmatprep.subr.mxu0 0.0
      %992 = vmatpush2.msra.mxu0 0.0
      %993 = vmatprep.subr.mxu0 0.0
      %994 = vmatpush2.msra.mxu0 0.0
      %995 = vmatprep.subr.mxu0 0.0
      %996 = vmatpush2.msra.mxu0 0.0
      %997 = vmatprep.subr.mxu0 0.0
      %998 = vmatpush2.msra.mxu0 0.0
      %999 = vmatprep.subr.mxu0 0.0
      %1000 = vmatpush2.msra.mxu0 0.0
      %1001 = vmatprep.subr.mxu0 0.0
      %1002 = vmatpush2.msra.mxu0 0.0
      %1003 = vmatprep.subr.mxu0 0.0
      %1004 = vmatpush2.msra.mxu0 0.0
      %1005 = vmatprep.subr.mxu0 0.0
      %1006 = vmatpush2.msra.mxu0 0.0
      %1007 = vmatprep.subr.mxu0 0.0
      %1008 = vmatpush2.msra.mxu0 0.0
      %1009 = vmatprep.subr.mxu0 0.0
      %1010 = vmatpush2.msra.mxu0 0.0
      %1011 = vmatprep.subr.mxu0 0.0
      %1012 = vmatpush2.msra.mxu0 0.0
      %1013 = vmatprep.subr.mxu0 0.0
      %1014 = vmatpush2.msra.mxu0 0.0
      %1015 = vmatprep.subr.mxu0 0.0
      %1016 = vmatpush2.msra.mxu0 0.0
      %1017 = vmatprep.subr.mxu0 0.0
      %1018 = vmatpush2.msra.mxu0 0.0
      %1019 = vmatprep.mubr.f32.mxu0 0.0
      %1020 = vmatmul.mubr.f32.gmra.mxu0 %v950
      %v1021 = vpop.f32.mrf.mxu0
      %v1022 = vadd.f32 0.0, %v1021
      %v1023 = vpop.f32.mrf.mxu0
      %1024 = vmatprep.mubr.f32.mxu0 0.0
      %1025 = vmatmul.mubr.f32.gmra.mxu0 %v953
      %v1026 = vpop.f32.mrf.mxu0
      %v1027 = vadd.f32 0.0, %v1026
      %v1028 = vpop.f32.mrf.mxu0
      %1029 = vdwg.mxu0
      %v1031 = vsel %vm860, %v943, 0
      %v1034 = vsel %vm860, %v944, 0
      %1036 = vmatprep.subr.mxu0 0.0
      %1037 = vmatpush1.msra.mxu0 0.0
      %1038 = vmatprep.subr.mxu0 0.0
      %1039 = vmatpush1.msra.mxu0 0.0
      %1040 = vmatprep.subr.mxu0 0.0
      %1041 = vmatpush1.msra.mxu0 0.0
      %1042 = vmatprep.subr.mxu0 0.0
      %1043 = vmatpush1.msra.mxu0 0.0
      %1044 = vmatprep.subr.mxu0 0.0
      %1045 = vmatpush1.msra.mxu0 0.0
      %1046 = vmatprep.subr.mxu0 0.0
      %1047 = vmatpush1.msra.mxu0 0.0
      %1048 = vmatprep.subr.mxu0 0.0
      %1049 = vmatpush1.msra.mxu0 0.0
      %1050 = vmatprep.subr.mxu0 0.0
      %1051 = vmatpush1.msra.mxu0 0.0
      %1052 = vmatprep.subr.mxu0 0.0
      %1053 = vmatpush1.msra.mxu0 0.0
      %1054 = vmatprep.subr.mxu0 0.0
      %1055 = vmatpush1.msra.mxu0 0.0
      %1056 = vmatprep.subr.mxu0 0.0
      %1057 = vmatpush1.msra.mxu0 0.0
      %1058 = vmatprep.subr.mxu0 0.0
      %1059 = vmatpush1.msra.mxu0 0.0
      %1060 = vmatprep.subr.mxu0 0.0
      %1061 = vmatpush1.msra.mxu0 0.0
      %1062 = vmatprep.subr.mxu0 0.0
      %1063 = vmatpush1.msra.mxu0 0.0
      %1064 = vmatprep.subr.mxu0 0.0
      %1065 = vmatpush1.msra.mxu0 %v520
      %1066 = vmatprep.subr.mxu0 0.0
      %1067 = vmatpush1.msra.mxu0 %v518
      %1068 = vmatprep.subr.mxu0 0.0
      %1069 = vmatpush2.msra.mxu0 0.0
      %1070 = vmatprep.subr.mxu0 0.0
      %1071 = vmatpush2.msra.mxu0 0.0
      %1072 = vmatprep.subr.mxu0 0.0
      %1073 = vmatpush2.msra.mxu0 0.0
      %1074 = vmatprep.subr.mxu0 0.0
      %1075 = vmatpush2.msra.mxu0 0.0
      %1076 = vmatprep.subr.mxu0 0.0
      %1077 = vmatpush2.msra.mxu0 0.0
      %1078 = vmatprep.subr.mxu0 0.0
      %1079 = vmatpush2.msra.mxu0 0.0
      %1080 = vmatprep.subr.mxu0 0.0
      %1081 = vmatpush2.msra.mxu0 0.0
      %1082 = vmatprep.subr.mxu0 0.0
      %1083 = vmatpush2.msra.mxu0 0.0
      %1084 = vmatprep.subr.mxu0 0.0
      %1085 = vmatpush2.msra.mxu0 0.0
      %1086 = vmatprep.subr.mxu0 0.0
      %1087 = vmatpush2.msra.mxu0 0.0
      %1088 = vmatprep.subr.mxu0 0.0
      %1089 = vmatpush2.msra.mxu0 0.0
      %1090 = vmatprep.subr.mxu0 0.0
      %1091 = vmatpush2.msra.mxu0 0.0
      %1092 = vmatprep.subr.mxu0 0.0
      %1093 = vmatpush2.msra.mxu0 0.0
      %1094 = vmatprep.subr.mxu0 0.0
      %1095 = vmatpush2.msra.mxu0 0.0
      %1096 = vmatprep.subr.mxu0 0.0
      %1097 = vmatpush2.msra.mxu0 0.0
      %1098 = vmatprep.subr.mxu0 0.0
      %1099 = vmatpush2.msra.mxu0 0.0
      %1100 = vmatprep.mubr.f32.mxu0 0.0
      %1101 = vmatmul.mubr.f32.gmra.mxu0 %v1031
      %v1102 = vpop.f32.mrf.mxu0
      %v1103 = vadd.f32 0.0, %v1102
      %v1104 = vpop.f32.mrf.mxu0
      %1105 = vmatprep.mubr.f32.mxu0 0.0
      %1106 = vmatmul.mubr.f32.gmra.mxu0 %v1034
      %v1107 = vpop.f32.mrf.mxu0
      %v1108 = vadd.f32 0.0, %v1107
      %v1109 = vpop.f32.mrf.mxu0
      %1110 = vdwg.mxu0
      %v1112 = vsel %vm860, %v945, 0
      %v1115 = vsel %vm860, %v946, 0
      %1117 = vmatprep.subr.mxu0 0.0
      %1118 = vmatpush1.msra.mxu0 0.0
      %1119 = vmatprep.subr.mxu0 0.0
      %1120 = vmatpush1.msra.mxu0 0.0
      %1121 = vmatprep.subr.mxu0 0.0
      %1122 = vmatpush1.msra.mxu0 0.0
      %1123 = vmatprep.subr.mxu0 0.0
      %1124 = vmatpush1.msra.mxu0 0.0
      %1125 = vmatprep.subr.mxu0 0.0
      %1126 = vmatpush1.msra.mxu0 0.0
      %1127 = vmatprep.subr.mxu0 0.0
      %1128 = vmatpush1.msra.mxu0 0.0
      %1129 = vmatprep.subr.mxu0 0.0
      %1130 = vmatpush1.msra.mxu0 0.0
      %1131 = vmatprep.subr.mxu0 0.0
      %1132 = vmatpush1.msra.mxu0 0.0
      %1133 = vmatprep.subr.mxu0 0.0
      %1134 = vmatpush1.msra.mxu0 0.0
      %1135 = vmatprep.subr.mxu0 0.0
      %1136 = vmatpush1.msra.mxu0 0.0
      %1137 = vmatprep.subr.mxu0 0.0
      %1138 = vmatpush1.msra.mxu0 0.0
      %1139 = vmatprep.subr.mxu0 0.0
      %1140 = vmatpush1.msra.mxu0 0.0
      %1141 = vmatprep.subr.mxu0 0.0
      %1142 = vmatpush1.msra.mxu0 0.0
      %1143 = vmatprep.subr.mxu0 0.0
      %1144 = vmatpush1.msra.mxu0 0.0
      %1145 = vmatprep.subr.mxu0 0.0
      %1146 = vmatpush1.msra.mxu0 %v526
      %1147 = vmatprep.subr.mxu0 0.0
      %1148 = vmatpush1.msra.mxu0 %v524
      %1149 = vmatprep.subr.mxu0 0.0
      %1150 = vmatpush2.msra.mxu0 0.0
      %1151 = vmatprep.subr.mxu0 0.0
      %1152 = vmatpush2.msra.mxu0 0.0
      %1153 = vmatprep.subr.mxu0 0.0
      %1154 = vmatpush2.msra.mxu0 0.0
      %1155 = vmatprep.subr.mxu0 0.0
      %1156 = vmatpush2.msra.mxu0 0.0
      %1157 = vmatprep.subr.mxu0 0.0
      %1158 = vmatpush2.msra.mxu0 0.0
      %1159 = vmatprep.subr.mxu0 0.0
      %1160 = vmatpush2.msra.mxu0 0.0
      %1161 = vmatprep.subr.mxu0 0.0
      %1162 = vmatpush2.msra.mxu0 0.0
      %1163 = vmatprep.subr.mxu0 0.0
      %1164 = vmatpush2.msra.mxu0 0.0
      %1165 = vmatprep.subr.mxu0 0.0
      %1166 = vmatpush2.msra.mxu0 0.0
      %1167 = vmatprep.subr.mxu0 0.0
      %1168 = vmatpush2.msra.mxu0 0.0
      %1169 = vmatprep.subr.mxu0 0.0
      %1170 = vmatpush2.msra.mxu0 0.0
      %1171 = vmatprep.subr.mxu0 0.0
      %1172 = vmatpush2.msra.mxu0 0.0
      %1173 = vmatprep.subr.mxu0 0.0
      %1174 = vmatpush2.msra.mxu0 0.0
      %1175 = vmatprep.subr.mxu0 0.0
      %1176 = vmatpush2.msra.mxu0 0.0
      %1177 = vmatprep.subr.mxu0 0.0
      %1178 = vmatpush2.msra.mxu0 0.0
      %1179 = vmatprep.subr.mxu0 0.0
      %1180 = vmatpush2.msra.mxu0 0.0
      %1181 = vmatprep.mubr.f32.mxu0 0.0
      %1182 = vmatmul.mubr.f32.gmra.mxu0 %v1112
      %v1183 = vpop.f32.mrf.mxu0
      %v1184 = vadd.f32 0.0, %v1183
      %v1185 = vpop.f32.mrf.mxu0
      %1186 = vmatprep.mubr.f32.mxu0 0.0
      %1187 = vmatmul.mubr.f32.gmra.mxu0 %v1115
      %v1188 = vpop.f32.mrf.mxu0
      %v1189 = vadd.f32 0.0, %v1188
      %v1190 = vpop.f32.mrf.mxu0
      %1191 = vdwg.mxu0
      %v1193 = vsel %vm860, %v947, 0
      %v1196 = vsel %vm860, %v948, 0
      %1198 = vmatprep.subr.mxu0 0.0
      %1199 = vmatpush1.msra.mxu0 0.0
      %1200 = vmatprep.subr.mxu0 0.0
      %1201 = vmatpush1.msra.mxu0 0.0
      %1202 = vmatprep.subr.mxu0 0.0
      %1203 = vmatpush1.msra.mxu0 0.0
      %1204 = vmatprep.subr.mxu0 0.0
      %1205 = vmatpush1.msra.mxu0 0.0
      %1206 = vmatprep.subr.mxu0 0.0
      %1207 = vmatpush1.msra.mxu0 0.0
      %1208 = vmatprep.subr.mxu0 0.0
      %1209 = vmatpush1.msra.mxu0 0.0
      %1210 = vmatprep.subr.mxu0 0.0
      %1211 = vmatpush1.msra.mxu0 0.0
      %1212 = vmatprep.subr.mxu0 0.0
      %1213 = vmatpush1.msra.mxu0 0.0
      %1214 = vmatprep.subr.mxu0 0.0
      %1215 = vmatpush1.msra.mxu0 0.0
      %1216 = vmatprep.subr.mxu0 0.0
      %1217 = vmatpush1.msra.mxu0 0.0
      %1218 = vmatprep.subr.mxu0 0.0
      %1219 = vmatpush1.msra.mxu0 0.0
      %1220 = vmatprep.subr.mxu0 0.0
      %1221 = vmatpush1.msra.mxu0 0.0
      %1222 = vmatprep.subr.mxu0 0.0
      %1223 = vmatpush1.msra.mxu0 0.0
      %1224 = vmatprep.subr.mxu0 0.0
      %1225 = vmatpush1.msra.mxu0 0.0
      %1226 = vmatprep.subr.mxu0 0.0
      %1227 = vmatpush1.msra.mxu0 %v532
      %1228 = vmatprep.subr.mxu0 0.0
      %1229 = vmatpush1.msra.mxu0 %v530
      %1230 = vmatprep.subr.mxu0 0.0
      %1231 = vmatpush2.msra.mxu0 0.0
      %1232 = vmatprep.subr.mxu0 0.0
      %1233 = vmatpush2.msra.mxu0 0.0
      %1234 = vmatprep.subr.mxu0 0.0
      %1235 = vmatpush2.msra.mxu0 0.0
      %1236 = vmatprep.subr.mxu0 0.0
      %1237 = vmatpush2.msra.mxu0 0.0
      %1238 = vmatprep.subr.mxu0 0.0
      %1239 = vmatpush2.msra.mxu0 0.0
      %1240 = vmatprep.subr.mxu0 0.0
      %1241 = vmatpush2.msra.mxu0 0.0
      %1242 = vmatprep.subr.mxu0 0.0
      %1243 = vmatpush2.msra.mxu0 0.0
      %1244 = vmatprep.subr.mxu0 0.0
      %1245 = vmatpush2.msra.mxu0 0.0
      %1246 = vmatprep.subr.mxu0 0.0
      %1247 = vmatpush2.msra.mxu0 0.0
      %1248 = vmatprep.subr.mxu0 0.0
      %1249 = vmatpush2.msra.mxu0 0.0
      %1250 = vmatprep.subr.mxu0 0.0
      %1251 = vmatpush2.msra.mxu0 0.0
      %1252 = vmatprep.subr.mxu0 0.0
      %1253 = vmatpush2.msra.mxu0 0.0
      %1254 = vmatprep.subr.mxu0 0.0
      %1255 = vmatpush2.msra.mxu0 0.0
      %1256 = vmatprep.subr.mxu0 0.0
      %1257 = vmatpush2.msra.mxu0 0.0
      %1258 = vmatprep.subr.mxu0 0.0
      %1259 = vmatpush2.msra.mxu0 0.0
      %1260 = vmatprep.subr.mxu0 0.0
      %1261 = vmatpush2.msra.mxu0 0.0
      %1262 = vmatprep.mubr.f32.mxu0 0.0
      %1263 = vmatmul.mubr.f32.gmra.mxu0 %v1193
      %v1264 = vpop.f32.mrf.mxu0
      %v1265 = vadd.f32 0.0, %v1264
      %v1266 = vpop.f32.mrf.mxu0
      %1267 = vmatprep.mubr.f32.mxu0 0.0
      %1268 = vmatmul.mubr.f32.gmra.mxu0 %v1196
      %v1269 = vpop.f32.mrf.mxu0
      %v1270 = vadd.f32 0.0, %v1269
      %v1271 = vpop.f32.mrf.mxu0
      %1272 = vdwg.mxu0
      %1275 = vrot.lane.b32.xlu0 %v1103, 8
      %v1276 = vpop.permute.xlu0 %1275
      %1277 = vrot.lane.b32.xlu0 %v1108, 8
      %v1278 = vpop.permute.xlu0 %1277
      %1283 = vrot.lane.b32.xlu0 %v1184, 16
      %v1284 = vpop.permute.xlu0 %1283
      %1285 = vrot.lane.b32.xlu0 %v1189, 16
      %v1286 = vpop.permute.xlu0 %1285
      %1291 = vrot.lane.b32.xlu0 %v1265, 24
      %v1292 = vpop.permute.xlu0 %1291
      %1293 = vrot.lane.b32.xlu0 %v1270, 24
      %v1294 = vpop.permute.xlu0 %1293
      %v1297 = vsel %vm535, %v1022, %v1276
      %v1298 = vsel %vm535, %v1027, %v1278
      %v1299 = vsel %vm860, %v1297, %v1284
      %v1300 = vsel %vm860, %v1298, %v1286
      %vm1301 = vcmask 195584
      %v1302 = vsel %vm1301, %v1299, %v1292
      %v1303 = vsel %vm1301, %v1300, %v1294
      %v1304 = vld [vmem:[%s2 + $0x70] sm:$0xff]
      %v1305 = vld [vmem:[%s2 + $0x78] sm:$0xff]
      %v1306 = vld [vmem:[%s2 + $0x80] sm:$0xff]
      %v1307 = vld [vmem:[%s2 + $0x88] sm:$0xff]
      %v1308 = vld [vmem:[%s2 + $0x90] sm:$0x1]
      %v1309 = vlaneseq
      %v1310 = vshrl.u32 %v1309, 7
      %v1311 = vsub.s32 0, %v1310
      %v1312 = vrot.slane %v1308, %v1311
      %v1314 = vsel %vm340, %v1302, 0
      %v1317 = vsel %vm340, %v1303, 0
      %1319 = vmatprep.subr.mxu0 0.0
      %1320 = vmatpush1.msra.mxu0 0.0
      %1321 = vmatprep.subr.mxu0 0.0
      %1322 = vmatpush1.msra.mxu0 0.0
      %1323 = vmatprep.subr.mxu0 0.0
      %1324 = vmatpush1.msra.mxu0 0.0
      %1325 = vmatprep.subr.mxu0 0.0
      %1326 = vmatpush1.msra.mxu0 0.0
      %1327 = vmatprep.subr.mxu0 0.0
      %1328 = vmatpush1.msra.mxu0 0.0
      %1329 = vmatprep.subr.mxu0 0.0
      %1330 = vmatpush1.msra.mxu0 0.0
      %1331 = vmatprep.subr.mxu0 0.0
      %1332 = vmatpush1.msra.mxu0 0.0
      %1333 = vmatprep.subr.mxu0 0.0
      %1334 = vmatpush1.msra.mxu0 0.0
      %1335 = vmatprep.subr.mxu0 0.0
      %1336 = vmatpush1.msra.mxu0 0.0
      %1337 = vmatprep.subr.mxu0 0.0
      %1338 = vmatpush1.msra.mxu0 0.0
      %1339 = vmatprep.subr.mxu0 0.0
      %1340 = vmatpush1.msra.mxu0 0.0
      %1341 = vmatprep.subr.mxu0 0.0
      %1342 = vmatpush1.msra.mxu0 0.0
      %1343 = vmatprep.subr.mxu0 0.0
      %1344 = vmatpush1.msra.mxu0 %v1307
      %1345 = vmatprep.subr.mxu0 0.0
      %1346 = vmatpush1.msra.mxu0 %v1306
      %1347 = vmatprep.subr.mxu0 0.0
      %1348 = vmatpush1.msra.mxu0 %v1305
      %1349 = vmatprep.subr.mxu0 0.0
      %1350 = vmatpush1.msra.mxu0 %v1304
      %1351 = vmatprep.subr.mxu0 0.0
      %1352 = vmatpush2.msra.mxu0 0.0
      %1353 = vmatprep.subr.mxu0 0.0
      %1354 = vmatpush2.msra.mxu0 0.0
      %1355 = vmatprep.subr.mxu0 0.0
      %1356 = vmatpush2.msra.mxu0 0.0
      %1357 = vmatprep.subr.mxu0 0.0
      %1358 = vmatpush2.msra.mxu0 0.0
      %1359 = vmatprep.subr.mxu0 0.0
      %1360 = vmatpush2.msra.mxu0 0.0
      %1361 = vmatprep.subr.mxu0 0.0
      %1362 = vmatpush2.msra.mxu0 0.0
      %1363 = vmatprep.subr.mxu0 0.0
      %1364 = vmatpush2.msra.mxu0 0.0
      %1365 = vmatprep.subr.mxu0 0.0
      %1366 = vmatpush2.msra.mxu0 0.0
      %1367 = vmatprep.subr.mxu0 0.0
      %1368 = vmatpush2.msra.mxu0 0.0
      %1369 = vmatprep.subr.mxu0 0.0
      %1370 = vmatpush2.msra.mxu0 0.0
      %1371 = vmatprep.subr.mxu0 0.0
      %1372 = vmatpush2.msra.mxu0 0.0
      %1373 = vmatprep.subr.mxu0 0.0
      %1374 = vmatpush2.msra.mxu0 0.0
      %1375 = vmatprep.subr.mxu0 0.0
      %1376 = vmatpush2.msra.mxu0 0.0
      %1377 = vmatprep.subr.mxu0 0.0
      %1378 = vmatpush2.msra.mxu0 0.0
      %1379 = vmatprep.subr.mxu0 0.0
      %1380 = vmatpush2.msra.mxu0 0.0
      %1381 = vmatprep.subr.mxu0 0.0
      %1382 = vmatpush2.msra.mxu0 0.0
      %1383 = vmatprep.mubr.f32.mxu0 0.0
      %1384 = vmatmul.mubr.f32.gmra.mxu0 %v1314
      %v1385 = vpop.f32.mrf.mxu0
      %v1386 = vadd.f32 %v1312, %v1385
      %v1387 = vpop.f32.mrf.mxu0
      %1388 = vmatprep.mubr.f32.mxu0 0.0
      %1389 = vmatmul.mubr.f32.gmra.mxu0 %v1317
      %v1390 = vpop.f32.mrf.mxu0
      %v1391 = vadd.f32 %v1312, %v1390
      %v1392 = vpop.f32.mrf.mxu0
      %1393 = vdwg.mxu0
      %v1394 = vadd.f32 %v328, %v1386
      %v1395 = vadd.f32 %v333, %v1391
      %v1396 = vld [vmem:[%s2 + $0xe0] sm:$0x1]
      %v1397 = vld [vmem:[%s2 + $0xe8] sm:$0x1]
      %v1398 = vsel %vm340, %v1394, 0.0
      %1399 = vadd.xlane.f32.xlu0 %v1398
      %v1400 = vpop.xlane.xlu0 %1399
      %v1401 = vsel %vm340, %v1395, 0.0
      %1402 = vadd.xlane.f32.xlu0 %v1401
      %v1403 = vpop.xlane.xlu0 %1402
      %v1404 = vrcp.pop 32.0
      %v1405 = vmul.f32 %v1400, %v1404
      %v1406 = vmul.f32 %v1403, %v1404
      %v1407 = vsub.f32 %v1394, %v1405
      %v1408 = vsub.f32 %v1395, %v1406
      %v1409 = vmul.f32 %v1407, %v1407
      %v1410 = vmul.f32 %v1408, %v1408
      %v1411 = vsel %vm340, %v1409, 0.0
      %1412 = vadd.xlane.f32.xlu0 %v1411
      %v1413 = vpop.xlane.xlu0 %1412
      %v1414 = vsel %vm340, %v1410, 0.0
      %1415 = vadd.xlane.f32.xlu0 %v1414
      %v1416 = vpop.xlane.xlu0 %1415
      %v1417 = vmul.f32 %v1413, %v1404
      %v1418 = vmul.f32 %v1416, %v1404
      %v1419 = vadd.f32 %v1417, 1e-05
      %v1420 = vadd.f32 %v1418, 1e-05
      %v1421 = vrsqrt.pop %v1419
      %v1422 = vrsqrt.pop %v1420
      %v1423 = vmul.f32 %v1407, %v1421
      %v1424 = vmul.f32 %v1408, %v1422
      %v1425 = vlaneseq
      %v1426 = vshrl.u32 %v1425, 7
      %v1427 = vsub.s32 0, %v1426
      %v1428 = vrot.slane %v1396, %v1427
      %v1429 = vmul.f32 %v1423, %v1428
      %v1430 = vmul.f32 %v1424, %v1428
      %v1431 = vlaneseq
      %v1432 = vshrl.u32 %v1431, 7
      %v1433 = vsub.s32 0, %v1432
      %v1434 = vrot.slane %v1397, %v1433
      %v1435 = vadd.f32 %v1429, %v1434
      %v1436 = vadd.f32 %v1430, %v1434
      %v1437 = vld [vmem:[%s3] sm:$0xff]
      %v1438 = vld [vmem:[%s3 + $0x8] sm:$0xff]
      %v1439 = vld [vmem:[%s3 + $0x10] sm:$0xff]
      %v1440 = vld [vmem:[%s3 + $0x18] sm:$0xff]
      %v1441 = vld [vmem:[%s3 + $0x20] sm:$0x1]
      %v1442 = vlaneseq
      %v1443 = vshrl.u32 %v1442, 7
      %v1444 = vsub.s32 0, %v1443
      %v1445 = vrot.slane %v1441, %v1444
      %v1447 = vsel %vm340, %v1435, 0
      %v1450 = vsel %vm340, %v1436, 0
      %1452 = vmatprep.subr.mxu0 0.0
      %1453 = vmatpush1.msra.mxu0 0.0
      %1454 = vmatprep.subr.mxu0 0.0
      %1455 = vmatpush1.msra.mxu0 0.0
      %1456 = vmatprep.subr.mxu0 0.0
      %1457 = vmatpush1.msra.mxu0 0.0
      %1458 = vmatprep.subr.mxu0 0.0
      %1459 = vmatpush1.msra.mxu0 0.0
      %1460 = vmatprep.subr.mxu0 0.0
      %1461 = vmatpush1.msra.mxu0 0.0
      %1462 = vmatprep.subr.mxu0 0.0
      %1463 = vmatpush1.msra.mxu0 0.0
      %1464 = vmatprep.subr.mxu0 0.0
      %1465 = vmatpush1.msra.mxu0 0.0
      %1466 = vmatprep.subr.mxu0 0.0
      %1467 = vmatpush1.msra.mxu0 0.0
      %1468 = vmatprep.subr.mxu0 0.0
      %1469 = vmatpush1.msra.mxu0 0.0
      %1470 = vmatprep.subr.mxu0 0.0
      %1471 = vmatpush1.msra.mxu0 0.0
      %1472 = vmatprep.subr.mxu0 0.0
      %1473 = vmatpush1.msra.mxu0 0.0
      %1474 = vmatprep.subr.mxu0 0.0
      %1475 = vmatpush1.msra.mxu0 0.0
      %1476 = vmatprep.subr.mxu0 0.0
      %1477 = vmatpush1.msra.mxu0 %v1440
      %1478 = vmatprep.subr.mxu0 0.0
      %1479 = vmatpush1.msra.mxu0 %v1439
      %1480 = vmatprep.subr.mxu0 0.0
      %1481 = vmatpush1.msra.mxu0 %v1438
      %1482 = vmatprep.subr.mxu0 0.0
      %1483 = vmatpush1.msra.mxu0 %v1437
      %1484 = vmatprep.subr.mxu0 0.0
      %1485 = vmatpush2.msra.mxu0 0.0
      %1486 = vmatprep.subr.mxu0 0.0
      %1487 = vmatpush2.msra.mxu0 0.0
      %1488 = vmatprep.subr.mxu0 0.0
      %1489 = vmatpush2.msra.mxu0 0.0
      %1490 = vmatprep.subr.mxu0 0.0
      %1491 = vmatpush2.msra.mxu0 0.0
      %1492 = vmatprep.subr.mxu0 0.0
      %1493 = vmatpush2.msra.mxu0 0.0
      %1494 = vmatprep.subr.mxu0 0.0
      %1495 = vmatpush2.msra.mxu0 0.0
      %1496 = vmatprep.subr.mxu0 0.0
      %1497 = vmatpush2.msra.mxu0 0.0
      %1498 = vmatprep.subr.mxu0 0.0
      %1499 = vmatpush2.msra.mxu0 0.0
      %1500 = vmatprep.subr.mxu0 0.0
      %1501 = vmatpush2.msra.mxu0 0.0
      %1502 = vmatprep.subr.mxu0 0.0
      %1503 = vmatpush2.msra.mxu0 0.0
      %1504 = vmatprep.subr.mxu0 0.0
      %1505 = vmatpush2.msra.mxu0 0.0
      %1506 = vmatprep.subr.mxu0 0.0
      %1507 = vmatpush2.msra.mxu0 0.0
      %1508 = vmatprep.subr.mxu0 0.0
      %1509 = vmatpush2.msra.mxu0 0.0
      %1510 = vmatprep.subr.mxu0 0.0
      %1511 = vmatpush2.msra.mxu0 0.0
      %1512 = vmatprep.subr.mxu0 0.0
      %1513 = vmatpush2.msra.mxu0 0.0
      %1514 = vmatprep.subr.mxu0 0.0
      %1515 = vmatpush2.msra.mxu0 0.0
      %1516 = vmatprep.mubr.f32.mxu0 0.0
      %1517 = vmatmul.mubr.f32.gmra.mxu0 %v1447
      %v1518 = vpop.f32.mrf.mxu0
      %v1519 = vadd.f32 %v1445, %v1518
      %v1520 = vpop.f32.mrf.mxu0
      %1521 = vmatprep.mubr.f32.mxu0 0.0
      %1522 = vmatmul.mubr.f32.gmra.mxu0 %v1450
      %v1523 = vpop.f32.mrf.mxu0
      %v1524 = vadd.f32 %v1445, %v1523
      %v1525 = vpop.f32.mrf.mxu0
      %1526 = vdwg.mxu0
      %v1527 = vmax.f32 %v1519, 0.0
      %v1528 = vmax.f32 %v1524, 0.0
      %v1529 = vld [vmem:[%s2 + $0x98] sm:$0xff]
      %v1530 = vld [vmem:[%s2 + $0xa0] sm:$0xff]
      %v1531 = vld [vmem:[%s2 + $0xa8] sm:$0xff]
      %v1532 = vld [vmem:[%s2 + $0xb0] sm:$0xff]
      %v1533 = vld [vmem:[%s2 + $0xb8] sm:$0xff]
      %v1534 = vld [vmem:[%s2 + $0xc0] sm:$0xff]
      %v1535 = vld [vmem:[%s2 + $0xc8] sm:$0xff]
      %v1536 = vld [vmem:[%s2 + $0xd0] sm:$0xff]
      %v1537 = vld [vmem:[%s2 + $0xd8] sm:$0x1]
      %v1538 = vlaneseq
      %v1539 = vshrl.u32 %v1538, 7
      %v1540 = vsub.s32 0, %v1539
      %v1541 = vrot.slane %v1537, %v1540
      %vm1542 = vcmask 523264
      %v1544 = vsel %vm1542, %v1527, 0
      %v1547 = vsel %vm1542, %v1528, 0
      %1549 = vmatprep.subr.mxu0 0.0
      %1550 = vmatpush1.msra.mxu0 0.0
      %1551 = vmatprep.subr.mxu0 0.0
      %1552 = vmatpush1.msra.mxu0 0.0
      %1553 = vmatprep.subr.mxu0 0.0
      %1554 = vmatpush1.msra.mxu0 0.0
      %1555 = vmatprep.subr.mxu0 0.0
      %1556 = vmatpush1.msra.mxu0 0.0
      %1557 = vmatprep.subr.mxu0 0.0
      %1558 = vmatpush1.msra.mxu0 0.0
      %1559 = vmatprep.subr.mxu0 0.0
      %1560 = vmatpush1.msra.mxu0 0.0
      %1561 = vmatprep.subr.mxu0 0.0
      %1562 = vmatpush1.msra.mxu0 0.0
      %1563 = vmatprep.subr.mxu0 0.0
      %1564 = vmatpush1.msra.mxu0 0.0
      %1565 = vmatprep.subr.mxu0 0.0
      %1566 = vmatpush1.msra.mxu0 %v1536
      %1567 = vmatprep.subr.mxu0 0.0
      %1568 = vmatpush1.msra.mxu0 %v1535
      %1569 = vmatprep.subr.mxu0 0.0
      %1570 = vmatpush1.msra.mxu0 %v1534
      %1571 = vmatprep.subr.mxu0 0.0
      %1572 = vmatpush1.msra.mxu0 %v1533
      %1573 = vmatprep.subr.mxu0 0.0
      %1574 = vmatpush1.msra.mxu0 %v1532
      %1575 = vmatprep.subr.mxu0 0.0
      %1576 = vmatpush1.msra.mxu0 %v1531
      %1577 = vmatprep.subr.mxu0 0.0
      %1578 = vmatpush1.msra.mxu0 %v1530
      %1579 = vmatprep.subr.mxu0 0.0
      %1580 = vmatpush1.msra.mxu0 %v1529
      %1581 = vmatprep.subr.mxu0 0.0
      %1582 = vmatpush2.msra.mxu0 0.0
      %1583 = vmatprep.subr.mxu0 0.0
      %1584 = vmatpush2.msra.mxu0 0.0
      %1585 = vmatprep.subr.mxu0 0.0
      %1586 = vmatpush2.msra.mxu0 0.0
      %1587 = vmatprep.subr.mxu0 0.0
      %1588 = vmatpush2.msra.mxu0 0.0
      %1589 = vmatprep.subr.mxu0 0.0
      %1590 = vmatpush2.msra.mxu0 0.0
      %1591 = vmatprep.subr.mxu0 0.0
      %1592 = vmatpush2.msra.mxu0 0.0
      %1593 = vmatprep.subr.mxu0 0.0
      %1594 = vmatpush2.msra.mxu0 0.0
      %1595 = vmatprep.subr.mxu0 0.0
      %1596 = vmatpush2.msra.mxu0 0.0
      %1597 = vmatprep.subr.mxu0 0.0
      %1598 = vmatpush2.msra.mxu0 0.0
      %1599 = vmatprep.subr.mxu0 0.0
      %1600 = vmatpush2.msra.mxu0 0.0
      %1601 = vmatprep.subr.mxu0 0.0
      %1602 = vmatpush2.msra.mxu0 0.0
      %1603 = vmatprep.subr.mxu0 0.0
      %1604 = vmatpush2.msra.mxu0 0.0
      %1605 = vmatprep.subr.mxu0 0.0
      %1606 = vmatpush2.msra.mxu0 0.0
      %1607 = vmatprep.subr.mxu0 0.0
      %1608 = vmatpush2.msra.mxu0 0.0
      %1609 = vmatprep.subr.mxu0 0.0
      %1610 = vmatpush2.msra.mxu0 0.0
      %1611 = vmatprep.subr.mxu0 0.0
      %1612 = vmatpush2.msra.mxu0 0.0
      %1613 = vmatprep.mubr.f32.mxu0 0.0
      %1614 = vmatmul.mubr.f32.gmra.mxu0 %v1544
      %v1615 = vpop.f32.mrf.mxu0
      %v1616 = vadd.f32 %v1541, %v1615
      %v1617 = vpop.f32.mrf.mxu0
      %1618 = vmatprep.mubr.f32.mxu0 0.0
      %1619 = vmatmul.mubr.f32.gmra.mxu0 %v1547
      %v1620 = vpop.f32.mrf.mxu0
      %v1621 = vadd.f32 %v1541, %v1620
      %v1622 = vpop.f32.mrf.mxu0
      %1623 = vdwg.mxu0
      %v1624 = vadd.f32 %v1435, %v1616
      %v1625 = vadd.f32 %v1436, %v1621
      %v1626 = vld [vmem:[%s2 + $0xf0] sm:$0x1]
      %v1627 = vld [vmem:[%s2 + $0xf8] sm:$0x1]
      %v1628 = vsel %vm340, %v1624, 0.0
      %1629 = vadd.xlane.f32.xlu0 %v1628
      %v1630 = vpop.xlane.xlu0 %1629
      %v1631 = vsel %vm340, %v1625, 0.0
      %1632 = vadd.xlane.f32.xlu0 %v1631
      %v1633 = vpop.xlane.xlu0 %1632
      %v1634 = vmul.f32 %v1630, %v1404
      %v1635 = vmul.f32 %v1633, %v1404
      %v1636 = vsub.f32 %v1624, %v1634
      %v1637 = vsub.f32 %v1625, %v1635
      %v1638 = vmul.f32 %v1636, %v1636
      %v1639 = vmul.f32 %v1637, %v1637
      %v1640 = vsel %vm340, %v1638, 0.0
      %1641 = vadd.xlane.f32.xlu0 %v1640
      %v1642 = vpop.xlane.xlu0 %1641
      %v1643 = vsel %vm340, %v1639, 0.0
      %1644 = vadd.xlane.f32.xlu0 %v1643
      %v1645 = vpop.xlane.xlu0 %1644
      %v1646 = vmul.f32 %v1642, %v1404
      %v1647 = vmul.f32 %v1645, %v1404
      %v1648 = vadd.f32 %v1646, 1e-05
      %v1649 = vadd.f32 %v1647, 1e-05
      %v1650 = vrsqrt.pop %v1648
      %v1651 = vrsqrt.pop %v1649
      %v1652 = vmul.f32 %v1636, %v1650
      %v1653 = vmul.f32 %v1637, %v1651
      %v1654 = vlaneseq
      %v1655 = vshrl.u32 %v1654, 7
      %v1656 = vsub.s32 0, %v1655
      %v1657 = vrot.slane %v1626, %v1656
      %v1658 = vmul.f32 %v1652, %v1657
      %v1659 = vmul.f32 %v1653, %v1657
      %v1660 = vlaneseq
      %v1661 = vshrl.u32 %v1660, 7
      %v1662 = vsub.s32 0, %v1661
      %v1663 = vrot.slane %v1627, %v1662
      %v1664 = vadd.f32 %v1658, %v1663
      %v1665 = vadd.f32 %v1659, %v1663
      %v1666 = vld [vmem:[%s2 + $0x100] sm:$0xff]
      %v1667 = vld [vmem:[%s2 + $0x108] sm:$0xff]
      %v1668 = vld [vmem:[%s2 + $0x110] sm:$0xff]
      %v1669 = vld [vmem:[%s2 + $0x118] sm:$0xff]
      %v1671 = vsel %vm340, %v1664, 0
      %v1674 = vsel %vm340, %v1665, 0
      %1676 = vmatprep.subr.mxu0 0.0
      %1677 = vmatpush1.msra.mxu0 0.0
      %1678 = vmatprep.subr.mxu0 0.0
      %1679 = vmatpush1.msra.mxu0 0.0
      %1680 = vmatprep.subr.mxu0 0.0
      %1681 = vmatpush1.msra.mxu0 0.0
      %1682 = vmatprep.subr.mxu0 0.0
      %1683 = vmatpush1.msra.mxu0 0.0
      %1684 = vmatprep.subr.mxu0 0.0
      %1685 = vmatpush1.msra.mxu0 0.0
      %1686 = vmatprep.subr.mxu0 0.0
      %1687 = vmatpush1.msra.mxu0 0.0
      %1688 = vmatprep.subr.mxu0 0.0
      %1689 = vmatpush1.msra.mxu0 0.0
      %1690 = vmatprep.subr.mxu0 0.0
      %1691 = vmatpush1.msra.mxu0 0.0
      %1692 = vmatprep.subr.mxu0 0.0
      %1693 = vmatpush1.msra.mxu0 0.0
      %1694 = vmatprep.subr.mxu0 0.0
      %1695 = vmatpush1.msra.mxu0 0.0
      %1696 = vmatprep.subr.mxu0 0.0
      %1697 = vmatpush1.msra.mxu0 0.0
      %1698 = vmatprep.subr.mxu0 0.0
      %1699 = vmatpush1.msra.mxu0 0.0
      %1700 = vmatprep.subr.mxu0 0.0
      %1701 = vmatpush1.msra.mxu0 %v1669
      %1702 = vmatprep.subr.mxu0 0.0
      %1703 = vmatpush1.msra.mxu0 %v1668
      %1704 = vmatprep.subr.mxu0 0.0
      %1705 = vmatpush1.msra.mxu0 %v1667
      %1706 = vmatprep.subr.mxu0 0.0
      %1707 = vmatpush1.msra.mxu0 %v1666
      %1708 = vmatprep.subr.mxu0 0.0
      %1709 = vmatpush2.msra.mxu0 0.0
      %1710 = vmatprep.subr.mxu0 0.0
      %1711 = vmatpush2.msra.mxu0 0.0
      %1712 = vmatprep.subr.mxu0 0.0
      %1713 = vmatpush2.msra.mxu0 0.0
      %1714 = vmatprep.subr.mxu0 0.0
      %1715 = vmatpush2.msra.mxu0 0.0
      %1716 = vmatprep.subr.mxu0 0.0
      %1717 = vmatpush2.msra.mxu0 0.0
      %1718 = vmatprep.subr.mxu0 0.0
      %1719 = vmatpush2.msra.mxu0 0.0
      %1720 = vmatprep.subr.mxu0 0.0
      %1721 = vmatpush2.msra.mxu0 0.0
      %1722 = vmatprep.subr.mxu0 0.0
      %1723 = vmatpush2.msra.mxu0 0.0
      %1724 = vmatprep.subr.mxu0 0.0
      %1725 = vmatpush2.msra.mxu0 0.0
      %1726 = vmatprep.subr.mxu0 0.0
      %1727 = vmatpush2.msra.mxu0 0.0
      %1728 = vmatprep.subr.mxu0 0.0
      %1729 = vmatpush2.msra.mxu0 0.0
      %1730 = vmatprep.subr.mxu0 0.0
      %1731 = vmatpush2.msra.mxu0 0.0
      %1732 = vmatprep.subr.mxu0 0.0
      %1733 = vmatpush2.msra.mxu0 0.0
      %1734 = vmatprep.subr.mxu0 0.0
      %1735 = vmatpush2.msra.mxu0 0.0
      %1736 = vmatprep.subr.mxu0 0.0
      %1737 = vmatpush2.msra.mxu0 0.0
      %1738 = vmatprep.subr.mxu0 0.0
      %1739 = vmatpush2.msra.mxu0 0.0
      %1740 = vmatprep.mubr.f32.mxu0 0.0
      %1741 = vmatmul.mubr.f32.gmra.mxu0 %v1671
      %v1742 = vpop.f32.mrf.mxu0
      %v1743 = vadd.f32 0.0, %v1742
      %v1744 = vpop.f32.mrf.mxu0
      %1745 = vmatprep.mubr.f32.mxu0 0.0
      %1746 = vmatmul.mubr.f32.gmra.mxu0 %v1674
      %v1747 = vpop.f32.mrf.mxu0
      %v1748 = vadd.f32 0.0, %v1747
      %v1749 = vpop.f32.mrf.mxu0
      %1750 = vdwg.mxu0
      %v1751 = vld [vmem:[%s2 + $0x120] sm:$0xff]
      %v1752 = vld [vmem:[%s2 + $0x128] sm:$0xff]
      %v1753 = vld [vmem:[%s2 + $0x130] sm:$0xff]
      %v1754 = vld [vmem:[%s2 + $0x138] sm:$0xff]
      %1755 = vmatprep.subr.mxu0 0.0
      %1756 = vmatpush1.msra.mxu0 0.0
      %1757 = vmatprep.subr.mxu0 0.0
      %1758 = vmatpush1.msra.mxu0 0.0
      %1759 = vmatprep.subr.mxu0 0.0
      %1760 = vmatpush1.msra.mxu0 0.0
      %1761 = vmatprep.subr.mxu0 0.0
      %1762 = vmatpush1.msra.mxu0 0.0
      %1763 = vmatprep.subr.mxu0 0.0
      %1764 = vmatpush1.msra.mxu0 0.0
      %1765 = vmatprep.subr.mxu0 0.0
      %1766 = vmatpush1.msra.mxu0 0.0
      %1767 = vmatprep.subr.mxu0 0.0
      %1768 = vmatpush1.msra.mxu0 0.0
      %1769 = vmatprep.subr.mxu0 0.0
      %1770 = vmatpush1.msra.mxu0 0.0
      %1771 = vmatprep.subr.mxu0 0.0
      %1772 = vmatpush1.msra.mxu0 0.0
      %1773 = vmatprep.subr.mxu0 0.0
      %1774 = vmatpush1.msra.mxu0 0.0
      %1775 = vmatprep.subr.mxu0 0.0
      %1776 = vmatpush1.msra.mxu0 0.0
      %1777 = vmatprep.subr.mxu0 0.0
      %1778 = vmatpush1.msra.mxu0 0.0
      %1779 = vmatprep.subr.mxu0 0.0
      %1780 = vmatpush1.msra.mxu0 %v1754
      %1781 = vmatprep.subr.mxu0 0.0
      %1782 = vmatpush1.msra.mxu0 %v1753
      %1783 = vmatprep.subr.mxu0 0.0
      %1784 = vmatpush1.msra.mxu0 %v1752
      %1785 = vmatprep.subr.mxu0 0.0
      %1786 = vmatpush1.msra.mxu0 %v1751
      %1787 = vmatprep.subr.mxu0 0.0
      %1788 = vmatpush2.msra.mxu0 0.0
      %1789 = vmatprep.subr.mxu0 0.0
      %1790 = vmatpush2.msra.mxu0 0.0
      %1791 = vmatprep.subr.mxu0 0.0
      %1792 = vmatpush2.msra.mxu0 0.0
      %1793 = vmatprep.subr.mxu0 0.0
      %1794 = vmatpush2.msra.mxu0 0.0
      %1795 = vmatprep.subr.mxu0 0.0
      %1796 = vmatpush2.msra.mxu0 0.0
      %1797 = vmatprep.subr.mxu0 0.0
      %1798 = vmatpush2.msra.mxu0 0.0
      %1799 = vmatprep.subr.mxu0 0.0
      %1800 = vmatpush2.msra.mxu0 0.0
      %1801 = vmatprep.subr.mxu0 0.0
      %1802 = vmatpush2.msra.mxu0 0.0
      %1803 = vmatprep.subr.mxu0 0.0
      %1804 = vmatpush2.msra.mxu0 0.0
      %1805 = vmatprep.subr.mxu0 0.0
      %1806 = vmatpush2.msra.mxu0 0.0
      %1807 = vmatprep.subr.mxu0 0.0
      %1808 = vmatpush2.msra.mxu0 0.0
      %1809 = vmatprep.subr.mxu0 0.0
      %1810 = vmatpush2.msra.mxu0 0.0
      %1811 = vmatprep.subr.mxu0 0.0
      %1812 = vmatpush2.msra.mxu0 0.0
      %1813 = vmatprep.subr.mxu0 0.0
      %1814 = vmatpush2.msra.mxu0 0.0
      %1815 = vmatprep.subr.mxu0 0.0
      %1816 = vmatpush2.msra.mxu0 0.0
      %1817 = vmatprep.subr.mxu0 0.0
      %1818 = vmatpush2.msra.mxu0 0.0
      %1819 = vmatprep.mubr.f32.mxu0 0.0
      %1820 = vmatmul.mubr.f32.gmra.mxu0 %v1671
      %v1821 = vpop.f32.mrf.mxu0
      %v1822 = vadd.f32 0.0, %v1821
      %v1823 = vpop.f32.mrf.mxu0
      %1824 = vmatprep.mubr.f32.mxu0 0.0
      %1825 = vmatmul.mubr.f32.gmra.mxu0 %v1674
      %v1826 = vpop.f32.mrf.mxu0
      %v1827 = vadd.f32 0.0, %v1826
      %v1828 = vpop.f32.mrf.mxu0
      %1829 = vdwg.mxu0
      %1832 = vrot.lane.b32.xlu0 %v1743, 120
      %v1833 = vpop.permute.xlu0 %1832
      %1834 = vrot.lane.b32.xlu0 %v1748, 120
      %v1835 = vpop.permute.xlu0 %1834
      %1836 = vrot.lane.b32.xlu0 %v1743, 112
      %v1837 = vpop.permute.xlu0 %1836
      %1838 = vrot.lane.b32.xlu0 %v1748, 112
      %v1839 = vpop.permute.xlu0 %1838
      %1840 = vrot.lane.b32.xlu0 %v1743, 104
      %v1841 = vpop.permute.xlu0 %1840
      %1842 = vrot.lane.b32.xlu0 %v1748, 104
      %v1843 = vpop.permute.xlu0 %1842
      %1846 = vrot.lane.b32.xlu0 %v1822, 120
      %v1847 = vpop.permute.xlu0 %1846
      %1848 = vrot.lane.b32.xlu0 %v1827, 120
      %v1849 = vpop.permute.xlu0 %1848
      %1852 = vrot.lane.b32.xlu0 %v1822, 112
      %v1853 = vpop.permute.xlu0 %1852
      %1854 = vrot.lane.b32.xlu0 %v1827, 112
      %v1855 = vpop.permute.xlu0 %1854
      %1858 = vrot.lane.b32.xlu0 %v1822, 104
      %v1859 = vpop.permute.xlu0 %1858
      %1860 = vrot.lane.b32.xlu0 %v1827, 104
      %v1861 = vpop.permute.xlu0 %1860
      %v1864 = vsel %vm535, %v1743, 0
      %v1866 = vsel %vm535, %v1748, 0
      %1868 = vmatprep.subr.mxu0 0.0
      %1869 = vmatpush1.xpose.msra.mxu0 0.0
      %1870 = vmatprep.subr.mxu0 0.0
      %1871 = vmatpush1.xpose.msra.mxu0 0.0
      %1872 = vmatprep.subr.mxu0 0.0
      %1873 = vmatpush1.xpose.msra.mxu0 0.0
      %1874 = vmatprep.subr.mxu0 0.0
      %1875 = vmatpush1.xpose.msra.mxu0 0.0
      %1876 = vmatprep.subr.mxu0 0.0
      %1877 = vmatpush1.xpose.msra.mxu0 0.0
      %1878 = vmatprep.subr.mxu0 0.0
      %1879 = vmatpush1.xpose.msra.mxu0 0.0
      %1880 = vmatprep.subr.mxu0 0.0
      %1881 = vmatpush1.xpose.msra.mxu0 0.0
      %1882 = vmatprep.subr.mxu0 0.0
      %1883 = vmatpush1.xpose.msra.mxu0 0.0
      %1884 = vmatprep.subr.mxu0 0.0
      %1885 = vmatpush1.xpose.msra.mxu0 0.0
      %1886 = vmatprep.subr.mxu0 0.0
      %1887 = vmatpush1.xpose.msra.mxu0 0.0
      %1888 = vmatprep.subr.mxu0 0.0
      %1889 = vmatpush1.xpose.msra.mxu0 0.0
      %1890 = vmatprep.subr.mxu0 0.0
      %1891 = vmatpush1.xpose.msra.mxu0 0.0
      %1892 = vmatprep.subr.mxu0 0.0
      %1893 = vmatpush1.xpose.msra.mxu0 0.0
      %1894 = vmatprep.subr.mxu0 0.0
      %1895 = vmatpush1.xpose.msra.mxu0 0.0
      %1896 = vmatprep.subr.mxu0 0.0
      %1897 = vmatpush1.xpose.msra.mxu0 %v1866
      %1898 = vmatprep.subr.mxu0 0.0
      %1899 = vmatpush1.xpose.msra.mxu0 %v1864
      %1900 = vmatprep.subr.mxu0 0.0
      %1901 = vmatpush2.xpose.msra.mxu0 0.0
      %1902 = vmatprep.subr.mxu0 0.0
      %1903 = vmatpush2.xpose.msra.mxu0 0.0
      %1904 = vmatprep.subr.mxu0 0.0
      %1905 = vmatpush2.xpose.msra.mxu0 0.0
      %1906 = vmatprep.subr.mxu0 0.0
      %1907 = vmatpush2.xpose.msra.mxu0 0.0
      %1908 = vmatprep.subr.mxu0 0.0
      %1909 = vmatpush2.xpose.msra.mxu0 0.0
      %1910 = vmatprep.subr.mxu0 0.0
      %1911 = vmatpush2.xpose.msra.mxu0 0.0
      %1912 = vmatprep.subr.mxu0 0.0
      %1913 = vmatpush2.xpose.msra.mxu0 0.0
      %1914 = vmatprep.subr.mxu0 0.0
      %1915 = vmatpush2.xpose.msra.mxu0 0.0
      %1916 = vmatprep.subr.mxu0 0.0
      %1917 = vmatpush2.xpose.msra.mxu0 0.0
      %1918 = vmatprep.subr.mxu0 0.0
      %1919 = vmatpush2.xpose.msra.mxu0 0.0
      %1920 = vmatprep.subr.mxu0 0.0
      %1921 = vmatpush2.xpose.msra.mxu0 0.0
      %1922 = vmatprep.subr.mxu0 0.0
      %1923 = vmatpush2.xpose.msra.mxu0 0.0
      %1924 = vmatprep.subr.mxu0 0.0
      %1925 = vmatpush2.xpose.msra.mxu0 0.0
      %1926 = vmatprep.subr.mxu0 0.0
      %1927 = vmatpush2.xpose.msra.mxu0 0.0
      %1928 = vmatprep.subr.mxu0 0.0
      %1929 = vmatpush2.xpose.msra.mxu0 0.0
      %1930 = vmatprep.subr.mxu0 0.0
      %1931 = vmatpush2.xpose.msra.mxu0 0.0
      %1932 = vmatprep.mubr.f32.mxu0 0.0
      %1933 = vmatmul.mubr.f32.gmra.mxu0 %v1864
      %v1934 = vpop.f32.mrf.mxu0
      %v1935 = vadd.f32 0.0, %v1934
      %v1936 = vpop.f32.mrf.mxu0
      %1937 = vmatprep.mubr.f32.mxu0 0.0
      %1938 = vmatmul.mubr.f32.gmra.mxu0 %v1866
      %v1939 = vpop.f32.mrf.mxu0
      %v1940 = vadd.f32 0.0, %v1939
      %v1941 = vpop.f32.mrf.mxu0
      %1942 = vdwg.mxu0
      %v1943 = vsel %vm535, %v1833, 0
      %v1945 = vsel %vm535, %v1835, 0
      %1947 = vmatprep.subr.mxu0 0.0
      %1948 = vmatpush1.xpose.msra.mxu0 0.0
      %1949 = vmatprep.subr.mxu0 0.0
      %1950 = vmatpush1.xpose.msra.mxu0 0.0
      %1951 = vmatprep.subr.mxu0 0.0
      %1952 = vmatpush1.xpose.msra.mxu0 0.0
      %1953 = vmatprep.subr.mxu0 0.0
      %1954 = vmatpush1.xpose.msra.mxu0 0.0
      %1955 = vmatprep.subr.mxu0 0.0
      %1956 = vmatpush1.xpose.msra.mxu0 0.0
      %1957 = vmatprep.subr.mxu0 0.0
      %1958 = vmatpush1.xpose.msra.mxu0 0.0
      %1959 = vmatprep.subr.mxu0 0.0
      %1960 = vmatpush1.xpose.msra.mxu0 0.0
      %1961 = vmatprep.subr.mxu0 0.0
      %1962 = vmatpush1.xpose.msra.mxu0 0.0
      %1963 = vmatprep.subr.mxu0 0.0
      %1964 = vmatpush1.xpose.msra.mxu0 0.0
      %1965 = vmatprep.subr.mxu0 0.0
      %1966 = vmatpush1.xpose.msra.mxu0 0.0
      %1967 = vmatprep.subr.mxu0 0.0
      %1968 = vmatpush1.xpose.msra.mxu0 0.0
      %1969 = vmatprep.subr.mxu0 0.0
      %1970 = vmatpush1.xpose.msra.mxu0 0.0
      %1971 = vmatprep.subr.mxu0 0.0
      %1972 = vmatpush1.xpose.msra.mxu0 0.0
      %1973 = vmatprep.subr.mxu0 0.0
      %1974 = vmatpush1.xpose.msra.mxu0 0.0
      %1975 = vmatprep.subr.mxu0 0.0
      %1976 = vmatpush1.xpose.msra.mxu0 %v1945
      %1977 = vmatprep.subr.mxu0 0.0
      %1978 = vmatpush1.xpose.msra.mxu0 %v1943
      %1979 = vmatprep.subr.mxu0 0.0
      %1980 = vmatpush2.xpose.msra.mxu0 0.0
      %1981 = vmatprep.subr.mxu0 0.0
      %1982 = vmatpush2.xpose.msra.mxu0 0.0
      %1983 = vmatprep.subr.mxu0 0.0
      %1984 = vmatpush2.xpose.msra.mxu0 0.0
      %1985 = vmatprep.subr.mxu0 0.0
      %1986 = vmatpush2.xpose.msra.mxu0 0.0
      %1987 = vmatprep.subr.mxu0 0.0
      %1988 = vmatpush2.xpose.msra.mxu0 0.0
      %1989 = vmatprep.subr.mxu0 0.0
      %1990 = vmatpush2.xpose.msra.mxu0 0.0
      %1991 = vmatprep.subr.mxu0 0.0
      %1992 = vmatpush2.xpose.msra.mxu0 0.0
      %1993 = vmatprep.subr.mxu0 0.0
      %1994 = vmatpush2.xpose.msra.mxu0 0.0
      %1995 = vmatprep.subr.mxu0 0.0
      %1996 = vmatpush2.xpose.msra.mxu0 0.0
      %1997 = vmatprep.subr.mxu0 0.0
      %1998 = vmatpush2.xpose.msra.mxu0 0.0
      %1999 = vmatprep.subr.mxu0 0.0
      %2000 = vmatpush2.xpose.msra.mxu0 0.0
      %2001 = vmatprep.subr.mxu0 0.0
      %2002 = vmatpush2.xpose.msra.mxu0 0.0
      %2003 = vmatprep.subr.mxu0 0.0
      %2004 = vmatpush2.xpose.msra.mxu0 0.0
      %2005 = vmatprep.subr.mxu0 0.0
      %2006 = vmatpush2.xpose.msra.mxu0 0.0
      %2007 = vmatprep.subr.mxu0 0.0
      %2008 = vmatpush2.xpose.msra.mxu0 0.0
      %2009 = vmatprep.subr.mxu0 0.0
      %2010 = vmatpush2.xpose.msra.mxu0 0.0
      %2011 = vmatprep.mubr.f32.mxu0 0.0
      %2012 = vmatmul.mubr.f32.gmra.mxu0 %v1943
      %v2013 = vpop.f32.mrf.mxu0
      %v2014 = vadd.f32 0.0, %v2013
      %v2015 = vpop.f32.mrf.mxu0
      %2016 = vmatprep.mubr.f32.mxu0 0.0
      %2017 = vmatmul.mubr.f32.gmra.mxu0 %v1945
      %v2018 = vpop.f32.mrf.mxu0
      %v2019 = vadd.f32 0.0, %v2018
      %v2020 = vpop.f32.mrf.mxu0
      %2021 = vdwg.mxu0
      %v2022 = vsel %vm535, %v1837, 0
      %v2024 = vsel %vm535, %v1839, 0
      %2026 = vmatprep.subr.mxu0 0.0
      %2027 = vmatpush1.xpose.msra.mxu0 0.0
      %2028 = vmatprep.subr.mxu0 0.0
      %2029 = vmatpush1.xpose.msra.mxu0 0.0
      %2030 = vmatprep.subr.mxu0 0.0
      %2031 = vmatpush1.xpose.msra.mxu0 0.0
      %2032 = vmatprep.subr.mxu0 0.0
      %2033 = vmatpush1.xpose.msra.mxu0 0.0
      %2034 = vmatprep.subr.mxu0 0.0
      %2035 = vmatpush1.xpose.msra.mxu0 0.0
      %2036 = vmatprep.subr.mxu0 0.0
      %2037 = vmatpush1.xpose.msra.mxu0 0.0
      %2038 = vmatprep.subr.mxu0 0.0
      %2039 = vmatpush1.xpose.msra.mxu0 0.0
      %2040 = vmatprep.subr.mxu0 0.0
      %2041 = vmatpush1.xpose.msra.mxu0 0.0
      %2042 = vmatprep.subr.mxu0 0.0
      %2043 = vmatpush1.xpose.msra.mxu0 0.0
      %2044 = vmatprep.subr.mxu0 0.0
      %2045 = vmatpush1.xpose.msra.mxu0 0.0
      %2046 = vmatprep.subr.mxu0 0.0
      %2047 = vmatpush1.xpose.msra.mxu0 0.0
      %2048 = vmatprep.subr.mxu0 0.0
      %2049 = vmatpush1.xpose.msra.mxu0 0.0
      %2050 = vmatprep.subr.mxu0 0.0
      %2051 = vmatpush1.xpose.msra.mxu0 0.0
      %2052 = vmatprep.subr.mxu0 0.0
      %2053 = vmatpush1.xpose.msra.mxu0 0.0
      %2054 = vmatprep.subr.mxu0 0.0
      %2055 = vmatpush1.xpose.msra.mxu0 %v2024
      %2056 = vmatprep.subr.mxu0 0.0
      %2057 = vmatpush1.xpose.msra.mxu0 %v2022
      %2058 = vmatprep.subr.mxu0 0.0
      %2059 = vmatpush2.xpose.msra.mxu0 0.0
      %2060 = vmatprep.subr.mxu0 0.0
      %2061 = vmatpush2.xpose.msra.mxu0 0.0
      %2062 = vmatprep.subr.mxu0 0.0
      %2063 = vmatpush2.xpose.msra.mxu0 0.0
      %2064 = vmatprep.subr.mxu0 0.0
      %2065 = vmatpush2.xpose.msra.mxu0 0.0
      %2066 = vmatprep.subr.mxu0 0.0
      %2067 = vmatpush2.xpose.msra.mxu0 0.0
      %2068 = vmatprep.subr.mxu0 0.0
      %2069 = vmatpush2.xpose.msra.mxu0 0.0
      %2070 = vmatprep.subr.mxu0 0.0
      %2071 = vmatpush2.xpose.msra.mxu0 0.0
      %2072 = vmatprep.subr.mxu0 0.0
      %2073 = vmatpush2.xpose.msra.mxu0 0.0
      %2074 = vmatprep.subr.mxu0 0.0
      %2075 = vmatpush2.xpose.msra.mxu0 0.0
      %2076 = vmatprep.subr.mxu0 0.0
      %2077 = vmatpush2.xpose.msra.mxu0 0.0
      %2078 = vmatprep.subr.mxu0 0.0
      %2079 = vmatpush2.xpose.msra.mxu0 0.0
      %2080 = vmatprep.subr.mxu0 0.0
      %2081 = vmatpush2.xpose.msra.mxu0 0.0
      %2082 = vmatprep.subr.mxu0 0.0
      %2083 = vmatpush2.xpose.msra.mxu0 0.0
      %2084 = vmatprep.subr.mxu0 0.0
      %2085 = vmatpush2.xpose.msra.mxu0 0.0
      %2086 = vmatprep.subr.mxu0 0.0
      %2087 = vmatpush2.xpose.msra.mxu0 0.0
      %2088 = vmatprep.subr.mxu0 0.0
      %2089 = vmatpush2.xpose.msra.mxu0 0.0
      %2090 = vmatprep.mubr.f32.mxu0 0.0
      %2091 = vmatmul.mubr.f32.gmra.mxu0 %v2022
      %v2092 = vpop.f32.mrf.mxu0
      %v2093 = vadd.f32 0.0, %v2092
      %v2094 = vpop.f32.mrf.mxu0
      %2095 = vmatprep.mubr.f32.mxu0 0.0
      %2096 = vmatmul.mubr.f32.gmra.mxu0 %v2024
      %v2097 = vpop.f32.mrf.mxu0
      %v2098 = vadd.f32 0.0, %v2097
      %v2099 = vpop.f32.mrf.mxu0
      %2100 = vdwg.mxu0
      %v2101 = vsel %vm535, %v1841, 0
      %v2103 = vsel %vm535, %v1843, 0
      %2105 = vmatprep.subr.mxu0 0.0
      %2106 = vmatpush1.xpose.msra.mxu0 0.0
      %2107 = vmatprep.subr.mxu0 0.0
      %2108 = vmatpush1.xpose.msra.mxu0 0.0
      %2109 = vmatprep.subr.mxu0 0.0
      %2110 = vmatpush1.xpose.msra.mxu0 0.0
      %2111 = vmatprep.subr.mxu0 0.0
      %2112 = vmatpush1.xpose.msra.mxu0 0.0
      %2113 = vmatprep.subr.mxu0 0.0
      %2114 = vmatpush1.xpose.msra.mxu0 0.0
      %2115 = vmatprep.subr.mxu0 0.0
      %2116 = vmatpush1.xpose.msra.mxu0 0.0
      %2117 = vmatprep.subr.mxu0 0.0
      %2118 = vmatpush1.xpose.msra.mxu0 0.0
      %2119 = vmatprep.subr.mxu0 0.0
      %2120 = vmatpush1.xpose.msra.mxu0 0.0
      %2121 = vmatprep.subr.mxu0 0.0
      %2122 = vmatpush1.xpose.msra.mxu0 0.0
      %2123 = vmatprep.subr.mxu0 0.0
      %2124 = vmatpush1.xpose.msra.mxu0 0.0
      %2125 = vmatprep.subr.mxu0 0.0
      %2126 = vmatpush1.xpose.msra.mxu0 0.0
      %2127 = vmatprep.subr.mxu0 0.0
      %2128 = vmatpush1.xpose.msra.mxu0 0.0
      %2129 = vmatprep.subr.mxu0 0.0
      %2130 = vmatpush1.xpose.msra.mxu0 0.0
      %2131 = vmatprep.subr.mxu0 0.0
      %2132 = vmatpush1.xpose.msra.mxu0 0.0
      %2133 = vmatprep.subr.mxu0 0.0
      %2134 = vmatpush1.xpose.msra.mxu0 %v2103
      %2135 = vmatprep.subr.mxu0 0.0
      %2136 = vmatpush1.xpose.msra.mxu0 %v2101
      %2137 = vmatprep.subr.mxu0 0.0
      %2138 = vmatpush2.xpose.msra.mxu0 0.0
      %2139 = vmatprep.subr.mxu0 0.0
      %2140 = vmatpush2.xpose.msra.mxu0 0.0
      %2141 = vmatprep.subr.mxu0 0.0
      %2142 = vmatpush2.xpose.msra.mxu0 0.0
      %2143 = vmatprep.subr.mxu0 0.0
      %2144 = vmatpush2.xpose.msra.mxu0 0.0
      %2145 = vmatprep.subr.mxu0 0.0
      %2146 = vmatpush2.xpose.msra.mxu0 0.0
      %2147 = vmatprep.subr.mxu0 0.0
      %2148 = vmatpush2.xpose.msra.mxu0 0.0
      %2149 = vmatprep.subr.mxu0 0.0
      %2150 = vmatpush2.xpose.msra.mxu0 0.0
      %2151 = vmatprep.subr.mxu0 0.0
      %2152 = vmatpush2.xpose.msra.mxu0 0.0
      %2153 = vmatprep.subr.mxu0 0.0
      %2154 = vmatpush2.xpose.msra.mxu0 0.0
      %2155 = vmatprep.subr.mxu0 0.0
      %2156 = vmatpush2.xpose.msra.mxu0 0.0
      %2157 = vmatprep.subr.mxu0 0.0
      %2158 = vmatpush2.xpose.msra.mxu0 0.0
      %2159 = vmatprep.subr.mxu0 0.0
      %2160 = vmatpush2.xpose.msra.mxu0 0.0
      %2161 = vmatprep.subr.mxu0 0.0
      %2162 = vmatpush2.xpose.msra.mxu0 0.0
      %2163 = vmatprep.subr.mxu0 0.0
      %2164 = vmatpush2.xpose.msra.mxu0 0.0
      %2165 = vmatprep.subr.mxu0 0.0
      %2166 = vmatpush2.xpose.msra.mxu0 0.0
      %2167 = vmatprep.subr.mxu0 0.0
      %2168 = vmatpush2.xpose.msra.mxu0 0.0
      %2169 = vmatprep.mubr.f32.mxu0 0.0
      %2170 = vmatmul.mubr.f32.gmra.mxu0 %v2101
      %v2171 = vpop.f32.mrf.mxu0
      %v2172 = vadd.f32 0.0, %v2171
      %v2173 = vpop.f32.mrf.mxu0
      %2174 = vmatprep.mubr.f32.mxu0 0.0
      %2175 = vmatmul.mubr.f32.gmra.mxu0 %v2103
      %v2176 = vpop.f32.mrf.mxu0
      %v2177 = vadd.f32 0.0, %v2176
      %v2178 = vpop.f32.mrf.mxu0
      %2179 = vdwg.mxu0
      %v2180 = vmul.f32 %v1935, 0.35355338
      %v2181 = vmul.f32 %v1940, 0.35355338
      %v2182 = vmul.f32 %v2014, 0.35355338
      %v2183 = vmul.f32 %v2019, 0.35355338
      %v2184 = vmul.f32 %v2093, 0.35355338
      %v2185 = vmul.f32 %v2098, 0.35355338
      %v2186 = vmul.f32 %v2172, 0.35355338
      %v2187 = vmul.f32 %v2177, 0.35355338
      %v2188 = vsel %vm860, %v2180, -inf
      %2189 = vmax.xlane.f32.xlu0 %v2188
      %v2190 = vpop.xlane.xlu0 %2189
      %v2191 = vsel %vm860, %v2181, -inf
      %2192 = vmax.xlane.f32.xlu0 %v2191
      %v2193 = vpop.xlane.xlu0 %2192
      %v2194 = vsel %vm860, %v2182, -inf
      %2195 = vmax.xlane.f32.xlu0 %v2194
      %v2196 = vpop.xlane.xlu0 %2195
      %v2197 = vsel %vm860, %v2183, -inf
      %2198 = vmax.xlane.f32.xlu0 %v2197
      %v2199 = vpop.xlane.xlu0 %2198
      %v2200 = vsel %vm860, %v2184, -inf
      %2201 = vmax.xlane.f32.xlu0 %v2200
      %v2202 = vpop.xlane.xlu0 %2201
      %v2203 = vsel %vm860, %v2185, -inf
      %2204 = vmax.xlane.f32.xlu0 %v2203
      %v2205 = vpop.xlane.xlu0 %2204
      %v2206 = vsel %vm860, %v2186, -inf
      %2207 = vmax.xlane.f32.xlu0 %v2206
      %v2208 = vpop.xlane.xlu0 %2207
      %v2209 = vsel %vm860, %v2187, -inf
      %2210 = vmax.xlane.f32.xlu0 %v2209
      %v2211 = vpop.xlane.xlu0 %2210
      %v2212 = vsub.f32 %v2180, %v2190
      %v2213 = vsub.f32 %v2181, %v2193
      %v2214 = vsub.f32 %v2182, %v2196
      %v2215 = vsub.f32 %v2183, %v2199
      %v2216 = vsub.f32 %v2184, %v2202
      %v2217 = vsub.f32 %v2185, %v2205
      %v2218 = vsub.f32 %v2186, %v2208
      %v2219 = vsub.f32 %v2187, %v2211
      %v2220 = vmul.f32 %v2212, 1.442695
      %v2221 = vpow.pop %v2220
      %v2222 = vmul.f32 %v2213, 1.442695
      %v2223 = vpow.pop %v2222
      %v2224 = vmul.f32 %v2214, 1.442695
      %v2225 = vpow.pop %v2224
      %v2226 = vmul.f32 %v2215, 1.442695
      %v2227 = vpow.pop %v2226
      %v2228 = vmul.f32 %v2216, 1.442695
      %v2229 = vpow.pop %v2228
      %v2230 = vmul.f32 %v2217, 1.442695
      %v2231 = vpow.pop %v2230
      %v2232 = vmul.f32 %v2218, 1.442695
      %v2233 = vpow.pop %v2232
      %v2234 = vmul.f32 %v2219, 1.442695
      %v2235 = vpow.pop %v2234
      %v2236 = vsel %vm860, %v2221, 0.0
      %2237 = vadd.xlane.f32.xlu0 %v2236
      %v2238 = vpop.xlane.xlu0 %2237
      %v2239 = vsel %vm860, %v2223, 0.0
      %2240 = vadd.xlane.f32.xlu0 %v2239
      %v2241 = vpop.xlane.xlu0 %2240
      %v2242 = vsel %vm860, %v2225, 0.0
      %2243 = vadd.xlane.f32.xlu0 %v2242
      %v2244 = vpop.xlane.xlu0 %2243
      %v2245 = vsel %vm860, %v2227, 0.0
      %2246 = vadd.xlane.f32.xlu0 %v2245
      %v2247 = vpop.xlane.xlu0 %2246
      %v2248 = vsel %vm860, %v2229, 0.0
      %2249 = vadd.xlane.f32.xlu0 %v2248
      %v2250 = vpop.xlane.xlu0 %2249
      %v2251 = vsel %vm860, %v2231, 0.0
      %2252 = vadd.xlane.f32.xlu0 %v2251
      %v2253 = vpop.xlane.xlu0 %2252
      %v2254 = vsel %vm860, %v2233, 0.0
      %2255 = vadd.xlane.f32.xlu0 %v2254
      %v2256 = vpop.xlane.xlu0 %2255
      %v2257 = vsel %vm860, %v2235, 0.0
      %2258 = vadd.xlane.f32.xlu0 %v2257
      %v2259 = vpop.xlane.xlu0 %2258
      %v2260 = vrcp.pop %v2238
      %v2261 = vrcp.pop %v2241
      %v2262 = vrcp.pop %v2244
      %v2263 = vrcp.pop %v2247
      %v2264 = vrcp.pop %v2250
      %v2265 = vrcp.pop %v2253
      %v2266 = vrcp.pop %v2256
      %v2267 = vrcp.pop %v2259
      %v2268 = vmul.f32 %v2221, %v2260
      %v2269 = vmul.f32 %v2223, %v2261
      %v2270 = vmul.f32 %v2225, %v2262
      %v2271 = vmul.f32 %v2227, %v2263
      %v2272 = vmul.f32 %v2229, %v2264
      %v2273 = vmul.f32 %v2231, %v2265
      %v2274 = vmul.f32 %v2233, %v2266
      %v2275 = vmul.f32 %v2235, %v2267
      %v2277 = vsel %vm860, %v2268, 0
      %v2280 = vsel %vm860, %v2269, 0
      %2282 = vmatprep.subr.mxu0 0.0
      %2283 = vmatpush1.msra.mxu0 0.0
      %2284 = vmatprep.subr.mxu0 0.0
      %2285 = vmatpush1.msra.mxu0 0.0
      %2286 = vmatprep.subr.mxu0 0.0
      %2287 = vmatpush1.msra.mxu0 0.0
      %2288 = vmatprep.subr.mxu0 0.0
      %2289 = vmatpush1.msra.mxu0 0.0
      %2290 = vmatprep.subr.mxu0 0.0
      %2291 = vmatpush1.msra.mxu0 0.0
      %2292 = vmatprep.subr.mxu0 0.0
      %2293 = vmatpush1.msra.mxu0 0.0
      %2294 = vmatprep.subr.mxu0 0.0
      %2295 = vmatpush1.msra.mxu0 0.0
      %2296 = vmatprep.subr.mxu0 0.0
      %2297 = vmatpush1.msra.mxu0 0.0
      %2298 = vmatprep.subr.mxu0 0.0
      %2299 = vmatpush1.msra.mxu0 0.0
      %2300 = vmatprep.subr.mxu0 0.0
      %2301 = vmatpush1.msra.mxu0 0.0
      %2302 = vmatprep.subr.mxu0 0.0
      %2303 = vmatpush1.msra.mxu0 0.0
      %2304 = vmatprep.subr.mxu0 0.0
      %2305 = vmatpush1.msra.mxu0 0.0
      %2306 = vmatprep.subr.mxu0 0.0
      %2307 = vmatpush1.msra.mxu0 0.0
      %2308 = vmatprep.subr.mxu0 0.0
      %2309 = vmatpush1.msra.mxu0 0.0
      %2310 = vmatprep.subr.mxu0 0.0
      %2311 = vmatpush1.msra.mxu0 %v1827
      %2312 = vmatprep.subr.mxu0 0.0
      %2313 = vmatpush1.msra.mxu0 %v1822
      %2314 = vmatprep.subr.mxu0 0.0
      %2315 = vmatpush2.msra.mxu0 0.0
      %2316 = vmatprep.subr.mxu0 0.0
      %2317 = vmatpush2.msra.mxu0 0.0
      %2318 = vmatprep.subr.mxu0 0.0
      %2319 = vmatpush2.msra.mxu0 0.0
      %2320 = vmatprep.subr.mxu0 0.0
      %2321 = vmatpush2.msra.mxu0 0.0
      %2322 = vmatprep.subr.mxu0 0.0
      %2323 = vmatpush2.msra.mxu0 0.0
      %2324 = vmatprep.subr.mxu0 0.0
      %2325 = vmatpush2.msra.mxu0 0.0
      %2326 = vmatprep.subr.mxu0 0.0
      %2327 = vmatpush2.msra.mxu0 0.0
      %2328 = vmatprep.subr.mxu0 0.0
      %2329 = vmatpush2.msra.mxu0 0.0
      %2330 = vmatprep.subr.mxu0 0.0
      %2331 = vmatpush2.msra.mxu0 0.0
      %2332 = vmatprep.subr.mxu0 0.0
      %2333 = vmatpush2.msra.mxu0 0.0
      %2334 = vmatprep.subr.mxu0 0.0
      %2335 = vmatpush2.msra.mxu0 0.0
      %2336 = vmatprep.subr.mxu0 0.0
      %2337 = vmatpush2.msra.mxu0 0.0
      %2338 = vmatprep.subr.mxu0 0.0
      %2339 = vmatpush2.msra.mxu0 0.0
      %2340 = vmatprep.subr.mxu0 0.0
      %2341 = vmatpush2.msra.mxu0 0.0
      %2342 = vmatprep.subr.mxu0 0.0
      %2343 = vmatpush2.msra.mxu0 0.0
      %2344 = vmatprep.subr.mxu0 0.0
      %2345 = vmatpush2.msra.mxu0 0.0
      %2346 = vmatprep.mubr.f32.mxu0 0.0
      %2347 = vmatmul.mubr.f32.gmra.mxu0 %v2277
      %v2348 = vpop.f32.mrf.mxu0
      %v2349 = vadd.f32 0.0, %v2348
      %v2350 = vpop.f32.mrf.mxu0
      %2351 = vmatprep.mubr.f32.mxu0 0.0
      %2352 = vmatmul.mubr.f32.gmra.mxu0 %v2280
      %v2353 = vpop.f32.mrf.mxu0
      %v2354 = vadd.f32 0.0, %v2353
      %v2355 = vpop.f32.mrf.mxu0
      %2356 = vdwg.mxu0
      %v2358 = vsel %vm860, %v2270, 0
      %v2361 = vsel %vm860, %v2271, 0
      %2363 = vmatprep.subr.mxu0 0.0
      %2364 = vmatpush1.msra.mxu0 0.0
      %2365 = vmatprep.subr.mxu0 0.0
      %2366 = vmatpush1.msra.mxu0 0.0
      %2367 = vmatprep.subr.mxu0 0.0
      %2368 = vmatpush1.msra.mxu0 0.0
      %2369 = vmatprep.subr.mxu0 0.0
      %2370 = vmatpush1.msra.mxu0 0.0
      %2371 = vmatprep.subr.mxu0 0.0
      %2372 = vmatpush1.msra.mxu0 0.0
      %2373 = vmatprep.subr.mxu0 0.0
      %2374 = vmatpush1.msra.mxu0 0.0
      %2375 = vmatprep.subr.mxu0 0.0
      %2376 = vmatpush1.msra.mxu0 0.0
      %2377 = vmatprep.subr.mxu0 0.0
      %2378 = vmatpush1.msra.mxu0 0.0
      %2379 = vmatprep.subr.mxu0 0.0
      %2380 = vmatpush1.msra.mxu0 0.0
      %2381 = vmatprep.subr.mxu0 0.0
      %2382 = vmatpush1.msra.mxu0 0.0
      %2383 = vmatprep.subr.mxu0 0.0
      %2384 = vmatpush1.msra.mxu0 0.0
      %2385 = vmatprep.subr.mxu0 0.0
      %2386 = vmatpush1.msra.mxu0 0.0
      %2387 = vmatprep.subr.mxu0 0.0
      %2388 = vmatpush1.msra.mxu0 0.0
      %2389 = vmatprep.subr.mxu0 0.0
      %2390 = vmatpush1.msra.mxu0 0.0
      %2391 = vmatprep.subr.mxu0 0.0
      %2392 = vmatpush1.msra.mxu0 %v1849
      %2393 = vmatprep.subr.mxu0 0.0
      %2394 = vmatpush1.msra.mxu0 %v1847
      %2395 = vmatprep.subr.mxu0 0.0
      %2396 = vmatpush2.msra.mxu0 0.0
      %2397 = vmatprep.subr.mxu0 0.0
      %2398 = vmatpush2.msra.mxu0 0.0
      %2399 = vmatprep.subr.mxu0 0.0
      %2400 = vmatpush2.msra.mxu0 0.0
      %2401 = vmatprep.subr.mxu0 0.0
      %2402 = vmatpush2.msra.mxu0 0.0
      %2403 = vmatprep.subr.mxu0 0.0
      %2404 = vmatpush2.msra.mxu0 0.0
      %2405 = vmatprep.subr.mxu0 0.0
      %2406 = vmatpush2.msra.mxu0 0.0
      %2407 = vmatprep.subr.mxu0 0.0
      %2408 = vmatpush2.msra.mxu0 0.0
      %2409 = vmatprep.subr.mxu0 0.0
      %2410 = vmatpush2.msra.mxu0 0.0
      %2411 = vmatprep.subr.mxu0 0.0
      %2412 = vmatpush2.msra.mxu0 0.0
      %2413 = vmatprep.subr.mxu0 0.0
      %2414 = vmatpush2.msra.mxu0 0.0
      %2415 = vmatprep.subr.mxu0 0.0
      %2416 = vmatpush2.msra.mxu0 0.0
      %2417 = vmatprep.subr.mxu0 0.0
      %2418 = vmatpush2.msra.mxu0 0.0
      %2419 = vmatprep.subr.mxu0 0.0
      %2420 = vmatpush2.msra.mxu0 0.0
      %2421 = vmatprep.subr.mxu0 0.0
      %2422 = vmatpush2.msra.mxu0 0.0
      %2423 = vmatprep.subr.mxu0 0.0
      %2424 = vmatpush2.msra.mxu0 0.0
      %2425 = vmatprep.subr.mxu0 0.0
      %2426 = vmatpush2.msra.mxu0 0.0
      %2427 = vmatprep.mubr.f32.mxu0 0.0
      %2428 = vmatmul.mubr.f32.gmra.mxu0 %v2358
      %v2429 = vpop.f32.mrf.mxu0
      %v2430 = vadd.f32 0.0, %v2429
      %v2431 = vpop.f32.mrf.mxu0
      %2432 = vmatprep.mubr.f32.mxu0 0.0
      %2433 = vmatmul.mubr.f32.gmra.mxu0 %v2361
      %v2434 = vpop.f32.mrf.mxu0
      %v2435 = vadd.f32 0.0, %v2434
      %v2436 = vpop.f32.mrf.mxu0
      %2437 = vdwg.mxu0
      %v2439 = vsel %vm860, %v2272, 0
      %v2442 = vsel %vm860, %v2273, 0
      %2444 = vmatprep.subr.mxu0 0.0
      %2445 = vmatpush1.msra.mxu0 0.0
      %2446 = vmatprep.subr.mxu0 0.0
      %2447 = vmatpush1.msra.mxu0 0.0
      %2448 = vmatprep.subr.mxu0 0.0
      %2449 = vmatpush1.msra.mxu0 0.0
      %2450 = vmatprep.subr.mxu0 0.0
      %2451 = vmatpush1.msra.mxu0 0.0
      %2452 = vmatprep.subr.mxu0 0.0
      %2453 = vmatpush1.msra.mxu0 0.0
      %2454 = vmatprep.subr.mxu0 0.0
      %2455 = vmatpush1.msra.mxu0 0.0
      %2456 = vmatprep.subr.mxu0 0.0
      %2457 = vmatpush1.msra.mxu0 0.0
      %2458 = vmatprep.subr.mxu0 0.0
      %2459 = vmatpush1.msra.mxu0 0.0
      %2460 = vmatprep.subr.mxu0 0.0
      %2461 = vmatpush1.msra.mxu0 0.0
      %2462 = vmatprep.subr.mxu0 0.0
      %2463 = vmatpush1.msra.mxu0 0.0
      %2464 = vmatprep.subr.mxu0 0.0
      %2465 = vmatpush1.msra.mxu0 0.0
      %2466 = vmatprep.subr.mxu0 0.0
      %2467 = vmatpush1.msra.mxu0 0.0
      %2468 = vmatprep.subr.mxu0 0.0
      %2469 = vmatpush1.msra.mxu0 0.0
      %2470 = vmatprep.subr.mxu0 0.0
      %2471 = vmatpush1.msra.mxu0 0.0
      %2472 = vmatprep.subr.mxu0 0.0
      %2473 = vmatpush1.msra.mxu0 %v1855
      %2474 = vmatprep.subr.mxu0 0.0
      %2475 = vmatpush1.msra.mxu0 %v1853
      %2476 = vmatprep.subr.mxu0 0.0
      %2477 = vmatpush2.msra.mxu0 0.0
      %2478 = vmatprep.subr.mxu0 0.0
      %2479 = vmatpush2.msra.mxu0 0.0
      %2480 = vmatprep.subr.mxu0 0.0
      %2481 = vmatpush2.msra.mxu0 0.0
      %2482 = vmatprep.subr.mxu0 0.0
      %2483 = vmatpush2.msra.mxu0 0.0
      %2484 = vmatprep.subr.mxu0 0.0
      %2485 = vmatpush2.msra.mxu0 0.0
      %2486 = vmatprep.subr.mxu0 0.0
      %2487 = vmatpush2.msra.mxu0 0.0
      %2488 = vmatprep.subr.mxu0 0.0
      %2489 = vmatpush2.msra.mxu0 0.0
      %2490 = vmatprep.subr.mxu0 0.0
      %2491 = vmatpush2.msra.mxu0 0.0
      %2492 = vmatprep.subr.mxu0 0.0
      %2493 = vmatpush2.msra.mxu0 0.0
      %2494 = vmatprep.subr.mxu0 0.0
      %2495 = vmatpush2.msra.mxu0 0.0
      %2496 = vmatprep.subr.mxu0 0.0
      %2497 = vmatpush2.msra.mxu0 0.0
      %2498 = vmatprep.subr.mxu0 0.0
      %2499 = vmatpush2.msra.mxu0 0.0
      %2500 = vmatprep.subr.mxu0 0.0
      %2501 = vmatpush2.msra.mxu0 0.0
      %2502 = vmatprep.subr.mxu0 0.0
      %2503 = vmatpush2.msra.mxu0 0.0
      %2504 = vmatprep.subr.mxu0 0.0
      %2505 = vmatpush2.msra.mxu0 0.0
      %2506 = vmatprep.subr.mxu0 0.0
      %2507 = vmatpush2.msra.mxu0 0.0
      %2508 = vmatprep.mubr.f32.mxu0 0.0
      %2509 = vmatmul.mubr.f32.gmra.mxu0 %v2439
      %v2510 = vpop.f32.mrf.mxu0
      %v2511 = vadd.f32 0.0, %v2510
      %v2512 = vpop.f32.mrf.mxu0
      %2513 = vmatprep.mubr.f32.mxu0 0.0
      %2514 = vmatmul.mubr.f32.gmra.mxu0 %v2442
      %v2515 = vpop.f32.mrf.mxu0
      %v2516 = vadd.f32 0.0, %v2515
      %v2517 = vpop.f32.mrf.mxu0
      %2518 = vdwg.mxu0
      %v2520 = vsel %vm860, %v2274, 0
      %v2523 = vsel %vm860, %v2275, 0
      %2525 = vmatprep.subr.mxu0 0.0
      %2526 = vmatpush1.msra.mxu0 0.0
      %2527 = vmatprep.subr.mxu0 0.0
      %2528 = vmatpush1.msra.mxu0 0.0
      %2529 = vmatprep.subr.mxu0 0.0
      %2530 = vmatpush1.msra.mxu0 0.0
      %2531 = vmatprep.subr.mxu0 0.0
      %2532 = vmatpush1.msra.mxu0 0.0
      %2533 = vmatprep.subr.mxu0 0.0
      %2534 = vmatpush1.msra.mxu0 0.0
      %2535 = vmatprep.subr.mxu0 0.0
      %2536 = vmatpush1.msra.mxu0 0.0
      %2537 = vmatprep.subr.mxu0 0.0
      %2538 = vmatpush1.msra.mxu0 0.0
      %2539 = vmatprep.subr.mxu0 0.0
      %2540 = vmatpush1.msra.mxu0 0.0
      %2541 = vmatprep.subr.mxu0 0.0
      %2542 = vmatpush1.msra.mxu0 0.0
      %2543 = vmatprep.subr.mxu0 0.0
      %2544 = vmatpush1.msra.mxu0 0.0
      %2545 = vmatprep.subr.mxu0 0.0
      %2546 = vmatpush1.msra.mxu0 0.0
      %2547 = vmatprep.subr.mxu0 0.0
      %2548 = vmatpush1.msra.mxu0 0.0
      %2549 = vmatprep.subr.mxu0 0.0
      %2550 = vmatpush1.msra.mxu0 0.0
      %2551 = vmatprep.subr.mxu0 0.0
      %2552 = vmatpush1.msra.mxu0 0.0
      %2553 = vmatprep.subr.mxu0 0.0
      %2554 = vmatpush1.msra.mxu0 %v1861
      %2555 = vmatprep.subr.mxu0 0.0
      %2556 = vmatpush1.msra.mxu0 %v1859
      %2557 = vmatprep.subr.mxu0 0.0
      %2558 = vmatpush2.msra.mxu0 0.0
      %2559 = vmatprep.subr.mxu0 0.0
      %2560 = vmatpush2.msra.mxu0 0.0
      %2561 = vmatprep.subr.mxu0 0.0
      %2562 = vmatpush2.msra.mxu0 0.0
      %2563 = vmatprep.subr.mxu0 0.0
      %2564 = vmatpush2.msra.mxu0 0.0
      %2565 = vmatprep.subr.mxu0 0.0
      %2566 = vmatpush2.msra.mxu0 0.0
      %2567 = vmatprep.subr.mxu0 0.0
      %2568 = vmatpush2.msra.mxu0 0.0
      %2569 = vmatprep.subr.mxu0 0.0
      %2570 = vmatpush2.msra.mxu0 0.0
      %2571 = vmatprep.subr.mxu0 0.0
      %2572 = vmatpush2.msra.mxu0 0.0
      %2573 = vmatprep.subr.mxu0 0.0
      %2574 = vmatpush2.msra.mxu0 0.0
      %2575 = vmatprep.subr.mxu0 0.0
      %2576 = vmatpush2.msra.mxu0 0.0
      %2577 = vmatprep.subr.mxu0 0.0
      %2578 = vmatpush2.msra.mxu0 0.0
      %2579 = vmatprep.subr.mxu0 0.0
      %2580 = vmatpush2.msra.mxu0 0.0
      %2581 = vmatprep.subr.mxu0 0.0
      %2582 = vmatpush2.msra.mxu0 0.0
      %2583 = vmatprep.subr.mxu0 0.0
      %2584 = vmatpush2.msra.mxu0 0.0
      %2585 = vmatprep.subr.mxu0 0.0
      %2586 = vmatpush2.msra.mxu0 0.0
      %2587 = vmatprep.subr.mxu0 0.0
      %2588 = vmatpush2.msra.mxu0 0.0
      %2589 = vmatprep.mubr.f32.mxu0 0.0
      %2590 = vmatmul.mubr.f32.gmra.mxu0 %v2520
      %v2591 = vpop.f32.mrf.mxu0
      %v2592 = vadd.f32 0.0, %v2591
      %v2593 = vpop.f32.mrf.mxu0
      %2594 = vmatprep.mubr.f32.mxu0 0.0
      %2595 = vmatmul.mubr.f32.gmra.mxu0 %v2523
      %v2596 = vpop.f32.mrf.mxu0
      %v2597 = vadd.f32 0.0, %v2596
      %v2598 = vpop.f32.mrf.mxu0
      %2599 = vdwg.mxu0
      %2602 = vrot.lane.b32.xlu0 %v2430, 8
      %v2603 = vpop.permute.xlu0 %2602
      %2604 = vrot.lane.b32.xlu0 %v2435, 8
      %v2605 = vpop.permute.xlu0 %2604
      %2610 = vrot.lane.b32.xlu0 %v2511, 16
      %v2611 = vpop.permute.xlu0 %2610
      %2612 = vrot.lane.b32.xlu0 %v2516, 16
      %v2613 = vpop.permute.xlu0 %2612
      %2618 = vrot.lane.b32.xlu0 %v2592, 24
      %v2619 = vpop.permute.xlu0 %2618
      %2620 = vrot.lane.b32.xlu0 %v2597, 24
      %v2621 = vpop.permute.xlu0 %2620
      %v2624 = vsel %vm535, %v2349, %v2603
      %v2625 = vsel %vm535, %v2354, %v2605
      %v2626 = vsel %vm860, %v2624, %v2611
      %v2627 = vsel %vm860, %v2625, %v2613
      %v2628 = vsel %vm1301, %v2626, %v2619
      %v2629 = vsel %vm1301, %v2627, %v2621
      %v2630 = vld [vmem:[%s2 + $0x140] sm:$0xff]
      %v2631 = vld [vmem:[%s2 + $0x148] sm:$0xff]
      %v2632 = vld [vmem:[%s2 + $0x150] sm:$0xff]
      %v2633 = vld [vmem:[%s2 + $0x158] sm:$0xff]
      %v2634 = vld [vmem:[%s2 + $0x160] sm:$0x1]
      %v2635 = vlaneseq
      %v2636 = vshrl.u32 %v2635, 7
      %v2637 = vsub.s32 0, %v2636
      %v2638 = vrot.slane %v2634, %v2637
      %v2640 = vsel %vm340, %v2628, 0
      %v2643 = vsel %vm340, %v2629, 0
      %2645 = vmatprep.subr.mxu0 0.0
      %2646 = vmatpush1.msra.mxu0 0.0
      %2647 = vmatprep.subr.mxu0 0.0
      %2648 = vmatpush1.msra.mxu0 0.0
      %2649 = vmatprep.subr.mxu0 0.0
      %2650 = vmatpush1.msra.mxu0 0.0
      %2651 = vmatprep.subr.mxu0 0.0
      %2652 = vmatpush1.msra.mxu0 0.0
      %2653 = vmatprep.subr.mxu0 0.0
      %2654 = vmatpush1.msra.mxu0 0.0
      %2655 = vmatprep.subr.mxu0 0.0
      %2656 = vmatpush1.msra.mxu0 0.0
      %2657 = vmatprep.subr.mxu0 0.0
      %2658 = vmatpush1.msra.mxu0 0.0
      %2659 = vmatprep.subr.mxu0 0.0
      %2660 = vmatpush1.msra.mxu0 0.0
      %2661 = vmatprep.subr.mxu0 0.0
      %2662 = vmatpush1.msra.mxu0 0.0
      %2663 = vmatprep.subr.mxu0 0.0
      %2664 = vmatpush1.msra.mxu0 0.0
      %2665 = vmatprep.subr.mxu0 0.0
      %2666 = vmatpush1.msra.mxu0 0.0
      %2667 = vmatprep.subr.mxu0 0.0
      %2668 = vmatpush1.msra.mxu0 0.0
      %2669 = vmatprep.subr.mxu0 0.0
      %2670 = vmatpush1.msra.mxu0 %v2633
      %2671 = vmatprep.subr.mxu0 0.0
      %2672 = vmatpush1.msra.mxu0 %v2632
      %2673 = vmatprep.subr.mxu0 0.0
      %2674 = vmatpush1.msra.mxu0 %v2631
      %2675 = vmatprep.subr.mxu0 0.0
      %2676 = vmatpush1.msra.mxu0 %v2630
      %2677 = vmatprep.subr.mxu0 0.0
      %2678 = vmatpush2.msra.mxu0 0.0
      %2679 = vmatprep.subr.mxu0 0.0
      %2680 = vmatpush2.msra.mxu0 0.0
      %2681 = vmatprep.subr.mxu0 0.0
      %2682 = vmatpush2.msra.mxu0 0.0
      %2683 = vmatprep.subr.mxu0 0.0
      %2684 = vmatpush2.msra.mxu0 0.0
      %2685 = vmatprep.subr.mxu0 0.0
      %2686 = vmatpush2.msra.mxu0 0.0
      %2687 = vmatprep.subr.mxu0 0.0
      %2688 = vmatpush2.msra.mxu0 0.0
      %2689 = vmatprep.subr.mxu0 0.0
      %2690 = vmatpush2.msra.mxu0 0.0
      %2691 = vmatprep.subr.mxu0 0.0
      %2692 = vmatpush2.msra.mxu0 0.0
      %2693 = vmatprep.subr.mxu0 0.0
      %2694 = vmatpush2.msra.mxu0 0.0
      %2695 = vmatprep.subr.mxu0 0.0
      %2696 = vmatpush2.msra.mxu0 0.0
      %2697 = vmatprep.subr.mxu0 0.0
      %2698 = vmatpush2.msra.mxu0 0.0
      %2699 = vmatprep.subr.mxu0 0.0
      %2700 = vmatpush2.msra.mxu0 0.0
      %2701 = vmatprep.subr.mxu0 0.0
      %2702 = vmatpush2.msra.mxu0 0.0
      %2703 = vmatprep.subr.mxu0 0.0
      %2704 = vmatpush2.msra.mxu0 0.0
      %2705 = vmatprep.subr.mxu0 0.0
      %2706 = vmatpush2.msra.mxu0 0.0
      %2707 = vmatprep.subr.mxu0 0.0
      %2708 = vmatpush2.msra.mxu0 0.0
      %2709 = vmatprep.mubr.f32.mxu0 0.0
      %2710 = vmatmul.mubr.f32.gmra.mxu0 %v2640
      %v2711 = vpop.f32.mrf.mxu0
      %v2712 = vadd.f32 %v2638, %v2711
      %v2713 = vpop.f32.mrf.mxu0
      %2714 = vmatprep.mubr.f32.mxu0 0.0
      %2715 = vmatmul.mubr.f32.gmra.mxu0 %v2643
      %v2716 = vpop.f32.mrf.mxu0
      %v2717 = vadd.f32 %v2638, %v2716
      %v2718 = vpop.f32.mrf.mxu0
      %2719 = vdwg.mxu0
      %v2720 = vadd.f32 %v1664, %v2712
      %v2721 = vadd.f32 %v1665, %v2717
      %v2722 = vld [vmem:[%s2 + $0x1b0] sm:$0x1]
      %v2723 = vld [vmem:[%s2 + $0x1b8] sm:$0x1]
      %v2724 = vsel %vm340, %v2720, 0.0
      %2725 = vadd.xlane.f32.xlu0 %v2724
      %v2726 = vpop.xlane.xlu0 %2725
      %v2727 = vsel %vm340, %v2721, 0.0
      %2728 = vadd.xlane.f32.xlu0 %v2727
      %v2729 = vpop.xlane.xlu0 %2728
      %v2730 = vmul.f32 %v2726, %v1404
      %v2731 = vmul.f32 %v2729, %v1404
      %v2732 = vsub.f32 %v2720, %v2730
      %v2733 = vsub.f32 %v2721, %v2731
      %v2734 = vmul.f32 %v2732, %v2732
      %v2735 = vmul.f32 %v2733, %v2733
      %v2736 = vsel %vm340, %v2734, 0.0
      %2737 = vadd.xlane.f32.xlu0 %v2736
      %v2738 = vpop.xlane.xlu0 %2737
      %v2739 = vsel %vm340, %v2735, 0.0
      %2740 = vadd.xlane.f32.xlu0 %v2739
      %v2741 = vpop.xlane.xlu0 %2740
      %v2742 = vmul.f32 %v2738, %v1404
      %v2743 = vmul.f32 %v2741, %v1404
      %v2744 = vadd.f32 %v2742, 1e-05
      %v2745 = vadd.f32 %v2743, 1e-05
      %v2746 = vrsqrt.pop %v2744
      %v2747 = vrsqrt.pop %v2745
      %v2748 = vmul.f32 %v2732, %v2746
      %v2749 = vmul.f32 %v2733, %v2747
      %v2750 = vlaneseq
      %v2751 = vshrl.u32 %v2750, 7
      %v2752 = vsub.s32 0, %v2751
      %v2753 = vrot.slane %v2722, %v2752
      %v2754 = vmul.f32 %v2748, %v2753
      %v2755 = vmul.f32 %v2749, %v2753
      %v2756 = vlaneseq
      %v2757 = vshrl.u32 %v2756, 7
      %v2758 = vsub.s32 0, %v2757
      %v2759 = vrot.slane %v2723, %v2758
      %v2760 = vadd.f32 %v2754, %v2759
      %v2761 = vadd.f32 %v2755, %v2759
      %v2762 = vld [vmem:[%s3 + $0x28] sm:$0xff]
      %v2763 = vld [vmem:[%s3 + $0x30] sm:$0xff]
      %v2764 = vld [vmem:[%s3 + $0x38] sm:$0xff]
      %v2765 = vld [vmem:[%s3 + $0x40] sm:$0xff]
      %v2766 = vld [vmem:[%s3 + $0x48] sm:$0x1]
      %v2767 = vlaneseq
      %v2768 = vshrl.u32 %v2767, 7
      %v2769 = vsub.s32 0, %v2768
      %v2770 = vrot.slane %v2766, %v2769
      %v2772 = vsel %vm340, %v2760, 0
      %v2775 = vsel %vm340, %v2761, 0
      %2777 = vmatprep.subr.mxu0 0.0
      %2778 = vmatpush1.msra.mxu0 0.0
      %2779 = vmatprep.subr.mxu0 0.0
      %2780 = vmatpush1.msra.mxu0 0.0
      %2781 = vmatprep.subr.mxu0 0.0
      %2782 = vmatpush1.msra.mxu0 0.0
      %2783 = vmatprep.subr.mxu0 0.0
      %2784 = vmatpush1.msra.mxu0 0.0
      %2785 = vmatprep.subr.mxu0 0.0
      %2786 = vmatpush1.msra.mxu0 0.0
      %2787 = vmatprep.subr.mxu0 0.0
      %2788 = vmatpush1.msra.mxu0 0.0
      %2789 = vmatprep.subr.mxu0 0.0
      %2790 = vmatpush1.msra.mxu0 0.0
      %2791 = vmatprep.subr.mxu0 0.0
      %2792 = vmatpush1.msra.mxu0 0.0
      %2793 = vmatprep.subr.mxu0 0.0
      %2794 = vmatpush1.msra.mxu0 0.0
      %2795 = vmatprep.subr.mxu0 0.0
      %2796 = vmatpush1.msra.mxu0 0.0
      %2797 = vmatprep.subr.mxu0 0.0
      %2798 = vmatpush1.msra.mxu0 0.0
      %2799 = vmatprep.subr.mxu0 0.0
      %2800 = vmatpush1.msra.mxu0 0.0
      %2801 = vmatprep.subr.mxu0 0.0
      %2802 = vmatpush1.msra.mxu0 %v2765
      %2803 = vmatprep.subr.mxu0 0.0
      %2804 = vmatpush1.msra.mxu0 %v2764
      %2805 = vmatprep.subr.mxu0 0.0
      %2806 = vmatpush1.msra.mxu0 %v2763
      %2807 = vmatprep.subr.mxu0 0.0
      %2808 = vmatpush1.msra.mxu0 %v2762
      %2809 = vmatprep.subr.mxu0 0.0
      %2810 = vmatpush2.msra.mxu0 0.0
      %2811 = vmatprep.subr.mxu0 0.0
      %2812 = vmatpush2.msra.mxu0 0.0
      %2813 = vmatprep.subr.mxu0 0.0
      %2814 = vmatpush2.msra.mxu0 0.0
      %2815 = vmatprep.subr.mxu0 0.0
      %2816 = vmatpush2.msra.mxu0 0.0
      %2817 = vmatprep.subr.mxu0 0.0
      %2818 = vmatpush2.msra.mxu0 0.0
      %2819 = vmatprep.subr.mxu0 0.0
      %2820 = vmatpush2.msra.mxu0 0.0
      %2821 = vmatprep.subr.mxu0 0.0
      %2822 = vmatpush2.msra.mxu0 0.0
      %2823 = vmatprep.subr.mxu0 0.0
      %2824 = vmatpush2.msra.mxu0 0.0
      %2825 = vmatprep.subr.mxu0 0.0
      %2826 = vmatpush2.msra.mxu0 0.0
      %2827 = vmatprep.subr.mxu0 0.0
      %2828 = vmatpush2.msra.mxu0 0.0
      %2829 = vmatprep.subr.mxu0 0.0
      %2830 = vmatpush2.msra.mxu0 0.0
      %2831 = vmatprep.subr.mxu0 0.0
      %2832 = vmatpush2.msra.mxu0 0.0
      %2833 = vmatprep.subr.mxu0 0.0
      %2834 = vmatpush2.msra.mxu0 0.0
      %2835 = vmatprep.subr.mxu0 0.0
      %2836 = vmatpush2.msra.mxu0 0.0
      %2837 = vmatprep.subr.mxu0 0.0
      %2838 = vmatpush2.msra.mxu0 0.0
      %2839 = vmatprep.subr.mxu0 0.0
      %2840 = vmatpush2.msra.mxu0 0.0
      %2841 = vmatprep.mubr.f32.mxu0 0.0
      %2842 = vmatmul.mubr.f32.gmra.mxu0 %v2772
      %v2843 = vpop.f32.mrf.mxu0
      %v2844 = vadd.f32 %v2770, %v2843
      %v2845 = vpop.f32.mrf.mxu0
      %2846 = vmatprep.mubr.f32.mxu0 0.0
      %2847 = vmatmul.mubr.f32.gmra.mxu0 %v2775
      %v2848 = vpop.f32.mrf.mxu0
      %v2849 = vadd.f32 %v2770, %v2848
      %v2850 = vpop.f32.mrf.mxu0
      %2851 = vdwg.mxu0
      %v2852 = vmax.f32 %v2844, 0.0
      %v2853 = vmax.f32 %v2849, 0.0
      %v2854 = vld [vmem:[%s2 + $0x168] sm:$0xff]
      %v2855 = vld [vmem:[%s2 + $0x170] sm:$0xff]
      %v2856 = vld [vmem:[%s2 + $0x178] sm:$0xff]
      %v2857 = vld [vmem:[%s2 + $0x180] sm:$0xff]
      %v2858 = vld [vmem:[%s2 + $0x188] sm:$0xff]
      %v2859 = vld [vmem:[%s2 + $0x190] sm:$0xff]
      %v2860 = vld [vmem:[%s2 + $0x198] sm:$0xff]
      %v2861 = vld [vmem:[%s2 + $0x1a0] sm:$0xff]
      %v2862 = vld [vmem:[%s2 + $0x1a8] sm:$0x1]
      %v2863 = vlaneseq
      %v2864 = vshrl.u32 %v2863, 7
      %v2865 = vsub.s32 0, %v2864
      %v2866 = vrot.slane %v2862, %v2865
      %v2868 = vsel %vm1542, %v2852, 0
      %v2871 = vsel %vm1542, %v2853, 0
      %2873 = vmatprep.subr.mxu0 0.0
      %2874 = vmatpush1.msra.mxu0 0.0
      %2875 = vmatprep.subr.mxu0 0.0
      %2876 = vmatpush1.msra.mxu0 0.0
      %2877 = vmatprep.subr.mxu0 0.0
      %2878 = vmatpush1.msra.mxu0 0.0
      %2879 = vmatprep.subr.mxu0 0.0
      %2880 = vmatpush1.msra.mxu0 0.0
      %2881 = vmatprep.subr.mxu0 0.0
      %2882 = vmatpush1.msra.mxu0 0.0
      %2883 = vmatprep.subr.mxu0 0.0
      %2884 = vmatpush1.msra.mxu0 0.0
      %2885 = vmatprep.subr.mxu0 0.0
      %2886 = vmatpush1.msra.mxu0 0.0
      %2887 = vmatprep.subr.mxu0 0.0
      %2888 = vmatpush1.msra.mxu0 0.0
      %2889 = vmatprep.subr.mxu0 0.0
      %2890 = vmatpush1.msra.mxu0 %v2861
      %2891 = vmatprep.subr.mxu0 0.0
      %2892 = vmatpush1.msra.mxu0 %v2860
      %2893 = vmatprep.subr.mxu0 0.0
      %2894 = vmatpush1.msra.mxu0 %v2859
      %2895 = vmatprep.subr.mxu0 0.0
      %2896 = vmatpush1.msra.mxu0 %v2858
      %2897 = vmatprep.subr.mxu0 0.0
      %2898 = vmatpush1.msra.mxu0 %v2857
      %2899 = vmatprep.subr.mxu0 0.0
      %2900 = vmatpush1.msra.mxu0 %v2856
      %2901 = vmatprep.subr.mxu0 0.0
      %2902 = vmatpush1.msra.mxu0 %v2855
      %2903 = vmatprep.subr.mxu0 0.0
      %2904 = vmatpush1.msra.mxu0 %v2854
      %2905 = vmatprep.subr.mxu0 0.0
      %2906 = vmatpush2.msra.mxu0 0.0
      %2907 = vmatprep.subr.mxu0 0.0
      %2908 = vmatpush2.msra.mxu0 0.0
      %2909 = vmatprep.subr.mxu0 0.0
      %2910 = vmatpush2.msra.mxu0 0.0
      %2911 = vmatprep.subr.mxu0 0.0
      %2912 = vmatpush2.msra.mxu0 0.0
      %2913 = vmatprep.subr.mxu0 0.0
      %2914 = vmatpush2.msra.mxu0 0.0
      %2915 = vmatprep.subr.mxu0 0.0
      %2916 = vmatpush2.msra.mxu0 0.0
      %2917 = vmatprep.subr.mxu0 0.0
      %2918 = vmatpush2.msra.mxu0 0.0
      %2919 = vmatprep.subr.mxu0 0.0
      %2920 = vmatpush2.msra.mxu0 0.0
      %2921 = vmatprep.subr.mxu0 0.0
      %2922 = vmatpush2.msra.mxu0 0.0
      %2923 = vmatprep.subr.mxu0 0.0
      %2924 = vmatpush2.msra.mxu0 0.0
      %2925 = vmatprep.subr.mxu0 0.0
      %2926 = vmatpush2.msra.mxu0 0.0
      %2927 = vmatprep.subr.mxu0 0.0
      %2928 = vmatpush2.msra.mxu0 0.0
      %2929 = vmatprep.subr.mxu0 0.0
      %2930 = vmatpush2.msra.mxu0 0.0
      %2931 = vmatprep.subr.mxu0 0.0
      %2932 = vmatpush2.msra.mxu0 0.0
      %2933 = vmatprep.subr.mxu0 0.0
      %2934 = vmatpush2.msra.mxu0 0.0
      %2935 = vmatprep.subr.mxu0 0.0
      %2936 = vmatpush2.msra.mxu0 0.0
      %2937 = vmatprep.mubr.f32.mxu0 0.0
      %2938 = vmatmul.mubr.f32.gmra.mxu0 %v2868
      %v2939 = vpop.f32.mrf.mxu0
      %v2940 = vadd.f32 %v2866, %v2939
      %v2941 = vpop.f32.mrf.mxu0
      %2942 = vmatprep.mubr.f32.mxu0 0.0
      %2943 = vmatmul.mubr.f32.gmra.mxu0 %v2871
      %v2944 = vpop.f32.mrf.mxu0
      %v2945 = vadd.f32 %v2866, %v2944
      %v2946 = vpop.f32.mrf.mxu0
      %2947 = vdwg.mxu0
      %v2948 = vadd.f32 %v2760, %v2940
      %v2949 = vadd.f32 %v2761, %v2945
      %v2950 = vld [vmem:[%s2 + $0x1c0] sm:$0x1]
      %v2951 = vld [vmem:[%s2 + $0x1c8] sm:$0x1]
      %v2952 = vsel %vm340, %v2948, 0.0
      %2953 = vadd.xlane.f32.xlu0 %v2952
      %v2954 = vpop.xlane.xlu0 %2953
      %v2955 = vsel %vm340, %v2949, 0.0
      %2956 = vadd.xlane.f32.xlu0 %v2955
      %v2957 = vpop.xlane.xlu0 %2956
      %v2958 = vmul.f32 %v2954, %v1404
      %v2959 = vmul.f32 %v2957, %v1404
      %v2960 = vsub.f32 %v2948, %v2958
      %v2961 = vsub.f32 %v2949, %v2959
      %v2962 = vmul.f32 %v2960, %v2960
      %v2963 = vmul.f32 %v2961, %v2961
      %v2964 = vsel %vm340, %v2962, 0.0
      %2965 = vadd.xlane.f32.xlu0 %v2964
      %v2966 = vpop.xlane.xlu0 %2965
      %v2967 = vsel %vm340, %v2963, 0.0
      %2968 = vadd.xlane.f32.xlu0 %v2967
      %v2969 = vpop.xlane.xlu0 %2968
      %v2970 = vmul.f32 %v2966, %v1404
      %v2971 = vmul.f32 %v2969, %v1404
      %v2972 = vadd.f32 %v2970, 1e-05
      %v2973 = vadd.f32 %v2971, 1e-05
      %v2974 = vrsqrt.pop %v2972
      %v2975 = vrsqrt.pop %v2973
      %v2976 = vmul.f32 %v2960, %v2974
      %v2977 = vmul.f32 %v2961, %v2975
      %v2978 = vlaneseq
      %v2979 = vshrl.u32 %v2978, 7
      %v2980 = vsub.s32 0, %v2979
      %v2981 = vrot.slane %v2950, %v2980
      %v2982 = vmul.f32 %v2976, %v2981
      %v2983 = vmul.f32 %v2977, %v2981
      %v2984 = vlaneseq
      %v2985 = vshrl.u32 %v2984, 7
      %v2986 = vsub.s32 0, %v2985
      %v2987 = vrot.slane %v2951, %v2986
      %v2988 = vadd.f32 %v2982, %v2987
      %v2989 = vadd.f32 %v2983, %v2987
      %v2990 = vld [vmem:[%s2 + $0x1d0] sm:$0x1]
      %v2991 = vld [vmem:[%s2 + $0x1d8] sm:$0x1]
      %v2992 = vsel %vm340, %v2988, 0.0
      %2993 = vadd.xlane.f32.xlu0 %v2992
      %v2994 = vpop.xlane.xlu0 %2993
      %v2995 = vsel %vm340, %v2989, 0.0
      %2996 = vadd.xlane.f32.xlu0 %v2995
      %v2997 = vpop.xlane.xlu0 %2996
      %v2998 = vmul.f32 %v2994, %v1404
      %v2999 = vmul.f32 %v2997, %v1404
      %v3000 = vsub.f32 %v2988, %v2998
      %v3001 = vsub.f32 %v2989, %v2999
      %v3002 = vmul.f32 %v3000, %v3000
      %v3003 = vmul.f32 %v3001, %v3001
      %v3004 = vsel %vm340, %v3002, 0.0
      %3005 = vadd.xlane.f32.xlu0 %v3004
      %v3006 = vpop.xlane.xlu0 %3005
      %v3007 = vsel %vm340, %v3003, 0.0
      %3008 = vadd.xlane.f32.xlu0 %v3007
      %v3009 = vpop.xlane.xlu0 %3008
      %v3010 = vmul.f32 %v3006, %v1404
      %v3011 = vmul.f32 %v3009, %v1404
      %v3012 = vadd.f32 %v3010, 1e-05
      %v3013 = vadd.f32 %v3011, 1e-05
      %v3014 = vrsqrt.pop %v3012
      %v3015 = vrsqrt.pop %v3013
      %v3016 = vmul.f32 %v3000, %v3014
      %v3017 = vmul.f32 %v3001, %v3015
      %v3018 = vlaneseq
      %v3019 = vshrl.u32 %v3018, 7
      %v3020 = vsub.s32 0, %v3019
      %v3021 = vrot.slane %v2990, %v3020
      %v3022 = vmul.f32 %v3016, %v3021
      %v3023 = vmul.f32 %v3017, %v3021
      %v3024 = vlaneseq
      %v3025 = vshrl.u32 %v3024, 7
      %v3026 = vsub.s32 0, %v3025
      %v3027 = vrot.slane %v2991, %v3026
      %v3028 = vadd.f32 %v3022, %v3027
      %v3029 = vadd.f32 %v3023, %v3027
      %v3030 = vld [vmem:[%s4] sm:$0xff]
      %v3031 = vld [vmem:[%s4 + $0x8] sm:$0xff]
      %v3032 = vld [vmem:[%s4 + $0x10] sm:$0xff]
      %v3033 = vld [vmem:[%s4 + $0x18] sm:$0xff]
      %v3034 = vld [vmem:[%s4 + $0x20] sm:$0x1]
      %v3035 = vlaneseq
      %v3036 = vshrl.u32 %v3035, 7
      %v3037 = vsub.s32 0, %v3036
      %v3038 = vrot.slane %v3034, %v3037
      %v3040 = vsel %vm340, %v3028, 0
      %v3043 = vsel %vm340, %v3029, 0
      %3045 = vmatprep.subr.mxu0 0.0
      %3046 = vmatpush1.msra.mxu0 0.0
      %3047 = vmatprep.subr.mxu0 0.0
      %3048 = vmatpush1.msra.mxu0 0.0
      %3049 = vmatprep.subr.mxu0 0.0
      %3050 = vmatpush1.msra.mxu0 0.0
      %3051 = vmatprep.subr.mxu0 0.0
      %3052 = vmatpush1.msra.mxu0 0.0
      %3053 = vmatprep.subr.mxu0 0.0
      %3054 = vmatpush1.msra.mxu0 0.0
      %3055 = vmatprep.subr.mxu0 0.0
      %3056 = vmatpush1.msra.mxu0 0.0
      %3057 = vmatprep.subr.mxu0 0.0
      %3058 = vmatpush1.msra.mxu0 0.0
      %3059 = vmatprep.subr.mxu0 0.0
      %3060 = vmatpush1.msra.mxu0 0.0
      %3061 = vmatprep.subr.mxu0 0.0
      %3062 = vmatpush1.msra.mxu0 0.0
      %3063 = vmatprep.subr.mxu0 0.0
      %3064 = vmatpush1.msra.mxu0 0.0
      %3065 = vmatprep.subr.mxu0 0.0
      %3066 = vmatpush1.msra.mxu0 0.0
      %3067 = vmatprep.subr.mxu0 0.0
      %3068 = vmatpush1.msra.mxu0 0.0
      %3069 = vmatprep.subr.mxu0 0.0
      %3070 = vmatpush1.msra.mxu0 %v3033
      %3071 = vmatprep.subr.mxu0 0.0
      %3072 = vmatpush1.msra.mxu0 %v3032
      %3073 = vmatprep.subr.mxu0 0.0
      %3074 = vmatpush1.msra.mxu0 %v3031
      %3075 = vmatprep.subr.mxu0 0.0
      %3076 = vmatpush1.msra.mxu0 %v3030
      %3077 = vmatprep.subr.mxu0 0.0
      %3078 = vmatpush2.msra.mxu0 0.0
      %3079 = vmatprep.subr.mxu0 0.0
      %3080 = vmatpush2.msra.mxu0 0.0
      %3081 = vmatprep.subr.mxu0 0.0
      %3082 = vmatpush2.msra.mxu0 0.0
      %3083 = vmatprep.subr.mxu0 0.0
      %3084 = vmatpush2.msra.mxu0 0.0
      %3085 = vmatprep.subr.mxu0 0.0
      %3086 = vmatpush2.msra.mxu0 0.0
      %3087 = vmatprep.subr.mxu0 0.0
      %3088 = vmatpush2.msra.mxu0 0.0
      %3089 = vmatprep.subr.mxu0 0.0
      %3090 = vmatpush2.msra.mxu0 0.0
      %3091 = vmatprep.subr.mxu0 0.0
      %3092 = vmatpush2.msra.mxu0 0.0
      %3093 = vmatprep.subr.mxu0 0.0
      %3094 = vmatpush2.msra.mxu0 0.0
      %3095 = vmatprep.subr.mxu0 0.0
      %3096 = vmatpush2.msra.mxu0 0.0
      %3097 = vmatprep.subr.mxu0 0.0
      %3098 = vmatpush2.msra.mxu0 0.0
      %3099 = vmatprep.subr.mxu0 0.0
      %3100 = vmatpush2.msra.mxu0 0.0
      %3101 = vmatprep.subr.mxu0 0.0
      %3102 = vmatpush2.msra.mxu0 0.0
      %3103 = vmatprep.subr.mxu0 0.0
      %3104 = vmatpush2.msra.mxu0 0.0
      %3105 = vmatprep.subr.mxu0 0.0
      %3106 = vmatpush2.msra.mxu0 0.0
      %3107 = vmatprep.subr.mxu0 0.0
      %3108 = vmatpush2.msra.mxu0 0.0
      %3109 = vmatprep.mubr.f32.mxu0 0.0
      %3110 = vmatmul.mubr.f32.gmra.mxu0 %v3040
      %v3111 = vpop.f32.mrf.mxu0
      %v3112 = vadd.f32 %v3038, %v3111
      %v3113 = vpop.f32.mrf.mxu0
      %3114 = vmatprep.mubr.f32.mxu0 0.0
      %3115 = vmatmul.mubr.f32.gmra.mxu0 %v3043
      %v3116 = vpop.f32.mrf.mxu0
      %v3117 = vadd.f32 %v3038, %v3116
      %v3118 = vpop.f32.mrf.mxu0
      %3119 = vdwg.mxu0
      %v3120 = vld [vmem:[%s236] sm:$0x1]
      %v3121 = vlaneseq
      %v3122 = vshrl.u32 %v3121, 7
      %v3123 = vsub.s32 0, %v3122
      %v3124 = vrot.slane %v3120, %v3123
      %v3125 = vmul.f32 %v3112, %v3124
      %v3126 = vmul.f32 %v3117, %v3124
      %v3127 = vld [vmem:[%s236 + $0x1] sm:$0x1]
      %v3128 = vlaneseq
      %v3129 = vshrl.u32 %v3128, 7
      %v3130 = vsub.s32 0, %v3129
      %v3131 = vrot.slane %v3127, %v3130
      %v3132 = vadd.f32 %v3125, %v3131
      %v3133 = vadd.f32 %v3126, %v3131
      %3134 = vst [vmem:[%s241] sm:$0xff] %v3132
      %3135 = vst [vmem:[%s241 + $0x8] sm:$0xff] %v3133
      %p3136 = scmp.lt.s32.totalorder %s16, 1
      %s3137 = scalar_select %p3136, %s16, 1
      %s3138 = smul.addr %s3137, 2
      %s3139 = smul.addr %s3138, 8
      %s3140 = scalar_lea.vmem %s5, %s3139
      // Predicated region
      $region41: #{_lambda_.1} parent=39 // pred_check
        %p3141 = pneg %p149
      $region42: #{_lambda_.1} parent=39 // pred_check_branch
        %3143 = sbr.rel (%p3141) target = $region44
      $region43: #{_lambda_.1} parent=39 // pred_region
        _
      $region44: #{_lambda_.1} parent=39 // pred_fallthru
        _
    $region40: #{_lambda_.1} parent=5 // pred_fallthru
      _
    %p3144 = scmp.le.s32.totalorder 2, %s11
    // Predicated region
    $region45: #{_lambda_.1} parent=5 // pred_check
      %p3145 = pneg %p3144
    $region46: #{_lambda_.1} parent=5 // pred_check_branch
      %3147 = sbr.rel (%p3145) target = $region48
    $region47: #{_lambda_.1} parent=5 // pred_region
      %s3148 = ssub.s32 %s11, 2
      // Predicated region
      $region49: #{_lambda_.1} parent=47 // pred_check
        %p3149 = pneg %p155
      $region50: #{_lambda_.1} parent=47 // pred_check_branch
        %3151 = sbr.rel (%p3149) target = $region52
      $region51: #{_lambda_.1} parent=47 // pred_region
        %p3152 = scmp.lt.s32.totalorder %s17, 1
        %s3153 = scalar_select %p3152, %s17, 1
        %s3154 = smul.addr %s3153, 2
        %s3155 = smul.addr %s3154, 8
        %s3156 = scalar_lea.vmem %s5, %s3155
      $region52: #{_lambda_.1} parent=47 // pred_fallthru
        _
    $region48: #{_lambda_.1} parent=5 // pred_fallthru
      _
  $region6: #{_lambda_.1} parent=0 // loop_footer
    %s15 = sadd.s32 1, %s11
  $region7: #{_lambda_.1} parent=0 // loop_footer_branch
    %10 = sbr.rel target = $region3
  $region8: #{_lambda_.1} parent=0 // loop_exit
    _

</llo_original>
